<compile_context>
chip_gen: v7x
topology: tpu7x:2x2x1
jax: 0.10.0
libtpu: 0.0.40
codegen_flags: <defaults>
</compile_context>

<pallas_src>
import functools

import jax
import jax.numpy as jnp
from jax.experimental import pallas as pl
from jax.experimental.pallas import tpu as pltpu


def _quick_gelu(u):
    return u * jax.nn.sigmoid(1.702 * u)


def _layer_norm(x32, g, b, eps=1e-5):
    # torch LayerNorm subclass: compute in fp32 (biased variance, eps=1e-5).
    mu = jnp.mean(x32, axis=-1, keepdims=True)
    var = jnp.mean(jnp.square(x32 - mu), axis=-1, keepdims=True)
    return (x32 - mu) * jax.lax.rsqrt(var + eps) * g + b


def residual_attention_block_kernel(
    x_ref,
    ln1_g_ref, ln1_b_ref,
    w_qkv_ref, b_qkv_ref,
    w_ao_ref, b_ao_ref,          # w_ao_ref is pre-reshaped to (n_head, hd, D)
    ln2_g_ref, ln2_b_ref,
    w_fc_ref, b_fc_ref,
    w_mo_ref, b_mo_ref,
    out_ref, kv_ref,
    *, n_head, d_attn, res_scale,
):
    f32 = jnp.float32
    bf16 = jnp.bfloat16

    x = x_ref[0].astype(f32)                               # (S, D)
    S = x.shape[0]
    hd = d_attn // n_head
    scale = hd ** -0.5

    # ---- ln_1 (fp32) ----
    y = _layer_norm(x, ln1_g_ref[...], ln1_b_ref[...])

    # ---- qkv projection: one wide bf16 matmul, fp32 accumulation ----
    qkv = jnp.dot(y.astype(bf16), w_qkv_ref[...],
                  preferred_element_type=f32) + b_qkv_ref[...]   # (S, 3*d_attn)

    # kv-cache output: k and v are adjacent columns -> single slice, no concat.
    kv_ref[0] = qkv[:, d_attn:3 * d_attn].astype(kv_ref.dtype)

    # ---- batched multi-head causal attention (no per-head matmul loop) ----
    def split_heads(mat):                                   # (S,d_attn)->(H,S,hd)
        return jnp.stack(
            [mat[:, h * hd:(h + 1) * hd] for h in range(n_head)], axis=0)

    q3 = split_heads(qkv[:, 0 * d_attn:1 * d_attn]).astype(bf16)
    k3 = split_heads(qkv[:, 1 * d_attn:2 * d_attn]).astype(bf16)
    v3 = split_heads(qkv[:, 2 * d_attn:3 * d_attn]).astype(bf16)

    s = jnp.einsum("hqd,hkd->hqk", q3, k3,
                   preferred_element_type=f32) * scale       # (H, S, S) fp32
    row = jax.lax.broadcasted_iota(jnp.int32, (S, S), 0)
    col = jax.lax.broadcasted_iota(jnp.int32, (S, S), 1)
    s = jnp.where((row >= col)[None, :, :], s, f32(-1e30))

    s = s - jnp.max(s, axis=-1, keepdims=True)
    p = jnp.exp(s)
    p = p * pl.reciprocal(jnp.sum(p, axis=-1, keepdims=True), approx=True)

    ctx = jnp.einsum("hqk,hkd->hqd", p.astype(bf16), v3,
                     preferred_element_type=f32)             # (H, S, hd)

    # out-projection with per-head weights (H, hd, D): batched matmul + head-sum
    # (avoids the lane-axis concatenate back to (S, d_attn)).
    ah = jnp.einsum("hqd,hde->hqe", ctx.astype(bf16), w_ao_ref[...],
                    preferred_element_type=f32)              # (H, S, D)
    a = jnp.sum(ah, axis=0) + b_ao_ref[...]                  # (S, D)

    # ---- residual + ln_2 ----
    xr = x + a
    z = _layer_norm(xr, ln2_g_ref[...], ln2_b_ref[...])

    # ---- MLP: bf16 matmuls, fp32 accumulate, fp32 quick_gelu ----
    h1 = jnp.dot(z.astype(bf16), w_fc_ref[...],
                 preferred_element_type=f32) + b_fc_ref[...]
    g = _quick_gelu(h1)
    m = jnp.dot(g.astype(bf16), w_mo_ref[...],
                preferred_element_type=f32) + b_mo_ref[...]

    # ---- final residual ----
    out_ref[0] = (x + res_scale * (a + m)).astype(out_ref.dtype)


def residual_attention_block(x, params, *, n_head, d_attn, res_scale=1.0):
    B, S, D = x.shape
    hd = d_attn // n_head
    d_ff = params["w_fc"].shape[-1]
    wdt = jnp.bfloat16   # matmul weights live in bf16 (fp32 accumulation in-kernel)

    param_list = [
        params["ln1_g"], params["ln1_b"],
        params["w_qkv"].astype(wdt), params["b_qkv"],
        params["w_ao"].reshape(n_head, hd, D).astype(wdt), params["b_ao"],
        params["ln2_g"], params["ln2_b"],
        params["w_fc"].astype(wdt), params["b_fc"],
        params["w_mo"].astype(wdt), params["b_mo"],
    ]

    kernel = functools.partial(
        residual_attention_block_kernel,
        n_head=n_head, d_attn=d_attn, res_scale=res_scale)

    out_shape = (
        jax.ShapeDtypeStruct((B, S, D), x.dtype),
        jax.ShapeDtypeStruct((B, S, 2 * d_attn), x.dtype),
    )
    out_specs = (
        pl.BlockSpec((1, S, D), lambda b: (b, 0, 0)),
        pl.BlockSpec((1, S, 2 * d_attn), lambda b: (b, 0, 0)),
    )

    # Advisory cost estimate so XLA schedules around the fused call.
    flops = 2 * B * S * (D * 3 * d_attn + 2 * n_head * S * hd
                         + d_attn * D + 2 * D * d_ff)
    transcendentals = B * S * (n_head * S + d_ff)
    bytes_accessed = (2 * x.size * x.dtype.itemsize
                      + B * S * 2 * d_attn * x.dtype.itemsize
                      + sum(int(p.size) * p.dtype.itemsize for p in param_list))
    cost = pl.CostEstimate(flops=int(flops),
                           transcendentals=int(transcendentals),
                           bytes_accessed=int(bytes_accessed))

    def build(weight_pipeline_mode):
        def param_spec(p):
            idx = lambda b, _nd=p.ndim: (0,) * _nd
            if weight_pipeline_mode is None:
                return pl.BlockSpec(p.shape, idx)
            return pl.BlockSpec(p.shape, idx,
                                pipeline_mode=weight_pipeline_mode)

        in_specs = [pl.BlockSpec((1, S, D), lambda b: (b, 0, 0))] + \
                   [param_spec(p) for p in param_list]
        return pl.pallas_call(
            kernel,
            grid=(B,),
            in_specs=in_specs,
            out_specs=out_specs,
            out_shape=out_shape,
            cost_estimate=cost,
            compiler_params=pltpu.CompilerParams(
                dimension_semantics=("parallel",)),
        )

    try:
        # Grid-constant weights only need one VMEM buffer (halves weight VMEM
        # vs. default double-buffering; relevant on v7x's 64 MiB VMEM).
        return build(pl.Buffered(1))(x, *param_list)
    except Exception:
        # TODO(synk): fall back to default double-buffered weight BlockSpecs if
        # this JAX build rejects single-buffered (pipeline_mode=Buffered(1)) inputs.
        return build(None)(x, *param_list)


def init_params(key, d_model, d_attn, d_ff, key_bias=False):
    ks = jax.random.split(key, 12)
    f32 = jnp.float32
    p = {
        "ln1_g": 1.0 + 0.1 * jax.random.normal(ks[0], (1, d_model), f32),
        "ln1_b": 0.1 * jax.random.normal(ks[1], (1, d_model), f32),
        "w_qkv": 0.02 * jax.random.normal(ks[2], (d_model, 3 * d_attn), f32),
        "b_qkv": 0.01 * jax.random.normal(ks[3], (1, 3 * d_attn), f32),
        "w_ao": 0.02 * jax.random.normal(ks[4], (d_attn, d_model), f32),
        "b_ao": 0.01 * jax.random.normal(ks[5], (1, d_model), f32),
        "ln2_g": 1.0 + 0.1 * jax.random.normal(ks[6], (1, d_model), f32),
        "ln2_b": 0.1 * jax.random.normal(ks[7], (1, d_model), f32),
        "w_fc": 0.02 * jax.random.normal(ks[8], (d_model, d_ff), f32),
        "b_fc": 0.01 * jax.random.normal(ks[9], (1, d_ff), f32),
        "w_mo": 0.02 * jax.random.normal(ks[10], (d_ff, d_model), f32),
        "b_mo": 0.01 * jax.random.normal(ks[11], (1, d_model), f32),
    }
    if not key_bias:
        # key_bias=False: keys take no bias (zero the key slice of the qkv bias)
        p["b_qkv"] = p["b_qkv"].at[:, d_attn:2 * d_attn].set(0.0)
    return p


if __name__ == "__main__":
    # Config consistent with the module constructor:
    #   d_model=256, n_ctx=32, n_head=2, m_attn=0.25 -> d_attn=64 (hd=32),
    #   m_mlp=1.0 -> d_ff=256.  D=256 and 2*d_attn=128 keep outputs lane-dense.
    B, S, D = 2, 32, 256
    n_head, m_attn, m_mlp, res_scale = 2, 0.25, 1.0, 1.0
    d_attn = int(m_attn * D)
    d_ff = int(m_mlp * D)

    key = jax.random.PRNGKey(0)
    kx, kp = jax.random.split(key)
    x = jax.random.normal(kx, (B, S, D), jnp.float32)
    params = init_params(kp, D, d_attn, d_ff, key_bias=False)

    out, hidden_state = residual_attention_block(
        x, params, n_head=n_head, d_attn=d_attn, res_scale=res_scale)
    jax.block_until_ready((out, hidden_state))

    assert out.shape == (B, S, D) and out.dtype == jnp.float32
    assert hidden_state.shape == (B, S, 2 * d_attn)
    assert bool(jnp.isfinite(out).all()) and bool(jnp.isfinite(hidden_state).all())
    # TODO(synk): attn_dropout / resid_dropout are 0.0 and mp_comm is None in the
    # reference defaults, so dropout and all_reduce are intentionally omitted.
    print("KERNEL_OK")
</pallas_src>

<mosaic_0001>
module attributes {stable_mosaic.version = 11 : i64} {
  func.func @residual_attention_block_kernel(%arg0: i32, %arg1: memref<1x32x256xf32, #tpu.memory_space<vmem>>, %arg2: memref<1x256xf32, #tpu.memory_space<vmem>>, %arg3: memref<1x256xf32, #tpu.memory_space<vmem>>, %arg4: memref<256x192xbf16, #tpu.memory_space<vmem>>, %arg5: memref<1x192xf32, #tpu.memory_space<vmem>>, %arg6: memref<2x32x256xbf16, #tpu.memory_space<vmem>>, %arg7: memref<1x256xf32, #tpu.memory_space<vmem>>, %arg8: memref<1x256xf32, #tpu.memory_space<vmem>>, %arg9: memref<1x256xf32, #tpu.memory_space<vmem>>, %arg10: memref<256x256xbf16, #tpu.memory_space<vmem>>, %arg11: memref<1x256xf32, #tpu.memory_space<vmem>>, %arg12: memref<256x256xbf16, #tpu.memory_space<vmem>>, %arg13: memref<1x256xf32, #tpu.memory_space<vmem>>, %arg14: memref<1x32x256xf32, #tpu.memory_space<vmem>>, %arg15: memref<1x32x128xf32, #tpu.memory_space<vmem>>) attributes {dimension_semantics = [#tpu.dimension_semantics<parallel>], iteration_bounds = array<i64: 2>, scalar_prefetch = 0 : i64, scratch_operands = 0 : i64, tpu.core_type = #tpu.core_type<tc>, window_params = [{transform_indices = @transform_0, window_bounds = array<i64: 1, 32, 256>}, {pipeline_mode = #tpu.pipeline_mode<synchronous>, transform_indices = @transform_1, window_bounds = array<i64: 1, 256>}, {pipeline_mode = #tpu.pipeline_mode<synchronous>, transform_indices = @transform_2, window_bounds = array<i64: 1, 256>}, {pipeline_mode = #tpu.pipeline_mode<synchronous>, transform_indices = @transform_3, window_bounds = array<i64: 256, 192>}, {pipeline_mode = #tpu.pipeline_mode<synchronous>, transform_indices = @transform_4, window_bounds = array<i64: 1, 192>}, {pipeline_mode = #tpu.pipeline_mode<synchronous>, transform_indices = @transform_5, window_bounds = array<i64: 2, 32, 256>}, {pipeline_mode = #tpu.pipeline_mode<synchronous>, transform_indices = @transform_6, window_bounds = array<i64: 1, 256>}, {pipeline_mode = #tpu.pipeline_mode<synchronous>, transform_indices = @transform_7, window_bounds = array<i64: 1, 256>}, {pipeline_mode = #tpu.pipeline_mode<synchronous>, transform_indices = @transform_8, window_bounds = array<i64: 1, 256>}, {pipeline_mode = #tpu.pipeline_mode<synchronous>, transform_indices = @transform_9, window_bounds = array<i64: 256, 256>}, {pipeline_mode = #tpu.pipeline_mode<synchronous>, transform_indices = @transform_10, window_bounds = array<i64: 1, 256>}, {pipeline_mode = #tpu.pipeline_mode<synchronous>, transform_indices = @transform_11, window_bounds = array<i64: 256, 256>}, {pipeline_mode = #tpu.pipeline_mode<synchronous>, transform_indices = @transform_12, window_bounds = array<i64: 1, 256>}, {transform_indices = @transform_13, window_bounds = array<i64: 1, 32, 256>}, {transform_indices = @transform_14, window_bounds = array<i64: 1, 32, 128>}]} {
    %c0 = arith.constant 0 : index
    %c0_0 = arith.constant 0 : index
    %c0_1 = arith.constant 0 : index
    %0 = vector.load %arg1[%c0, %c0_0, %c0_1] : memref<1x32x256xf32, #tpu.memory_space<vmem>>, vector<1x32x256xf32>
    %1 = vector.shape_cast %0 : vector<1x32x256xf32> to vector<32x256xf32>
    %c0_2 = arith.constant 0 : index
    %c0_3 = arith.constant 0 : index
    %2 = vector.load %arg2[%c0_2, %c0_3] : memref<1x256xf32, #tpu.memory_space<vmem>>, vector<1x256xf32>
    %c0_4 = arith.constant 0 : index
    %c0_5 = arith.constant 0 : index
    %3 = vector.load %arg3[%c0_4, %c0_5] : memref<1x256xf32, #tpu.memory_space<vmem>>, vector<1x256xf32>
    %cst = arith.constant dense<0.000000e+00> : vector<32xf32>
    %4 = vector.multi_reduction <add>, %1, %cst [1] : vector<32x256xf32> to vector<32xf32>
    %5 = vector.shape_cast %4 : vector<32xf32> to vector<32x1xf32>
    %cst_6 = arith.constant 2.560000e+02 : f32
    %6 = vector.broadcast %cst_6 : f32 to vector<32x1xf32>
    %7 = arith.divf %5, %6 : vector<32x1xf32>
    %8 = vector.broadcast %7 : vector<32x1xf32> to vector<32x256xf32>
    %9 = arith.subf %1, %8 : vector<32x256xf32>
    %10 = arith.mulf %9, %9 : vector<32x256xf32>
    %cst_7 = arith.constant dense<0.000000e+00> : vector<32xf32>
    %11 = vector.multi_reduction <add>, %10, %cst_7 [1] : vector<32x256xf32> to vector<32xf32>
    %12 = vector.shape_cast %11 : vector<32xf32> to vector<32x1xf32>
    %cst_8 = arith.constant 2.560000e+02 : f32
    %13 = vector.broadcast %cst_8 : f32 to vector<32x1xf32>
    %14 = arith.divf %12, %13 : vector<32x1xf32>
    %15 = vector.broadcast %7 : vector<32x1xf32> to vector<32x256xf32>
    %16 = arith.subf %1, %15 : vector<32x256xf32>
    %cst_9 = arith.constant 9.99999974E-6 : f32
    %17 = vector.broadcast %cst_9 : f32 to vector<32x1xf32>
    %18 = arith.addf %14, %17 : vector<32x1xf32>
    %19 = math.rsqrt %18 : vector<32x1xf32>
    %20 = vector.broadcast %19 : vector<32x1xf32> to vector<32x256xf32>
    %21 = arith.mulf %16, %20 : vector<32x256xf32>
    %22 = vector.broadcast %2 : vector<1x256xf32> to vector<32x256xf32>
    %23 = arith.mulf %21, %22 : vector<32x256xf32>
    %24 = vector.broadcast %3 : vector<1x256xf32> to vector<32x256xf32>
    %25 = arith.addf %23, %24 : vector<32x256xf32>
    %26 = arith.truncf %25 : vector<32x256xf32> to vector<32x256xbf16>
    %c0_10 = arith.constant 0 : index
    %c0_11 = arith.constant 0 : index
    %27 = vector.load %arg4[%c0_10, %c0_11] : memref<256x192xbf16, #tpu.memory_space<vmem>>, vector<256x192xbf16>
    %cst_12 = arith.constant dense<0.000000e+00> : vector<32x192xf32>
    %28 = tpu.matmul %26, %27, %cst_12 {dimension_numbers = #tpu.dot_dimension_numbers<[1], [0], [0], [1], [0, 0, 1, 1], [], []>} : vector<32x256xbf16>, vector<256x192xbf16>, vector<32x192xf32> -> vector<32x192xf32>
    %c0_13 = arith.constant 0 : index
    %c0_14 = arith.constant 0 : index
    %29 = vector.load %arg5[%c0_13, %c0_14] : memref<1x192xf32, #tpu.memory_space<vmem>>, vector<1x192xf32>
    %30 = vector.broadcast %29 : vector<1x192xf32> to vector<32x192xf32>
    %31 = arith.addf %28, %30 : vector<32x192xf32>
    %32 = vector.extract_strided_slice %31 {offsets = [0, 64], sizes = [32, 128], strides = [1, 1]} : vector<32x192xf32> to vector<32x128xf32>
    %c0_15 = arith.constant 0 : index
    %c0_16 = arith.constant 0 : index
    %c0_17 = arith.constant 0 : index
    %33 = vector.load %arg15[%c0_15, %c0_16, %c0_17] : memref<1x32x128xf32, #tpu.memory_space<vmem>>, vector<1x32x128xf32>
    %34 = vector.shape_cast %33 : vector<1x32x128xf32> to vector<32x128xf32>
    %35 = vector.shape_cast %32 : vector<32x128xf32> to vector<1x32x128xf32>
    tpu.vector_store %arg15[%c0_15, %c0_16, %c0_17], %35 {strides = array<i32>} : memref<1x32x128xf32, #tpu.memory_space<vmem>>, vector<1x32x128xf32>,
    %36 = vector.extract_strided_slice %31 {offsets = [0, 0], sizes = [32, 64], strides = [1, 1]} : vector<32x192xf32> to vector<32x64xf32>
    %37 = vector.extract_strided_slice %36 {offsets = [0, 0], sizes = [32, 32], strides = [1, 1]} : vector<32x64xf32> to vector<32x32xf32>
    %38 = vector.extract_strided_slice %36 {offsets = [0, 32], sizes = [32, 32], strides = [1, 1]} : vector<32x64xf32> to vector<32x32xf32>
    %39 = vector.shape_cast %37 : vector<32x32xf32> to vector<1x32x32xf32>
    %40 = vector.shape_cast %38 : vector<32x32xf32> to vector<1x32x32xf32>
    %41 = tpu.concatenate %39, %40 in 0 : vector<1x32x32xf32>, vector<1x32x32xf32> -> vector<2x32x32xf32>
    %42 = arith.truncf %41 : vector<2x32x32xf32> to vector<2x32x32xbf16>
    %43 = vector.extract_strided_slice %31 {offsets = [0, 64], sizes = [32, 64], strides = [1, 1]} : vector<32x192xf32> to vector<32x64xf32>
    %44 = vector.extract_strided_slice %43 {offsets = [0, 0], sizes = [32, 32], strides = [1, 1]} : vector<32x64xf32> to vector<32x32xf32>
    %45 = vector.extract_strided_slice %43 {offsets = [0, 32], sizes = [32, 32], strides = [1, 1]} : vector<32x64xf32> to vector<32x32xf32>
    %46 = vector.shape_cast %44 : vector<32x32xf32> to vector<1x32x32xf32>
    %47 = vector.shape_cast %45 : vector<32x32xf32> to vector<1x32x32xf32>
    %48 = tpu.concatenate %46, %47 in 0 : vector<1x32x32xf32>, vector<1x32x32xf32> -> vector<2x32x32xf32>
    %49 = arith.truncf %48 : vector<2x32x32xf32> to vector<2x32x32xbf16>
    %50 = vector.extract_strided_slice %31 {offsets = [0, 128], sizes = [32, 64], strides = [1, 1]} : vector<32x192xf32> to vector<32x64xf32>
    %51 = vector.extract_strided_slice %50 {offsets = [0, 0], sizes = [32, 32], strides = [1, 1]} : vector<32x64xf32> to vector<32x32xf32>
    %52 = vector.extract_strided_slice %50 {offsets = [0, 32], sizes = [32, 32], strides = [1, 1]} : vector<32x64xf32> to vector<32x32xf32>
    %53 = vector.shape_cast %51 : vector<32x32xf32> to vector<1x32x32xf32>
    %54 = vector.shape_cast %52 : vector<32x32xf32> to vector<1x32x32xf32>
    %55 = tpu.concatenate %53, %54 in 0 : vector<1x32x32xf32>, vector<1x32x32xf32> -> vector<2x32x32xf32>
    %56 = arith.truncf %55 : vector<2x32x32xf32> to vector<2x32x32xbf16>
    "tpu.trace_start"() <{level = 10 : i32, message = "hqd,hkd->hqk"}> : () -> ()
    %cst_18 = arith.constant dense<0.000000e+00> : vector<2x32x32xf32>
    %57 = tpu.matmul %42, %49, %cst_18 {dimension_numbers = #tpu.dot_dimension_numbers<[2], [2], [1], [1], [0, 0, 0, 1, 1, 1], [0], [0]>} : vector<2x32x32xbf16>, vector<2x32x32xbf16>, vector<2x32x32xf32> -> vector<2x32x32xf32>
    "tpu.trace_stop"() : () -> ()
    %cst_19 = arith.constant 0.176776692 : f32
    %58 = vector.broadcast %cst_19 : f32 to vector<2x32x32xf32>
    %59 = arith.mulf %57, %58 : vector<2x32x32xf32>
    %60 = tpu.iota {dimensions = array<i32: 0>} : vector<32x32xi32>
    %61 = tpu.iota {dimensions = array<i32: 1>} : vector<32x32xi32>
    %62 = arith.cmpi sge, %60, %61 : vector<32x32xi32>
    %63 = vector.shape_cast %62 : vector<32x32xi1> to vector<1x32x32xi1>
    %cst_20 = arith.constant -1.000000e+30 : f32
    %64 = vector.shape_cast %63 : vector<1x32x32xi1> to vector<1x32x32xi1>
    %65 = vector.broadcast %64 : vector<1x32x32xi1> to vector<2x32x32xi1>
    %66 = vector.broadcast %cst_20 : f32 to vector<2x32x32xf32>
    %67 = arith.select %65, %59, %66 : vector<2x32x32xi1>, vector<2x32x32xf32>
    %cst_21 = arith.constant dense<0xFF800000> : vector<2x32xf32>
    %68 = vector.multi_reduction <maximumf>, %67, %cst_21 [2] : vector<2x32x32xf32> to vector<2x32xf32>
    %69 = vector.shape_cast %68 : vector<2x32xf32> to vector<2x32x1xf32>
    %70 = vector.broadcast %69 : vector<2x32x1xf32> to vector<2x32x32xf32>
    %71 = arith.subf %67, %70 : vector<2x32x32xf32>
    %72 = math.exp %71 : vector<2x32x32xf32>
    %cst_22 = arith.constant dense<0.000000e+00> : vector<2x32xf32>
    %73 = vector.multi_reduction <add>, %72, %cst_22 [2] : vector<2x32x32xf32> to vector<2x32xf32>
    %74 = vector.shape_cast %73 : vector<2x32xf32> to vector<2x32x1xf32>
    %75 = tpu.reciprocal %74 {approx = true} : vector<2x32x1xf32> -> vector<2x32x1xf32>
    %76 = vector.broadcast %75 : vector<2x32x1xf32> to vector<2x32x32xf32>
    %77 = arith.mulf %72, %76 : vector<2x32x32xf32>
    %78 = arith.truncf %77 : vector<2x32x32xf32> to vector<2x32x32xbf16>
    "tpu.trace_start"() <{level = 10 : i32, message = "hqk,hkd->hqd"}> : () -> ()
    %cst_23 = arith.constant dense<0.000000e+00> : vector<2x32x32xf32>
    %79 = tpu.matmul %78, %56, %cst_23 {dimension_numbers = #tpu.dot_dimension_numbers<[2], [1], [1], [2], [0, 0, 0, 1, 1, 2], [0], [0]>} : vector<2x32x32xbf16>, vector<2x32x32xbf16>, vector<2x32x32xf32> -> vector<2x32x32xf32>
    "tpu.trace_stop"() : () -> ()
    %80 = arith.truncf %79 : vector<2x32x32xf32> to vector<2x32x32xbf16>
    %c0_24 = arith.constant 0 : index
    %c0_25 = arith.constant 0 : index
    %c0_26 = arith.constant 0 : index
    %81 = vector.load %arg6[%c0_24, %c0_25, %c0_26] : memref<2x32x256xbf16, #tpu.memory_space<vmem>>, vector<2x32x256xbf16>
    "tpu.trace_start"() <{level = 10 : i32, message = "hqd,hde->hqe"}> : () -> ()
    %cst_27 = arith.constant dense<0.000000e+00> : vector<2x32x256xf32>
    %82 = tpu.matmul %80, %81, %cst_27 {dimension_numbers = #tpu.dot_dimension_numbers<[2], [1], [1], [2], [0, 0, 0, 1, 1, 2], [0], [0]>} : vector<2x32x32xbf16>, vector<2x32x256xbf16>, vector<2x32x256xf32> -> vector<2x32x256xf32>
    "tpu.trace_stop"() : () -> ()
    %cst_28 = arith.constant dense<0.000000e+00> : vector<32x256xf32>
    %83 = vector.multi_reduction <add>, %82, %cst_28 [0] : vector<2x32x256xf32> to vector<32x256xf32>
    %c0_29 = arith.constant 0 : index
    %c0_30 = arith.constant 0 : index
    %84 = vector.load %arg7[%c0_29, %c0_30] : memref<1x256xf32, #tpu.memory_space<vmem>>, vector<1x256xf32>
    %85 = vector.broadcast %84 : vector<1x256xf32> to vector<32x256xf32>
    %86 = arith.addf %83, %85 : vector<32x256xf32>
    %87 = arith.addf %1, %86 : vector<32x256xf32>
    %c0_31 = arith.constant 0 : index
    %c0_32 = arith.constant 0 : index
    %88 = vector.load %arg8[%c0_31, %c0_32] : memref<1x256xf32, #tpu.memory_space<vmem>>, vector<1x256xf32>
    %c0_33 = arith.constant 0 : index
    %c0_34 = arith.constant 0 : index
    %89 = vector.load %arg9[%c0_33, %c0_34] : memref<1x256xf32, #tpu.memory_space<vmem>>, vector<1x256xf32>
    %cst_35 = arith.constant dense<0.000000e+00> : vector<32xf32>
    %90 = vector.multi_reduction <add>, %87, %cst_35 [1] : vector<32x256xf32> to vector<32xf32>
    %91 = vector.shape_cast %90 : vector<32xf32> to vector<32x1xf32>
    %cst_36 = arith.constant 2.560000e+02 : f32
    %92 = vector.broadcast %cst_36 : f32 to vector<32x1xf32>
    %93 = arith.divf %91, %92 : vector<32x1xf32>
    %94 = vector.broadcast %93 : vector<32x1xf32> to vector<32x256xf32>
    %95 = arith.subf %87, %94 : vector<32x256xf32>
    %96 = arith.mulf %95, %95 : vector<32x256xf32>
    %cst_37 = arith.constant dense<0.000000e+00> : vector<32xf32>
    %97 = vector.multi_reduction <add>, %96, %cst_37 [1] : vector<32x256xf32> to vector<32xf32>
    %98 = vector.shape_cast %97 : vector<32xf32> to vector<32x1xf32>
    %cst_38 = arith.constant 2.560000e+02 : f32
    %99 = vector.broadcast %cst_38 : f32 to vector<32x1xf32>
    %100 = arith.divf %98, %99 : vector<32x1xf32>
    %101 = vector.broadcast %93 : vector<32x1xf32> to vector<32x256xf32>
    %102 = arith.subf %87, %101 : vector<32x256xf32>
    %cst_39 = arith.constant 9.99999974E-6 : f32
    %103 = vector.broadcast %cst_39 : f32 to vector<32x1xf32>
    %104 = arith.addf %100, %103 : vector<32x1xf32>
    %105 = math.rsqrt %104 : vector<32x1xf32>
    %106 = vector.broadcast %105 : vector<32x1xf32> to vector<32x256xf32>
    %107 = arith.mulf %102, %106 : vector<32x256xf32>
    %108 = vector.broadcast %88 : vector<1x256xf32> to vector<32x256xf32>
    %109 = arith.mulf %107, %108 : vector<32x256xf32>
    %110 = vector.broadcast %89 : vector<1x256xf32> to vector<32x256xf32>
    %111 = arith.addf %109, %110 : vector<32x256xf32>
    %112 = arith.truncf %111 : vector<32x256xf32> to vector<32x256xbf16>
    %c0_40 = arith.constant 0 : index
    %c0_41 = arith.constant 0 : index
    %113 = vector.load %arg10[%c0_40, %c0_41] : memref<256x256xbf16, #tpu.memory_space<vmem>>, vector<256x256xbf16>
    %cst_42 = arith.constant dense<0.000000e+00> : vector<32x256xf32>
    %114 = tpu.matmul %112, %113, %cst_42 {dimension_numbers = #tpu.dot_dimension_numbers<[1], [0], [0], [1], [0, 0, 1, 1], [], []>} : vector<32x256xbf16>, vector<256x256xbf16>, vector<32x256xf32> -> vector<32x256xf32>
    %c0_43 = arith.constant 0 : index
    %c0_44 = arith.constant 0 : index
    %115 = vector.load %arg11[%c0_43, %c0_44] : memref<1x256xf32, #tpu.memory_space<vmem>>, vector<1x256xf32>
    %116 = vector.broadcast %115 : vector<1x256xf32> to vector<32x256xf32>
    %117 = arith.addf %114, %116 : vector<32x256xf32>
    %cst_45 = arith.constant 1.702000e+00 : f32
    %118 = vector.broadcast %cst_45 : f32 to vector<32x256xf32>
    %119 = arith.mulf %118, %117 : vector<32x256xf32>
    %120 = arith.negf %119 : vector<32x256xf32>
    %121 = math.exp %120 : vector<32x256xf32>
    %cst_46 = arith.constant 1.000000e+00 : f32
    %122 = vector.broadcast %cst_46 : f32 to vector<32x256xf32>
    %123 = arith.addf %122, %121 : vector<32x256xf32>
    %124 = arith.divf %122, %123 : vector<32x256xf32>
    %125 = arith.mulf %117, %124 : vector<32x256xf32>
    %126 = arith.truncf %125 : vector<32x256xf32> to vector<32x256xbf16>
    %c0_47 = arith.constant 0 : index
    %c0_48 = arith.constant 0 : index
    %127 = vector.load %arg12[%c0_47, %c0_48] : memref<256x256xbf16, #tpu.memory_space<vmem>>, vector<256x256xbf16>
    %cst_49 = arith.constant dense<0.000000e+00> : vector<32x256xf32>
    %128 = tpu.matmul %126, %127, %cst_49 {dimension_numbers = #tpu.dot_dimension_numbers<[1], [0], [0], [1], [0, 0, 1, 1], [], []>} : vector<32x256xbf16>, vector<256x256xbf16>, vector<32x256xf32> -> vector<32x256xf32>
    %c0_50 = arith.constant 0 : index
    %c0_51 = arith.constant 0 : index
    %129 = vector.load %arg13[%c0_50, %c0_51] : memref<1x256xf32, #tpu.memory_space<vmem>>, vector<1x256xf32>
    %130 = vector.broadcast %129 : vector<1x256xf32> to vector<32x256xf32>
    %131 = arith.addf %128, %130 : vector<32x256xf32>
    %132 = arith.addf %86, %131 : vector<32x256xf32>
    %cst_52 = arith.constant 1.000000e+00 : f32
    %133 = vector.broadcast %cst_52 : f32 to vector<32x256xf32>
    %134 = arith.mulf %133, %132 : vector<32x256xf32>
    %135 = arith.addf %1, %134 : vector<32x256xf32>
    %c0_53 = arith.constant 0 : index
    %c0_54 = arith.constant 0 : index
    %c0_55 = arith.constant 0 : index
    %136 = vector.load %arg14[%c0_53, %c0_54, %c0_55] : memref<1x32x256xf32, #tpu.memory_space<vmem>>, vector<1x32x256xf32>
    %137 = vector.shape_cast %136 : vector<1x32x256xf32> to vector<32x256xf32>
    %138 = vector.shape_cast %135 : vector<32x256xf32> to vector<1x32x256xf32>
    tpu.vector_store %arg14[%c0_53, %c0_54, %c0_55], %138 {strides = array<i32>} : memref<1x32x256xf32, #tpu.memory_space<vmem>>, vector<1x32x256xf32>,
    return
  }
  func.func @transform_0(%arg0: i32) -> (i32, i32, i32) {
    %c0_i32 = arith.constant 0 : i32
    %c0_i32_0 = arith.constant 0 : i32
    %c0_i32_1 = arith.constant 0 : i32
    return %arg0, %c0_i32, %c0_i32_0 : i32, i32, i32
  }
  func.func @transform_1(%arg0: i32) -> (i32, i32) {
    %c0_i32 = arith.constant 0 : i32
    %c0_i32_0 = arith.constant 0 : i32
    %c0_i32_1 = arith.constant 0 : i32
    return %c0_i32, %c0_i32_0 : i32, i32
  }
  func.func @transform_2(%arg0: i32) -> (i32, i32) {
    %c0_i32 = arith.constant 0 : i32
    %c0_i32_0 = arith.constant 0 : i32
    %c0_i32_1 = arith.constant 0 : i32
    return %c0_i32, %c0_i32_0 : i32, i32
  }
  func.func @transform_3(%arg0: i32) -> (i32, i32) {
    %c0_i32 = arith.constant 0 : i32
    %c0_i32_0 = arith.constant 0 : i32
    %c0_i32_1 = arith.constant 0 : i32
    return %c0_i32, %c0_i32_0 : i32, i32
  }
  func.func @transform_4(%arg0: i32) -> (i32, i32) {
    %c0_i32 = arith.constant 0 : i32
    %c0_i32_0 = arith.constant 0 : i32
    %c0_i32_1 = arith.constant 0 : i32
    return %c0_i32, %c0_i32_0 : i32, i32
  }
  func.func @transform_5(%arg0: i32) -> (i32, i32, i32) {
    %c0_i32 = arith.constant 0 : i32
    %c0_i32_0 = arith.constant 0 : i32
    %c0_i32_1 = arith.constant 0 : i32
    %c0_i32_2 = arith.constant 0 : i32
    return %c0_i32, %c0_i32_0, %c0_i32_1 : i32, i32, i32
  }
  func.func @transform_6(%arg0: i32) -> (i32, i32) {
    %c0_i32 = arith.constant 0 : i32
    %c0_i32_0 = arith.constant 0 : i32
    %c0_i32_1 = arith.constant 0 : i32
    return %c0_i32, %c0_i32_0 : i32, i32
  }
  func.func @transform_7(%arg0: i32) -> (i32, i32) {
    %c0_i32 = arith.constant 0 : i32
    %c0_i32_0 = arith.constant 0 : i32
    %c0_i32_1 = arith.constant 0 : i32
    return %c0_i32, %c0_i32_0 : i32, i32
  }
  func.func @transform_8(%arg0: i32) -> (i32, i32) {
    %c0_i32 = arith.constant 0 : i32
    %c0_i32_0 = arith.constant 0 : i32
    %c0_i32_1 = arith.constant 0 : i32
    return %c0_i32, %c0_i32_0 : i32, i32
  }
  func.func @transform_9(%arg0: i32) -> (i32, i32) {
    %c0_i32 = arith.constant 0 : i32
    %c0_i32_0 = arith.constant 0 : i32
    %c0_i32_1 = arith.constant 0 : i32
    return %c0_i32, %c0_i32_0 : i32, i32
  }
  func.func @transform_10(%arg0: i32) -> (i32, i32) {
    %c0_i32 = arith.constant 0 : i32
    %c0_i32_0 = arith.constant 0 : i32
    %c0_i32_1 = arith.constant 0 : i32
    return %c0_i32, %c0_i32_0 : i32, i32
  }
  func.func @transform_11(%arg0: i32) -> (i32, i32) {
    %c0_i32 = arith.constant 0 : i32
    %c0_i32_0 = arith.constant 0 : i32
    %c0_i32_1 = arith.constant 0 : i32
    return %c0_i32, %c0_i32_0 : i32, i32
  }
  func.func @transform_12(%arg0: i32) -> (i32, i32) {
    %c0_i32 = arith.constant 0 : i32
    %c0_i32_0 = arith.constant 0 : i32
    %c0_i32_1 = arith.constant 0 : i32
    return %c0_i32, %c0_i32_0 : i32, i32
  }
  func.func @transform_13(%arg0: i32) -> (i32, i32, i32) {
    %c0_i32 = arith.constant 0 : i32
    %c0_i32_0 = arith.constant 0 : i32
    %c0_i32_1 = arith.constant 0 : i32
    return %arg0, %c0_i32, %c0_i32_0 : i32, i32, i32
  }
  func.func @transform_14(%arg0: i32) -> (i32, i32, i32) {
    %c0_i32 = arith.constant 0 : i32
    %c0_i32_0 = arith.constant 0 : i32
    %c0_i32_1 = arith.constant 0 : i32
    return %arg0, %c0_i32, %c0_i32_0 : i32, i32, i32
  }
}

module attributes {stable_mosaic.version = 11 : i64} {
  func.func @residual_attention_block_kernel(%arg0: i32, %arg1: memref<1x32x256xf32, #tpu.memory_space<vmem>>, %arg2: memref<1x256xf32, #tpu.memory_space<vmem>>, %arg3: memref<1x256xf32, #tpu.memory_space<vmem>>, %arg4: memref<256x192xbf16, #tpu.memory_space<vmem>>, %arg5: memref<1x192xf32, #tpu.memory_space<vmem>>, %arg6: memref<2x32x256xbf16, #tpu.memory_space<vmem>>, %arg7: memref<1x256xf32, #tpu.memory_space<vmem>>, %arg8: memref<1x256xf32, #tpu.memory_space<vmem>>, %arg9: memref<1x256xf32, #tpu.memory_space<vmem>>, %arg10: memref<256x256xbf16, #tpu.memory_space<vmem>>, %arg11: memref<1x256xf32, #tpu.memory_space<vmem>>, %arg12: memref<256x256xbf16, #tpu.memory_space<vmem>>, %arg13: memref<1x256xf32, #tpu.memory_space<vmem>>, %arg14: memref<1x32x256xf32, #tpu.memory_space<vmem>>, %arg15: memref<1x32x128xf32, #tpu.memory_space<vmem>>) attributes {dimension_semantics = [#tpu.dimension_semantics<parallel>], iteration_bounds = array<i64: 2>, scalar_prefetch = 0 : i64, scratch_operands = 0 : i64, tpu.core_type = #tpu.core_type<tc>, window_params = [{transform_indices = @transform_0, window_bounds = array<i64: 1, 32, 256>}, {pipeline_mode = #tpu.pipeline_mode<synchronous>, transform_indices = @transform_1, window_bounds = array<i64: 1, 256>}, {pipeline_mode = #tpu.pipeline_mode<synchronous>, transform_indices = @transform_2, window_bounds = array<i64: 1, 256>}, {pipeline_mode = #tpu.pipeline_mode<synchronous>, transform_indices = @transform_3, window_bounds = array<i64: 256, 192>}, {pipeline_mode = #tpu.pipeline_mode<synchronous>, transform_indices = @transform_4, window_bounds = array<i64: 1, 192>}, {pipeline_mode = #tpu.pipeline_mode<synchronous>, transform_indices = @transform_5, window_bounds = array<i64: 2, 32, 256>}, {pipeline_mode = #tpu.pipeline_mode<synchronous>, transform_indices = @transform_6, window_bounds = array<i64: 1, 256>}, {pipeline_mode = #tpu.pipeline_mode<synchronous>, transform_indices = @transform_7, window_bounds = array<i64: 1, 256>}, {pipeline_mode = #tpu.pipeline_mode<synchronous>, transform_indices = @transform_8, window_bounds = array<i64: 1, 256>}, {pipeline_mode = #tpu.pipeline_mode<synchronous>, transform_indices = @transform_9, window_bounds = array<i64: 256, 256>}, {pipeline_mode = #tpu.pipeline_mode<synchronous>, transform_indices = @transform_10, window_bounds = array<i64: 1, 256>}, {pipeline_mode = #tpu.pipeline_mode<synchronous>, transform_indices = @transform_11, window_bounds = array<i64: 256, 256>}, {pipeline_mode = #tpu.pipeline_mode<synchronous>, transform_indices = @transform_12, window_bounds = array<i64: 1, 256>}, {transform_indices = @transform_13, window_bounds = array<i64: 1, 32, 256>}, {transform_indices = @transform_14, window_bounds = array<i64: 1, 32, 128>}]} {
    %c0 = arith.constant 0 : index
    %c0_0 = arith.constant 0 : index
    %c0_1 = arith.constant 0 : index
    %0 = vector.load %arg1[%c0, %c0_0, %c0_1] : memref<1x32x256xf32, #tpu.memory_space<vmem>>, vector<1x32x256xf32>
    %1 = vector.shape_cast %0 : vector<1x32x256xf32> to vector<32x256xf32>
    %c0_2 = arith.constant 0 : index
    %c0_3 = arith.constant 0 : index
    %2 = vector.load %arg2[%c0_2, %c0_3] : memref<1x256xf32, #tpu.memory_space<vmem>>, vector<1x256xf32>
    %c0_4 = arith.constant 0 : index
    %c0_5 = arith.constant 0 : index
    %3 = vector.load %arg3[%c0_4, %c0_5] : memref<1x256xf32, #tpu.memory_space<vmem>>, vector<1x256xf32>
    %cst = arith.constant dense<0.000000e+00> : vector<32xf32>
    %4 = vector.multi_reduction <add>, %1, %cst [1] : vector<32x256xf32> to vector<32xf32>
    %5 = vector.shape_cast %4 : vector<32xf32> to vector<32x1xf32>
    %cst_6 = arith.constant 2.560000e+02 : f32
    %6 = vector.broadcast %cst_6 : f32 to vector<32x1xf32>
    %7 = arith.divf %5, %6 : vector<32x1xf32>
    %8 = vector.broadcast %7 : vector<32x1xf32> to vector<32x256xf32>
    %9 = arith.subf %1, %8 : vector<32x256xf32>
    %10 = arith.mulf %9, %9 : vector<32x256xf32>
    %cst_7 = arith.constant dense<0.000000e+00> : vector<32xf32>
    %11 = vector.multi_reduction <add>, %10, %cst_7 [1] : vector<32x256xf32> to vector<32xf32>
    %12 = vector.shape_cast %11 : vector<32xf32> to vector<32x1xf32>
    %cst_8 = arith.constant 2.560000e+02 : f32
    %13 = vector.broadcast %cst_8 : f32 to vector<32x1xf32>
    %14 = arith.divf %12, %13 : vector<32x1xf32>
    %15 = vector.broadcast %7 : vector<32x1xf32> to vector<32x256xf32>
    %16 = arith.subf %1, %15 : vector<32x256xf32>
    %cst_9 = arith.constant 9.99999974E-6 : f32
    %17 = vector.broadcast %cst_9 : f32 to vector<32x1xf32>
    %18 = arith.addf %14, %17 : vector<32x1xf32>
    %19 = math.rsqrt %18 : vector<32x1xf32>
    %20 = vector.broadcast %19 : vector<32x1xf32> to vector<32x256xf32>
    %21 = arith.mulf %16, %20 : vector<32x256xf32>
    %22 = vector.broadcast %2 : vector<1x256xf32> to vector<32x256xf32>
    %23 = arith.mulf %21, %22 : vector<32x256xf32>
    %24 = vector.broadcast %3 : vector<1x256xf32> to vector<32x256xf32>
    %25 = arith.addf %23, %24 : vector<32x256xf32>
    %26 = arith.truncf %25 : vector<32x256xf32> to vector<32x256xbf16>
    %c0_10 = arith.constant 0 : index
    %c0_11 = arith.constant 0 : index
    %27 = vector.load %arg4[%c0_10, %c0_11] : memref<256x192xbf16, #tpu.memory_space<vmem>>, vector<256x192xbf16>
    %cst_12 = arith.constant dense<0.000000e+00> : vector<32x192xf32>
    %28 = tpu.matmul %26, %27, %cst_12 {dimension_numbers = #tpu.dot_dimension_numbers<[1], [0], [0], [1], [0, 0, 1, 1], [], []>} : vector<32x256xbf16>, vector<256x192xbf16>, vector<32x192xf32> -> vector<32x192xf32>
    %c0_13 = arith.constant 0 : index
    %c0_14 = arith.constant 0 : index
    %29 = vector.load %arg5[%c0_13, %c0_14] : memref<1x192xf32, #tpu.memory_space<vmem>>, vector<1x192xf32>
    %30 = vector.broadcast %29 : vector<1x192xf32> to vector<32x192xf32>
    %31 = arith.addf %28, %30 : vector<32x192xf32>
    %32 = vector.extract_strided_slice %31 {offsets = [0, 64], sizes = [32, 128], strides = [1, 1]} : vector<32x192xf32> to vector<32x128xf32>
    %c0_15 = arith.constant 0 : index
    %c0_16 = arith.constant 0 : index
    %c0_17 = arith.constant 0 : index
    %33 = vector.load %arg15[%c0_15, %c0_16, %c0_17] : memref<1x32x128xf32, #tpu.memory_space<vmem>>, vector<1x32x128xf32>
    %34 = vector.shape_cast %33 : vector<1x32x128xf32> to vector<32x128xf32>
    %35 = vector.shape_cast %32 : vector<32x128xf32> to vector<1x32x128xf32>
    tpu.vector_store %arg15[%c0_15, %c0_16, %c0_17], %35 {strides = array<i32>} : memref<1x32x128xf32, #tpu.memory_space<vmem>>, vector<1x32x128xf32>,
    %36 = vector.extract_strided_slice %31 {offsets = [0, 0], sizes = [32, 64], strides = [1, 1]} : vector<32x192xf32> to vector<32x64xf32>
    %37 = vector.extract_strided_slice %36 {offsets = [0, 0], sizes = [32, 32], strides = [1, 1]} : vector<32x64xf32> to vector<32x32xf32>
    %38 = vector.extract_strided_slice %36 {offsets = [0, 32], sizes = [32, 32], strides = [1, 1]} : vector<32x64xf32> to vector<32x32xf32>
    %39 = vector.shape_cast %37 : vector<32x32xf32> to vector<1x32x32xf32>
    %40 = vector.shape_cast %38 : vector<32x32xf32> to vector<1x32x32xf32>
    %41 = tpu.concatenate %39, %40 in 0 : vector<1x32x32xf32>, vector<1x32x32xf32> -> vector<2x32x32xf32>
    %42 = arith.truncf %41 : vector<2x32x32xf32> to vector<2x32x32xbf16>
    %43 = vector.extract_strided_slice %31 {offsets = [0, 64], sizes = [32, 64], strides = [1, 1]} : vector<32x192xf32> to vector<32x64xf32>
    %44 = vector.extract_strided_slice %43 {offsets = [0, 0], sizes = [32, 32], strides = [1, 1]} : vector<32x64xf32> to vector<32x32xf32>
    %45 = vector.extract_strided_slice %43 {offsets = [0, 32], sizes = [32, 32], strides = [1, 1]} : vector<32x64xf32> to vector<32x32xf32>
    %46 = vector.shape_cast %44 : vector<32x32xf32> to vector<1x32x32xf32>
    %47 = vector.shape_cast %45 : vector<32x32xf32> to vector<1x32x32xf32>
    %48 = tpu.concatenate %46, %47 in 0 : vector<1x32x32xf32>, vector<1x32x32xf32> -> vector<2x32x32xf32>
    %49 = arith.truncf %48 : vector<2x32x32xf32> to vector<2x32x32xbf16>
    %50 = vector.extract_strided_slice %31 {offsets = [0, 128], sizes = [32, 64], strides = [1, 1]} : vector<32x192xf32> to vector<32x64xf32>
    %51 = vector.extract_strided_slice %50 {offsets = [0, 0], sizes = [32, 32], strides = [1, 1]} : vector<32x64xf32> to vector<32x32xf32>
    %52 = vector.extract_strided_slice %50 {offsets = [0, 32], sizes = [32, 32], strides = [1, 1]} : vector<32x64xf32> to vector<32x32xf32>
    %53 = vector.shape_cast %51 : vector<32x32xf32> to vector<1x32x32xf32>
    %54 = vector.shape_cast %52 : vector<32x32xf32> to vector<1x32x32xf32>
    %55 = tpu.concatenate %53, %54 in 0 : vector<1x32x32xf32>, vector<1x32x32xf32> -> vector<2x32x32xf32>
    %56 = arith.truncf %55 : vector<2x32x32xf32> to vector<2x32x32xbf16>
    "tpu.trace_start"() <{level = 10 : i32, message = "hqd,hkd->hqk"}> : () -> ()
    %cst_18 = arith.constant dense<0.000000e+00> : vector<2x32x32xf32>
    %57 = tpu.matmul %42, %49, %cst_18 {dimension_numbers = #tpu.dot_dimension_numbers<[2], [2], [1], [1], [0, 0, 0, 1, 1, 1], [0], [0]>} : vector<2x32x32xbf16>, vector<2x32x32xbf16>, vector<2x32x32xf32> -> vector<2x32x32xf32>
    "tpu.trace_stop"() : () -> ()
    %cst_19 = arith.constant 0.176776692 : f32
    %58 = vector.broadcast %cst_19 : f32 to vector<2x32x32xf32>
    %59 = arith.mulf %57, %58 : vector<2x32x32xf32>
    %60 = tpu.iota {dimensions = array<i32: 0>} : vector<32x32xi32>
    %61 = tpu.iota {dimensions = array<i32: 1>} : vector<32x32xi32>
    %62 = arith.cmpi sge, %60, %61 : vector<32x32xi32>
    %63 = vector.shape_cast %62 : vector<32x32xi1> to vector<1x32x32xi1>
    %cst_20 = arith.constant -1.000000e+30 : f32
    %64 = vector.shape_cast %63 : vector<1x32x32xi1> to vector<1x32x32xi1>
    %65 = vector.broadcast %64 : vector<1x32x32xi1> to vector<2x32x32xi1>
    %66 = vector.broadcast %cst_20 : f32 to vector<2x32x32xf32>
    %67 = arith.select %65, %59, %66 : vector<2x32x32xi1>, vector<2x32x32xf32>
    %cst_21 = arith.constant dense<0xFF800000> : vector<2x32xf32>
    %68 = vector.multi_reduction <maximumf>, %67, %cst_21 [2] : vector<2x32x32xf32> to vector<2x32xf32>
    %69 = vector.shape_cast %68 : vector<2x32xf32> to vector<2x32x1xf32>
    %70 = vector.broadcast %69 : vector<2x32x1xf32> to vector<2x32x32xf32>
    %71 = arith.subf %67, %70 : vector<2x32x32xf32>
    %72 = math.exp %71 : vector<2x32x32xf32>
    %cst_22 = arith.constant dense<0.000000e+00> : vector<2x32xf32>
    %73 = vector.multi_reduction <add>, %72, %cst_22 [2] : vector<2x32x32xf32> to vector<2x32xf32>
    %74 = vector.shape_cast %73 : vector<2x32xf32> to vector<2x32x1xf32>
    %75 = tpu.reciprocal %74 {approx = true} : vector<2x32x1xf32> -> vector<2x32x1xf32>
    %76 = vector.broadcast %75 : vector<2x32x1xf32> to vector<2x32x32xf32>
    %77 = arith.mulf %72, %76 : vector<2x32x32xf32>
    %78 = arith.truncf %77 : vector<2x32x32xf32> to vector<2x32x32xbf16>
    "tpu.trace_start"() <{level = 10 : i32, message = "hqk,hkd->hqd"}> : () -> ()
    %cst_23 = arith.constant dense<0.000000e+00> : vector<2x32x32xf32>
    %79 = tpu.matmul %78, %56, %cst_23 {dimension_numbers = #tpu.dot_dimension_numbers<[2], [1], [1], [2], [0, 0, 0, 1, 1, 2], [0], [0]>} : vector<2x32x32xbf16>, vector<2x32x32xbf16>, vector<2x32x32xf32> -> vector<2x32x32xf32>
    "tpu.trace_stop"() : () -> ()
    %80 = arith.truncf %79 : vector<2x32x32xf32> to vector<2x32x32xbf16>
    %c0_24 = arith.constant 0 : index
    %c0_25 = arith.constant 0 : index
    %c0_26 = arith.constant 0 : index
    %81 = vector.load %arg6[%c0_24, %c0_25, %c0_26] : memref<2x32x256xbf16, #tpu.memory_space<vmem>>, vector<2x32x256xbf16>
    "tpu.trace_start"() <{level = 10 : i32, message = "hqd,hde->hqe"}> : () -> ()
    %cst_27 = arith.constant dense<0.000000e+00> : vector<2x32x256xf32>
    %82 = tpu.matmul %80, %81, %cst_27 {dimension_numbers = #tpu.dot_dimension_numbers<[2], [1], [1], [2], [0, 0, 0, 1, 1, 2], [0], [0]>} : vector<2x32x32xbf16>, vector<2x32x256xbf16>, vector<2x32x256xf32> -> vector<2x32x256xf32>
    "tpu.trace_stop"() : () -> ()
    %cst_28 = arith.constant dense<0.000000e+00> : vector<32x256xf32>
    %83 = vector.multi_reduction <add>, %82, %cst_28 [0] : vector<2x32x256xf32> to vector<32x256xf32>
    %c0_29 = arith.constant 0 : index
    %c0_30 = arith.constant 0 : index
    %84 = vector.load %arg7[%c0_29, %c0_30] : memref<1x256xf32, #tpu.memory_space<vmem>>, vector<1x256xf32>
    %85 = vector.broadcast %84 : vector<1x256xf32> to vector<32x256xf32>
    %86 = arith.addf %83, %85 : vector<32x256xf32>
    %87 = arith.addf %1, %86 : vector<32x256xf32>
    %c0_31 = arith.constant 0 : index
    %c0_32 = arith.constant 0 : index
    %88 = vector.load %arg8[%c0_31, %c0_32] : memref<1x256xf32, #tpu.memory_space<vmem>>, vector<1x256xf32>
    %c0_33 = arith.constant 0 : index
    %c0_34 = arith.constant 0 : index
    %89 = vector.load %arg9[%c0_33, %c0_34] : memref<1x256xf32, #tpu.memory_space<vmem>>, vector<1x256xf32>
    %cst_35 = arith.constant dense<0.000000e+00> : vector<32xf32>
    %90 = vector.multi_reduction <add>, %87, %cst_35 [1] : vector<32x256xf32> to vector<32xf32>
    %91 = vector.shape_cast %90 : vector<32xf32> to vector<32x1xf32>
    %cst_36 = arith.constant 2.560000e+02 : f32
    %92 = vector.broadcast %cst_36 : f32 to vector<32x1xf32>
    %93 = arith.divf %91, %92 : vector<32x1xf32>
    %94 = vector.broadcast %93 : vector<32x1xf32> to vector<32x256xf32>
    %95 = arith.subf %87, %94 : vector<32x256xf32>
    %96 = arith.mulf %95, %95 : vector<32x256xf32>
    %cst_37 = arith.constant dense<0.000000e+00> : vector<32xf32>
    %97 = vector.multi_reduction <add>, %96, %cst_37 [1] : vector<32x256xf32> to vector<32xf32>
    %98 = vector.shape_cast %97 : vector<32xf32> to vector<32x1xf32>
    %cst_38 = arith.constant 2.560000e+02 : f32
    %99 = vector.broadcast %cst_38 : f32 to vector<32x1xf32>
    %100 = arith.divf %98, %99 : vector<32x1xf32>
    %101 = vector.broadcast %93 : vector<32x1xf32> to vector<32x256xf32>
    %102 = arith.subf %87, %101 : vector<32x256xf32>
    %cst_39 = arith.constant 9.99999974E-6 : f32
    %103 = vector.broadcast %cst_39 : f32 to vector<32x1xf32>
    %104 = arith.addf %100, %103 : vector<32x1xf32>
    %105 = math.rsqrt %104 : vector<32x1xf32>
    %106 = vector.broadcast %105 : vector<32x1xf32> to vector<32x256xf32>
    %107 = arith.mulf %102, %106 : vector<32x256xf32>
    %108 = vector.broadcast %88 : vector<1x256xf32> to vector<32x256xf32>
    %109 = arith.mulf %107, %108 : vector<32x256xf32>
    %110 = vector.broadcast %89 : vector<1x256xf32> to vector<32x256xf32>
    %111 = arith.addf %109, %110 : vector<32x256xf32>
    %112 = arith.truncf %111 : vector<32x256xf32> to vector<32x256xbf16>
    %c0_40 = arith.constant 0 : index
    %c0_41 = arith.constant 0 : index
    %113 = vector.load %arg10[%c0_40, %c0_41] : memref<256x256xbf16, #tpu.memory_space<vmem>>, vector<256x256xbf16>
    %cst_42 = arith.constant dense<0.000000e+00> : vector<32x256xf32>
    %114 = tpu.matmul %112, %113, %cst_42 {dimension_numbers = #tpu.dot_dimension_numbers<[1], [0], [0], [1], [0, 0, 1, 1], [], []>} : vector<32x256xbf16>, vector<256x256xbf16>, vector<32x256xf32> -> vector<32x256xf32>
    %c0_43 = arith.constant 0 : index
    %c0_44 = arith.constant 0 : index
    %115 = vector.load %arg11[%c0_43, %c0_44] : memref<1x256xf32, #tpu.memory_space<vmem>>, vector<1x256xf32>
    %116 = vector.broadcast %115 : vector<1x256xf32> to vector<32x256xf32>
    %117 = arith.addf %114, %116 : vector<32x256xf32>
    %cst_45 = arith.constant 1.702000e+00 : f32
    %118 = vector.broadcast %cst_45 : f32 to vector<32x256xf32>
    %119 = arith.mulf %118, %117 : vector<32x256xf32>
    %120 = arith.negf %119 : vector<32x256xf32>
    %121 = math.exp %120 : vector<32x256xf32>
    %cst_46 = arith.constant 1.000000e+00 : f32
    %122 = vector.broadcast %cst_46 : f32 to vector<32x256xf32>
    %123 = arith.addf %122, %121 : vector<32x256xf32>
    %124 = arith.divf %122, %123 : vector<32x256xf32>
    %125 = arith.mulf %117, %124 : vector<32x256xf32>
    %126 = arith.truncf %125 : vector<32x256xf32> to vector<32x256xbf16>
    %c0_47 = arith.constant 0 : index
    %c0_48 = arith.constant 0 : index
    %127 = vector.load %arg12[%c0_47, %c0_48] : memref<256x256xbf16, #tpu.memory_space<vmem>>, vector<256x256xbf16>
    %cst_49 = arith.constant dense<0.000000e+00> : vector<32x256xf32>
    %128 = tpu.matmul %126, %127, %cst_49 {dimension_numbers = #tpu.dot_dimension_numbers<[1], [0], [0], [1], [0, 0, 1, 1], [], []>} : vector<32x256xbf16>, vector<256x256xbf16>, vector<32x256xf32> -> vector<32x256xf32>
    %c0_50 = arith.constant 0 : index
    %c0_51 = arith.constant 0 : index
    %129 = vector.load %arg13[%c0_50, %c0_51] : memref<1x256xf32, #tpu.memory_space<vmem>>, vector<1x256xf32>
    %130 = vector.broadcast %129 : vector<1x256xf32> to vector<32x256xf32>
    %131 = arith.addf %128, %130 : vector<32x256xf32>
    %132 = arith.addf %86, %131 : vector<32x256xf32>
    %cst_52 = arith.constant 1.000000e+00 : f32
    %133 = vector.broadcast %cst_52 : f32 to vector<32x256xf32>
    %134 = arith.mulf %133, %132 : vector<32x256xf32>
    %135 = arith.addf %1, %134 : vector<32x256xf32>
    %c0_53 = arith.constant 0 : index
    %c0_54 = arith.constant 0 : index
    %c0_55 = arith.constant 0 : index
    %136 = vector.load %arg14[%c0_53, %c0_54, %c0_55] : memref<1x32x256xf32, #tpu.memory_space<vmem>>, vector<1x32x256xf32>
    %137 = vector.shape_cast %136 : vector<1x32x256xf32> to vector<32x256xf32>
    %138 = vector.shape_cast %135 : vector<32x256xf32> to vector<1x32x256xf32>
    tpu.vector_store %arg14[%c0_53, %c0_54, %c0_55], %138 {strides = array<i32>} : memref<1x32x256xf32, #tpu.memory_space<vmem>>, vector<1x32x256xf32>,
    return
  }
  func.func @transform_0(%arg0: i32) -> (i32, i32, i32) {
    %c0_i32 = arith.constant 0 : i32
    %c0_i32_0 = arith.constant 0 : i32
    %c0_i32_1 = arith.constant 0 : i32
    return %arg0, %c0_i32, %c0_i32_0 : i32, i32, i32
  }
  func.func @transform_1(%arg0: i32) -> (i32, i32) {
    %c0_i32 = arith.constant 0 : i32
    %c0_i32_0 = arith.constant 0 : i32
    %c0_i32_1 = arith.constant 0 : i32
    return %c0_i32, %c0_i32_0 : i32, i32
  }
  func.func @transform_2(%arg0: i32) -> (i32, i32) {
    %c0_i32 = arith.constant 0 : i32
    %c0_i32_0 = arith.constant 0 : i32
    %c0_i32_1 = arith.constant 0 : i32
    return %c0_i32, %c0_i32_0 : i32, i32
  }
  func.func @transform_3(%arg0: i32) -> (i32, i32) {
    %c0_i32 = arith.constant 0 : i32
    %c0_i32_0 = arith.constant 0 : i32
    %c0_i32_1 = arith.constant 0 : i32
    return %c0_i32, %c0_i32_0 : i32, i32
  }
  func.func @transform_4(%arg0: i32) -> (i32, i32) {
    %c0_i32 = arith.constant 0 : i32
    %c0_i32_0 = arith.constant 0 : i32
    %c0_i32_1 = arith.constant 0 : i32
    return %c0_i32, %c0_i32_0 : i32, i32
  }
  func.func @transform_5(%arg0: i32) -> (i32, i32, i32) {
    %c0_i32 = arith.constant 0 : i32
    %c0_i32_0 = arith.constant 0 : i32
    %c0_i32_1 = arith.constant 0 : i32
    %c0_i32_2 = arith.constant 0 : i32
    return %c0_i32, %c0_i32_0, %c0_i32_1 : i32, i32, i32
  }
  func.func @transform_6(%arg0: i32) -> (i32, i32) {
    %c0_i32 = arith.constant 0 : i32
    %c0_i32_0 = arith.constant 0 : i32
    %c0_i32_1 = arith.constant 0 : i32
    return %c0_i32, %c0_i32_0 : i32, i32
  }
  func.func @transform_7(%arg0: i32) -> (i32, i32) {
    %c0_i32 = arith.constant 0 : i32
    %c0_i32_0 = arith.constant 0 : i32
    %c0_i32_1 = arith.constant 0 : i32
    return %c0_i32, %c0_i32_0 : i32, i32
  }
  func.func @transform_8(%arg0: i32) -> (i32, i32) {
    %c0_i32 = arith.constant 0 : i32
    %c0_i32_0 = arith.constant 0 : i32
    %c0_i32_1 = arith.constant 0 : i32
    return %c0_i32, %c0_i32_0 : i32, i32
  }
  func.func @transform_9(%arg0: i32) -> (i32, i32) {
    %c0_i32 = arith.constant 0 : i32
    %c0_i32_0 = arith.constant 0 : i32
    %c0_i32_1 = arith.constant 0 : i32
    return %c0_i32, %c0_i32_0 : i32, i32
  }
  func.func @transform_10(%arg0: i32) -> (i32, i32) {
    %c0_i32 = arith.constant 0 : i32
    %c0_i32_0 = arith.constant 0 : i32
    %c0_i32_1 = arith.constant 0 : i32
    return %c0_i32, %c0_i32_0 : i32, i32
  }
  func.func @transform_11(%arg0: i32) -> (i32, i32) {
    %c0_i32 = arith.constant 0 : i32
    %c0_i32_0 = arith.constant 0 : i32
    %c0_i32_1 = arith.constant 0 : i32
    return %c0_i32, %c0_i32_0 : i32, i32
  }
  func.func @transform_12(%arg0: i32) -> (i32, i32) {
    %c0_i32 = arith.constant 0 : i32
    %c0_i32_0 = arith.constant 0 : i32
    %c0_i32_1 = arith.constant 0 : i32
    return %c0_i32, %c0_i32_0 : i32, i32
  }
  func.func @transform_13(%arg0: i32) -> (i32, i32, i32) {
    %c0_i32 = arith.constant 0 : i32
    %c0_i32_0 = arith.constant 0 : i32
    %c0_i32_1 = arith.constant 0 : i32
    return %arg0, %c0_i32, %c0_i32_0 : i32, i32, i32
  }
  func.func @transform_14(%arg0: i32) -> (i32, i32, i32) {
    %c0_i32 = arith.constant 0 : i32
    %c0_i32_0 = arith.constant 0 : i32
    %c0_i32_1 = arith.constant 0 : i32
    return %arg0, %c0_i32, %c0_i32_0 : i32, i32, i32
  }
}

</mosaic_0001>

<llo_original>
// kernel: tpu_custom_call.1
$region0: #{tpu_custom_call.1}
  #allocation0 [shape = 'u32[]', space=smem, size = 0x4, offset = 0x4, fixed_abs, tag = 'smem constant byte address 0x4 - core index']
  #allocation1 [shape = 'u32[144,128]{1,0:T(1,128)}', space=vmem, size = 0x12000, scoped, tag = 'internal scratch']
  %s0 = inlined_call_operand.vmem [shape: f32[2,32,256], index: 0, kind: input, shape index: {}]
  %s1 = inlined_call_operand.vmem [shape: f32[1,256], index: 1, kind: input, shape index: {}]
  %s2 = inlined_call_operand.vmem [shape: f32[1,256], index: 2, kind: input, shape index: {}]
  %s3 = inlined_call_operand.vmem [shape: bf16[256,192], index: 3, kind: input, shape index: {}]
  %s4 = inlined_call_operand.vmem [shape: f32[1,192], index: 4, kind: input, shape index: {}]
  %s5 = inlined_call_operand.vmem [shape: bf16[2,32,256], index: 5, kind: input, shape index: {}]
  %s6 = inlined_call_operand.vmem [shape: f32[1,256], index: 6, kind: input, shape index: {}]
  %s7 = inlined_call_operand.vmem [shape: f32[1,256], index: 7, kind: input, shape index: {}]
  %s8 = inlined_call_operand.vmem [shape: f32[1,256], index: 8, kind: input, shape index: {}]
  %s9 = inlined_call_operand.vmem [shape: bf16[256,256], index: 9, kind: input, shape index: {}]
  %s10 = inlined_call_operand.vmem [shape: f32[1,256], index: 10, kind: input, shape index: {}]
  %s11 = inlined_call_operand.hbm [shape: bf16[256,256], index: 11, kind: input, shape index: {}]
  %s12 = inlined_call_operand.vmem [shape: f32[1,256], index: 12, kind: input, shape index: {}]
  %s13 = inlined_call_operand.hbm [shape: f32[2,32,256], index: 13, kind: output, shape index: {0}]
  %s14 = inlined_call_operand.hbm [shape: f32[2,32,128], index: 14, kind: output, shape index: {1}]
  %15 = xla_tuple %s13, %s14
  %s16 = sld [smem:[#allocation0]]
  $region97: #{tpu_custom_call.1} parent=0
    _
  %s18 = ssub.s32 1, %s16
  %s19 = scalar_select 0, %s18, %s16
  $region1: #{tpu_custom_call.1} parent=0
    #allocation2 [shape = 'u8[131072]{0}', space=vmem, size = 0x20000, scoped, tag = 'input window, operand 11, single buffered']
    #allocation3 [shape = 's32[2]{0}', space=sflag, size = 0x8, scoped, tag = 'scoped memory for tpu_custom_call.1']
    #allocation4 [shape = 's32[2]{0}', space=sflag, size = 0x8, scoped, tag = 'scoped memory for tpu_custom_call.1']
    #allocation5 [shape = 'u8[65536]{0}', space=vmem, size = 0x10000, scoped, tag = 'output window, operand 0']
    #allocation6 [shape = 'u8[32768]{0}', space=vmem, size = 0x8000, scoped, tag = 'output window, operand 1']
    #allocation7 [shape = 's32[2]{0}', space=sflag, size = 0x8, scoped, tag = 'scoped memory for tpu_custom_call.1']
    %20 = vsyncpa [#allocation3], 0
    %21 = vsyncpa [#allocation4], 0
    %s22 = scalar_lea.sflag [#allocation4], 1
    %23 = vsyncpa %s22, 0
    %24 = vsyncpa [#allocation7], 0
    %s25 = scalar_lea.sflag [#allocation7], 1
    %26 = vsyncpa %s25, 0
    loop: start=0, step=1, limit=4
    $region2: #{tpu_custom_call.1} parent=1 // loop_pre_header
      _
    $region3: #{tpu_custom_call.1} parent=1 // loop_header
      %s28 = sphi 0, %s32
      %p29 = scmp.ge.s32.totalorder %s28, 4
      %s38 = sphi 0, %s40
      %s41 = sphi 0, %s38
      %s42 = sphi 0, %s41
      %s58 = sphi 0, %s42
      %s62 = sphi 0, %s62
      %s64 = sphi 0, %s62
      %s65 = sphi 0, %s64
      %s79 = sphi 0, %s65
      %s83 = sphi 0, %s83
      %s85 = sphi 0, %s83
      %s86 = sphi 0, %s85
      %s100 = sphi 0, %s86
      %s104 = sphi 0, %s104
      %s106 = sphi 0, %s104
      %s107 = sphi 0, %s106
      %s121 = sphi 0, %s107
      %s125 = sphi 0, %s125
      %s127 = sphi 0, %s125
      %s128 = sphi 0, %s127
      %s142 = sphi 0, %s128
      %s146 = sphi 0, %s146
      %s148 = sphi 0, %s146
      %s149 = sphi 0, %s148
      %s163 = sphi 0, %s149
      %s167 = sphi 0, %s167
      %s169 = sphi 0, %s167
      %s170 = sphi 0, %s169
      %s184 = sphi 0, %s170
      %s188 = sphi 0, %s188
      %s190 = sphi 0, %s188
      %s191 = sphi 0, %s190
      %s205 = sphi 0, %s191
      %s209 = sphi 0, %s209
      %s211 = sphi 0, %s209
      %s212 = sphi 0, %s211
      %s226 = sphi 0, %s212
      %s230 = sphi 0, %s230
      %s232 = sphi 0, %s230
      %s233 = sphi 0, %s232
      %s247 = sphi 0, %s233
      %s251 = sphi 0, %s251
      %s253 = sphi 0, %s251
      %s254 = sphi 0, %s253
      %s268 = sphi 0, %s254
      %s272 = sphi 0, %s272
      %s274 = sphi 0, %s272
      %s275 = sphi 0, %s274
      %s289 = sphi 0, %s275
      %s293 = sphi 0, %s293
      %s295 = sphi 0, %s293
      %s296 = sphi 0, %s295
      %s310 = sphi 0, %s296
      %s316 = sphi 0, %s318
      %s319 = sphi 0, %s316
      %s320 = sphi 0, %s319
      %s336 = sphi 0, %s320
      %s342 = sphi 0, %s344
      %s345 = sphi 0, %s342
      %s346 = sphi 0, %s345
      %s362 = sphi 0, %s346
    $region4: #{tpu_custom_call.1} parent=1 // loop_header_branch
      %31 = sbr.rel (%p29) target = $region8
    $region5: #{tpu_custom_call.1} parent=1 // loop_body
      %s33 = ssub.s32 %s28, 1
      %s34 = ssub.s32 %s28, 2
      %s35 = sadd.s32 %s28, 1
      %s36 = ssub.s32 %s28, %s35
      %p37 = scmp.eq.s32.totalorder %s36, 0
      %s39 = sadd.s32 %s38, 1
      %s40 = scalar_select %p37, %s38, %s39
      %p43 = pneg %p37
      %p44 = scmp.eq.s32.totalorder %s28, 1
      %p45 = por %p43, %p44
      %p46 = scmp.ne.s32.totalorder %s38, %s41
      %p47 = scmp.eq.s32.totalorder %s28, 0
      %p48 = por %p46, %p47
      %p49 = scmp.ne.s32.totalorder %s38, %s41
      %p50 = scmp.eq.s32.totalorder %s33, 1
      %p51 = por %p49, %p50
      %p52 = scmp.ne.s32.totalorder %s41, %s42
      %p53 = scmp.eq.s32.totalorder %s33, 0
      %p54 = por %p52, %p53
      %p55 = scmp.ne.s32.totalorder %s41, %s42
      %p56 = scmp.eq.s32.totalorder %s34, 1
      %p57 = por %p55, %p56
      %p59 = scmp.ne.s32.totalorder %s42, %s58
      %p60 = scmp.eq.s32.totalorder %s34, 0
      %p61 = por %p59, %p60
      %s63 = sadd.s32 %s62, 1
      %p66 = scmp.eq.s32.totalorder %s28, 1
      %p67 = scmp.ne.s32.totalorder %s62, %s64
      %p68 = scmp.eq.s32.totalorder %s28, 0
      %p69 = por %p67, %p68
      %p70 = scmp.ne.s32.totalorder %s62, %s64
      %p71 = scmp.eq.s32.totalorder %s33, 1
      %p72 = por %p70, %p71
      %p73 = scmp.ne.s32.totalorder %s64, %s65
      %p74 = scmp.eq.s32.totalorder %s33, 0
      %p75 = por %p73, %p74
      %p76 = scmp.ne.s32.totalorder %s64, %s65
      %p77 = scmp.eq.s32.totalorder %s34, 1
      %p78 = por %p76, %p77
      %p80 = scmp.ne.s32.totalorder %s65, %s79
      %p81 = scmp.eq.s32.totalorder %s34, 0
      %p82 = por %p80, %p81
      %s84 = sadd.s32 %s83, 1
      %p87 = scmp.eq.s32.totalorder %s28, 1
      %p88 = scmp.ne.s32.totalorder %s83, %s85
      %p89 = scmp.eq.s32.totalorder %s28, 0
      %p90 = por %p88, %p89
      %p91 = scmp.ne.s32.totalorder %s83, %s85
      %p92 = scmp.eq.s32.totalorder %s33, 1
      %p93 = por %p91, %p92
      %p94 = scmp.ne.s32.totalorder %s85, %s86
      %p95 = scmp.eq.s32.totalorder %s33, 0
      %p96 = por %p94, %p95
      %p97 = scmp.ne.s32.totalorder %s85, %s86
      %p98 = scmp.eq.s32.totalorder %s34, 1
      %p99 = por %p97, %p98
      %p101 = scmp.ne.s32.totalorder %s86, %s100
      %p102 = scmp.eq.s32.totalorder %s34, 0
      %p103 = por %p101, %p102
      %s105 = sadd.s32 %s104, 1
      %p108 = scmp.eq.s32.totalorder %s28, 1
      %p109 = scmp.ne.s32.totalorder %s104, %s106
      %p110 = scmp.eq.s32.totalorder %s28, 0
      %p111 = por %p109, %p110
      %p112 = scmp.ne.s32.totalorder %s104, %s106
      %p113 = scmp.eq.s32.totalorder %s33, 1
      %p114 = por %p112, %p113
      %p115 = scmp.ne.s32.totalorder %s106, %s107
      %p116 = scmp.eq.s32.totalorder %s33, 0
      %p117 = por %p115, %p116
      %p118 = scmp.ne.s32.totalorder %s106, %s107
      %p119 = scmp.eq.s32.totalorder %s34, 1
      %p120 = por %p118, %p119
      %p122 = scmp.ne.s32.totalorder %s107, %s121
      %p123 = scmp.eq.s32.totalorder %s34, 0
      %p124 = por %p122, %p123
      %s126 = sadd.s32 %s125, 1
      %p129 = scmp.eq.s32.totalorder %s28, 1
      %p130 = scmp.ne.s32.totalorder %s125, %s127
      %p131 = scmp.eq.s32.totalorder %s28, 0
      %p132 = por %p130, %p131
      %p133 = scmp.ne.s32.totalorder %s125, %s127
      %p134 = scmp.eq.s32.totalorder %s33, 1
      %p135 = por %p133, %p134
      %p136 = scmp.ne.s32.totalorder %s127, %s128
      %p137 = scmp.eq.s32.totalorder %s33, 0
      %p138 = por %p136, %p137
      %p139 = scmp.ne.s32.totalorder %s127, %s128
      %p140 = scmp.eq.s32.totalorder %s34, 1
      %p141 = por %p139, %p140
      %p143 = scmp.ne.s32.totalorder %s128, %s142
      %p144 = scmp.eq.s32.totalorder %s34, 0
      %p145 = por %p143, %p144
      %s147 = sadd.s32 %s146, 1
      %p150 = scmp.eq.s32.totalorder %s28, 1
      %p151 = scmp.ne.s32.totalorder %s146, %s148
      %p152 = scmp.eq.s32.totalorder %s28, 0
      %p153 = por %p151, %p152
      %p154 = scmp.ne.s32.totalorder %s146, %s148
      %p155 = scmp.eq.s32.totalorder %s33, 1
      %p156 = por %p154, %p155
      %p157 = scmp.ne.s32.totalorder %s148, %s149
      %p158 = scmp.eq.s32.totalorder %s33, 0
      %p159 = por %p157, %p158
      %p160 = scmp.ne.s32.totalorder %s148, %s149
      %p161 = scmp.eq.s32.totalorder %s34, 1
      %p162 = por %p160, %p161
      %p164 = scmp.ne.s32.totalorder %s149, %s163
      %p165 = scmp.eq.s32.totalorder %s34, 0
      %p166 = por %p164, %p165
      %s168 = sadd.s32 %s167, 1
      %p171 = scmp.eq.s32.totalorder %s28, 1
      %p172 = scmp.ne.s32.totalorder %s167, %s169
      %p173 = scmp.eq.s32.totalorder %s28, 0
      %p174 = por %p172, %p173
      %p175 = scmp.ne.s32.totalorder %s167, %s169
      %p176 = scmp.eq.s32.totalorder %s33, 1
      %p177 = por %p175, %p176
      %p178 = scmp.ne.s32.totalorder %s169, %s170
      %p179 = scmp.eq.s32.totalorder %s33, 0
      %p180 = por %p178, %p179
      %p181 = scmp.ne.s32.totalorder %s169, %s170
      %p182 = scmp.eq.s32.totalorder %s34, 1
      %p183 = por %p181, %p182
      %p185 = scmp.ne.s32.totalorder %s170, %s184
      %p186 = scmp.eq.s32.totalorder %s34, 0
      %p187 = por %p185, %p186
      %s189 = sadd.s32 %s188, 1
      %p192 = scmp.eq.s32.totalorder %s28, 1
      %p193 = scmp.ne.s32.totalorder %s188, %s190
      %p194 = scmp.eq.s32.totalorder %s28, 0
      %p195 = por %p193, %p194
      %p196 = scmp.ne.s32.totalorder %s188, %s190
      %p197 = scmp.eq.s32.totalorder %s33, 1
      %p198 = por %p196, %p197
      %p199 = scmp.ne.s32.totalorder %s190, %s191
      %p200 = scmp.eq.s32.totalorder %s33, 0
      %p201 = por %p199, %p200
      %p202 = scmp.ne.s32.totalorder %s190, %s191
      %p203 = scmp.eq.s32.totalorder %s34, 1
      %p204 = por %p202, %p203
      %p206 = scmp.ne.s32.totalorder %s191, %s205
      %p207 = scmp.eq.s32.totalorder %s34, 0
      %p208 = por %p206, %p207
      %s210 = sadd.s32 %s209, 1
      %p213 = scmp.eq.s32.totalorder %s28, 1
      %p214 = scmp.ne.s32.totalorder %s209, %s211
      %p215 = scmp.eq.s32.totalorder %s28, 0
      %p216 = por %p214, %p215
      %p217 = scmp.ne.s32.totalorder %s209, %s211
      %p218 = scmp.eq.s32.totalorder %s33, 1
      %p219 = por %p217, %p218
      %p220 = scmp.ne.s32.totalorder %s211, %s212
      %p221 = scmp.eq.s32.totalorder %s33, 0
      %p222 = por %p220, %p221
      %p223 = scmp.ne.s32.totalorder %s211, %s212
      %p224 = scmp.eq.s32.totalorder %s34, 1
      %p225 = por %p223, %p224
      %p227 = scmp.ne.s32.totalorder %s212, %s226
      %p228 = scmp.eq.s32.totalorder %s34, 0
      %p229 = por %p227, %p228
      %s231 = sadd.s32 %s230, 1
      %p234 = scmp.eq.s32.totalorder %s28, 1
      %p235 = scmp.ne.s32.totalorder %s230, %s232
      %p236 = scmp.eq.s32.totalorder %s28, 0
      %p237 = por %p235, %p236
      %p238 = scmp.ne.s32.totalorder %s230, %s232
      %p239 = scmp.eq.s32.totalorder %s33, 1
      %p240 = por %p238, %p239
      %p241 = scmp.ne.s32.totalorder %s232, %s233
      %p242 = scmp.eq.s32.totalorder %s33, 0
      %p243 = por %p241, %p242
      %p244 = scmp.ne.s32.totalorder %s232, %s233
      %p245 = scmp.eq.s32.totalorder %s34, 1
      %p246 = por %p244, %p245
      %p248 = scmp.ne.s32.totalorder %s233, %s247
      %p249 = scmp.eq.s32.totalorder %s34, 0
      %p250 = por %p248, %p249
      %s252 = sadd.s32 %s251, 1
      %p255 = scmp.eq.s32.totalorder %s28, 1
      %p256 = scmp.ne.s32.totalorder %s251, %s253
      %p257 = scmp.eq.s32.totalorder %s28, 0
      %p258 = por %p256, %p257
      %p259 = scmp.ne.s32.totalorder %s251, %s253
      %p260 = scmp.eq.s32.totalorder %s33, 1
      %p261 = por %p259, %p260
      %p262 = scmp.ne.s32.totalorder %s253, %s254
      %p263 = scmp.eq.s32.totalorder %s33, 0
      %p264 = por %p262, %p263
      %p265 = scmp.ne.s32.totalorder %s253, %s254
      %p266 = scmp.eq.s32.totalorder %s34, 1
      %p267 = por %p265, %p266
      %p269 = scmp.ne.s32.totalorder %s254, %s268
      %p270 = scmp.eq.s32.totalorder %s34, 0
      %p271 = por %p269, %p270
      %s273 = sadd.s32 %s272, 1
      %p276 = scmp.eq.s32.totalorder %s28, 1
      %p277 = scmp.ne.s32.totalorder %s272, %s274
      %p278 = scmp.eq.s32.totalorder %s28, 0
      %p279 = por %p277, %p278
      %p280 = scmp.ne.s32.totalorder %s272, %s274
      %p281 = scmp.eq.s32.totalorder %s33, 1
      %p282 = por %p280, %p281
      %p283 = scmp.ne.s32.totalorder %s274, %s275
      %p284 = scmp.eq.s32.totalorder %s33, 0
      %p285 = por %p283, %p284
      %p286 = scmp.ne.s32.totalorder %s274, %s275
      %p287 = scmp.eq.s32.totalorder %s34, 1
      %p288 = por %p286, %p287
      %p290 = scmp.ne.s32.totalorder %s275, %s289
      %p291 = scmp.eq.s32.totalorder %s34, 0
      %p292 = por %p290, %p291
      %s294 = sadd.s32 %s293, 1
      %p297 = scmp.eq.s32.totalorder %s28, 1
      %p298 = scmp.ne.s32.totalorder %s293, %s295
      %p299 = scmp.eq.s32.totalorder %s28, 0
      %p300 = por %p298, %p299
      %p301 = scmp.ne.s32.totalorder %s293, %s295
      %p302 = scmp.eq.s32.totalorder %s33, 1
      %p303 = por %p301, %p302
      %p304 = scmp.ne.s32.totalorder %s295, %s296
      %p305 = scmp.eq.s32.totalorder %s33, 0
      %p306 = por %p304, %p305
      %p307 = scmp.ne.s32.totalorder %s295, %s296
      %p308 = scmp.eq.s32.totalorder %s34, 1
      %p309 = por %p307, %p308
      %p311 = scmp.ne.s32.totalorder %s296, %s310
      %p312 = scmp.eq.s32.totalorder %s34, 0
      %p313 = por %p311, %p312
      %s314 = ssub.s32 %s28, %s35
      %p315 = scmp.eq.s32.totalorder %s314, 0
      %s317 = sadd.s32 %s316, 1
      %s318 = scalar_select %p315, %s316, %s317
      %p321 = pneg %p315
      %p322 = scmp.eq.s32.totalorder %s28, 1
      %p323 = por %p321, %p322
      %p324 = scmp.ne.s32.totalorder %s316, %s319
      %p325 = scmp.eq.s32.totalorder %s28, 0
      %p326 = por %p324, %p325
      %p327 = scmp.ne.s32.totalorder %s316, %s319
      %p328 = scmp.eq.s32.totalorder %s33, 1
      %p329 = por %p327, %p328
      %p330 = scmp.ne.s32.totalorder %s319, %s320
      %p331 = scmp.eq.s32.totalorder %s33, 0
      %p332 = por %p330, %p331
      %p333 = scmp.ne.s32.totalorder %s319, %s320
      %p334 = scmp.eq.s32.totalorder %s34, 1
      %p335 = por %p333, %p334
      %p337 = scmp.ne.s32.totalorder %s320, %s336
      %p338 = scmp.eq.s32.totalorder %s34, 0
      %p339 = por %p337, %p338
      %s340 = ssub.s32 %s28, %s35
      %p341 = scmp.eq.s32.totalorder %s340, 0
      %s343 = sadd.s32 %s342, 1
      %s344 = scalar_select %p341, %s342, %s343
      %p347 = pneg %p341
      %p348 = scmp.eq.s32.totalorder %s28, 1
      %p349 = por %p347, %p348
      %p350 = scmp.ne.s32.totalorder %s342, %s345
      %p351 = scmp.eq.s32.totalorder %s28, 0
      %p352 = por %p350, %p351
      %p353 = scmp.ne.s32.totalorder %s342, %s345
      %p354 = scmp.eq.s32.totalorder %s33, 1
      %p355 = por %p353, %p354
      %p356 = scmp.ne.s32.totalorder %s345, %s346
      %p357 = scmp.eq.s32.totalorder %s33, 0
      %p358 = por %p356, %p357
      %p359 = scmp.ne.s32.totalorder %s345, %s346
      %p360 = scmp.eq.s32.totalorder %s34, 1
      %p361 = por %p359, %p360
      %p363 = scmp.ne.s32.totalorder %s346, %s362
      %p364 = scmp.eq.s32.totalorder %s34, 0
      %p365 = por %p363, %p364
      %p366 = scmp.le.s32.totalorder 1, %s28
      %p367 = scmp.lt.s32.totalorder %s28, 3
      %p368 = pnand %p366, %p367
      %p369 = pneg %p368
      // Predicated region
      $region9: #{tpu_custom_call.1} parent=5 // pred_check
        _
      $region10: #{tpu_custom_call.1} parent=5 // pred_check_branch
        %371 = sbr.rel (%p368) target = $region12
      $region11: #{tpu_custom_call.1} parent=5 // pred_region
        %s372 = ssub.s32 %s28, 1
        // Predicated region
        $region13: #{tpu_custom_call.1} parent=11 // pred_check
          %p373 = pneg %p75
        $region14: #{tpu_custom_call.1} parent=11 // pred_check_branch
          %375 = sbr.rel (%p373) target = $region16
        $region15: #{tpu_custom_call.1} parent=11 // pred_region
          _
        $region16: #{tpu_custom_call.1} parent=11 // pred_fallthru
          _
        // Predicated region
        $region17: #{tpu_custom_call.1} parent=11 // pred_check
          %p376 = pneg %p96
        $region18: #{tpu_custom_call.1} parent=11 // pred_check_branch
          %378 = sbr.rel (%p376) target = $region20
        $region19: #{tpu_custom_call.1} parent=11 // pred_region
          _
        $region20: #{tpu_custom_call.1} parent=11 // pred_fallthru
          _
        // Predicated region
        $region21: #{tpu_custom_call.1} parent=11 // pred_check
          %p379 = pneg %p117
        $region22: #{tpu_custom_call.1} parent=11 // pred_check_branch
          %381 = sbr.rel (%p379) target = $region24
        $region23: #{tpu_custom_call.1} parent=11 // pred_region
          _
        $region24: #{tpu_custom_call.1} parent=11 // pred_fallthru
          _
        // Predicated region
        $region25: #{tpu_custom_call.1} parent=11 // pred_check
          %p382 = pneg %p138
        $region26: #{tpu_custom_call.1} parent=11 // pred_check_branch
          %384 = sbr.rel (%p382) target = $region28
        $region27: #{tpu_custom_call.1} parent=11 // pred_region
          _
        $region28: #{tpu_custom_call.1} parent=11 // pred_fallthru
          _
        // Predicated region
        $region29: #{tpu_custom_call.1} parent=11 // pred_check
          %p385 = pneg %p159
        $region30: #{tpu_custom_call.1} parent=11 // pred_check_branch
          %387 = sbr.rel (%p385) target = $region32
        $region31: #{tpu_custom_call.1} parent=11 // pred_region
          _
        $region32: #{tpu_custom_call.1} parent=11 // pred_fallthru
          _
        // Predicated region
        $region33: #{tpu_custom_call.1} parent=11 // pred_check
          %p388 = pneg %p180
        $region34: #{tpu_custom_call.1} parent=11 // pred_check_branch
          %390 = sbr.rel (%p388) target = $region36
        $region35: #{tpu_custom_call.1} parent=11 // pred_region
          _
        $region36: #{tpu_custom_call.1} parent=11 // pred_fallthru
          _
        // Predicated region
        $region37: #{tpu_custom_call.1} parent=11 // pred_check
          %p391 = pneg %p201
        $region38: #{tpu_custom_call.1} parent=11 // pred_check_branch
          %393 = sbr.rel (%p391) target = $region40
        $region39: #{tpu_custom_call.1} parent=11 // pred_region
          _
        $region40: #{tpu_custom_call.1} parent=11 // pred_fallthru
          _
        // Predicated region
        $region41: #{tpu_custom_call.1} parent=11 // pred_check
          %p394 = pneg %p222
        $region42: #{tpu_custom_call.1} parent=11 // pred_check_branch
          %396 = sbr.rel (%p394) target = $region44
        $region43: #{tpu_custom_call.1} parent=11 // pred_region
          _
        $region44: #{tpu_custom_call.1} parent=11 // pred_fallthru
          _
        // Predicated region
        $region45: #{tpu_custom_call.1} parent=11 // pred_check
          %p397 = pneg %p243
        $region46: #{tpu_custom_call.1} parent=11 // pred_check_branch
          %399 = sbr.rel (%p397) target = $region48
        $region47: #{tpu_custom_call.1} parent=11 // pred_region
          _
        $region48: #{tpu_custom_call.1} parent=11 // pred_fallthru
          _
        // Predicated region
        $region49: #{tpu_custom_call.1} parent=11 // pred_check
          %p400 = pneg %p264
        $region50: #{tpu_custom_call.1} parent=11 // pred_check_branch
          %402 = sbr.rel (%p400) target = $region52
        $region51: #{tpu_custom_call.1} parent=11 // pred_region
          _
        $region52: #{tpu_custom_call.1} parent=11 // pred_fallthru
          _
        // Predicated region
        $region53: #{tpu_custom_call.1} parent=11 // pred_check
          %p403 = pneg %p285
        $region54: #{tpu_custom_call.1} parent=11 // pred_check_branch
          %405 = sbr.rel (%p403) target = $region56
        $region55: #{tpu_custom_call.1} parent=11 // pred_region
          %s407 = ssub.s32 4096, 4096
          %408 = vsyncadd [#allocation3], %s407
          %s409 = sshll.u32 [#allocation2], 4
          %s410 = int_to_ptr.vmem [resolvable:$true] %s409
          %415 = dma.hbm_to_vmem [thread:$0]  %s11, 4096, %s410, [#allocation3], 128, 128, 8
        $region56: #{tpu_custom_call.1} parent=11 // pred_fallthru
          _
        // Predicated region
        $region57: #{tpu_custom_call.1} parent=11 // pred_check
          %p416 = pneg %p306
        $region58: #{tpu_custom_call.1} parent=11 // pred_check_branch
          %418 = sbr.rel (%p416) target = $region60
        $region59: #{tpu_custom_call.1} parent=11 // pred_region
          _
        $region60: #{tpu_custom_call.1} parent=11 // pred_fallthru
          _
      $region12: #{tpu_custom_call.1} parent=5 // pred_fallthru
        _
      %p419 = scmp.lt.s32.totalorder %s28, 2
      // Predicated region
      $region61: #{tpu_custom_call.1} parent=5 // pred_check
        %p420 = pneg %p419
      $region62: #{tpu_custom_call.1} parent=5 // pred_check_branch
        %422 = sbr.rel (%p420) target = $region64
      $region63: #{tpu_custom_call.1} parent=5 // pred_region
        // Predicated region
        $region65: #{tpu_custom_call.1} parent=63 // pred_check
          %p423 = pneg %p48
        $region66: #{tpu_custom_call.1} parent=63 // pred_check_branch
          %425 = sbr.rel (%p423) target = $region68
        $region67: #{tpu_custom_call.1} parent=63 // pred_region
          %p426 = scmp.lt.s32.totalorder %s28, 1
          %s427 = scalar_select %p426, %s28, 1
          %s428 = smul.addr %s427, 8
          %s429 = smul.addr %s428, 8
          %s430 = scalar_lea.vmem %s0, %s429
        $region68: #{tpu_custom_call.1} parent=63 // pred_fallthru
          _
      $region64: #{tpu_custom_call.1} parent=5 // pred_fallthru
        _
      %p431 = scmp.le.s32.totalorder 1, %s28
      %p432 = scmp.lt.s32.totalorder %s28, 3
      %p433 = pnand %p431, %p432
      %p434 = pneg %p433
      // Predicated region
      $region69: #{tpu_custom_call.1} parent=5 // pred_check
        _
      $region70: #{tpu_custom_call.1} parent=5 // pred_check_branch
        %436 = sbr.rel (%p433) target = $region72
      $region71: #{tpu_custom_call.1} parent=5 // pred_region
        %s437 = ssub.s32 %s28, 1
        // Predicated region
        $region73: #{tpu_custom_call.1} parent=71 // pred_check
          %p438 = pneg %p285
        $region74: #{tpu_custom_call.1} parent=71 // pred_check_branch
          %440 = sbr.rel (%p438) target = $region76
        $region75: #{tpu_custom_call.1} parent=71 // pred_region
          %441 = dma.done [#allocation3], 4096
        $region76: #{tpu_custom_call.1} parent=71 // pred_fallthru
          _
        %p442 = scmp.lt.s32.totalorder %s33, 1
        %s443 = scalar_select %p442, %s33, 1
        %s444 = smul.addr %s443, 8
        %s445 = smul.addr %s444, 8
        %s446 = scalar_lea.vmem %s0, %s445
        %p447 = pneg %p54
        %p448 = pneg %p51
        %p449 = pneg %p75
        %p450 = pneg %p72
        %p451 = pneg %p96
        %p452 = pneg %p93
        %p453 = pneg %p117
        %p454 = pneg %p114
        %p455 = pneg %p138
        %p456 = pneg %p135
        %p457 = pneg %p159
        %p458 = pneg %p156
        %p459 = pneg %p180
        %p460 = pneg %p177
        %p461 = pneg %p201
        %p462 = pneg %p198
        %p463 = pneg %p222
        %p464 = pneg %p219
        %p465 = pneg %p243
        %p466 = pneg %p240
        %p467 = pneg %p264
        %p468 = pneg %p261
        %p469 = pneg %p285
        %p470 = pneg %p282
        %p471 = pneg %p306
        %p472 = pneg %p303
        %p473 = pneg %p332
        %p474 = pneg %p329
        %s475 = sand.u32 %s319, 1
        %s476 = scalar_lea.sflag [#allocation4], %s475
        %s477 = sand.u32 %s319, 1
        %s478 = smul.addr %s477, 64
        %s479 = scalar_lea.vmem [#allocation5], %s478
        %p480 = pneg %p358
        %p481 = pneg %p355
        %s482 = sand.u32 %s345, 1
        %s483 = scalar_lea.sflag [#allocation7], %s482
        %s484 = sand.u32 %s345, 1
        %s485 = smul.addr %s484, 32
        %s486 = scalar_lea.vmem [#allocation6], %s485
        %p487 = scmp.lt.s32.totalorder %s33, 1
        %s488 = scalar_select %p487, %s33, 1
        %s489 = smul.addr %s488, 8
        %s490 = smul.addr %s489, 8
        %s491 = scalar_lea.vmem %s0, %s490
        %v493 = vld [vmem:[%s491] sm:$0xff]
        %v494 = vld [vmem:[%s491 + $0x8] sm:$0xff]
        %v495 = vld [vmem:[%s491 + $0x10] sm:$0xff]
        %v496 = vld [vmem:[%s491 + $0x18] sm:$0xff]
        %v497 = vld [vmem:[%s491 + $0x20] sm:$0xff]
        %v498 = vld [vmem:[%s491 + $0x28] sm:$0xff]
        %v499 = vld [vmem:[%s491 + $0x30] sm:$0xff]
        %v500 = vld [vmem:[%s491 + $0x38] sm:$0xff]
        %v501 = vld [vmem:[%s1] sm:$0x3]
        %v502 = vld [vmem:[%s2] sm:$0x3]
        %v503 = vadd.f32 %v493, %v494
        %504 = vadd.xlane.f32.xlu0 %v503
        %v505 = vpop.xlane.xlu0 %504
        %v506 = vadd.f32 %v495, %v496
        %507 = vadd.xlane.f32.xlu0 %v506
        %v508 = vpop.xlane.xlu0 %507
        %v509 = vadd.f32 %v497, %v498
        %510 = vadd.xlane.f32.xlu0 %v509
        %v511 = vpop.xlane.xlu0 %510
        %v512 = vadd.f32 %v499, %v500
        %513 = vadd.xlane.f32.xlu0 %v512
        %v514 = vpop.xlane.xlu0 %513
        %v515 = vrcp.pop 256.0
        %v516 = vmul.f32 %v505, %v515
        %v517 = vmul.f32 %v508, %v515
        %v518 = vmul.f32 %v511, %v515
        %v519 = vmul.f32 %v514, %v515
        %v520 = vsub.f32 %v493, %v516
        %v521 = vsub.f32 %v494, %v516
        %v522 = vsub.f32 %v495, %v517
        %v523 = vsub.f32 %v496, %v517
        %v524 = vsub.f32 %v497, %v518
        %v525 = vsub.f32 %v498, %v518
        %v526 = vsub.f32 %v499, %v519
        %v527 = vsub.f32 %v500, %v519
        %v528 = vmul.f32 %v520, %v520
        %v529 = vmul.f32 %v521, %v521
        %v530 = vmul.f32 %v522, %v522
        %v531 = vmul.f32 %v523, %v523
        %v532 = vmul.f32 %v524, %v524
        %v533 = vmul.f32 %v525, %v525
        %v534 = vmul.f32 %v526, %v526
        %v535 = vmul.f32 %v527, %v527
        %v536 = vadd.f32 %v528, %v529
        %537 = vadd.xlane.f32.xlu0 %v536
        %v538 = vpop.xlane.xlu0 %537
        %v539 = vadd.f32 %v530, %v531
        %540 = vadd.xlane.f32.xlu0 %v539
        %v541 = vpop.xlane.xlu0 %540
        %v542 = vadd.f32 %v532, %v533
        %543 = vadd.xlane.f32.xlu0 %v542
        %v544 = vpop.xlane.xlu0 %543
        %v545 = vadd.f32 %v534, %v535
        %546 = vadd.xlane.f32.xlu0 %v545
        %v547 = vpop.xlane.xlu0 %546
        %v548 = vmul.f32 %v538, %v515
        %v549 = vmul.f32 %v541, %v515
        %v550 = vmul.f32 %v544, %v515
        %v551 = vmul.f32 %v547, %v515
        %v552 = vadd.f32 %v548, 1e-05
        %v553 = vadd.f32 %v549, 1e-05
        %v554 = vadd.f32 %v550, 1e-05
        %v555 = vadd.f32 %v551, 1e-05
        %v556 = vrsqrt.pop %v552
        %v557 = vrsqrt.pop %v553
        %v558 = vrsqrt.pop %v554
        %v559 = vrsqrt.pop %v555
        %v560 = vmul.f32 %v520, %v556
        %v561 = vmul.f32 %v521, %v556
        %v562 = vmul.f32 %v522, %v557
        %v563 = vmul.f32 %v523, %v557
        %v564 = vmul.f32 %v524, %v558
        %v565 = vmul.f32 %v525, %v558
        %v566 = vmul.f32 %v526, %v559
        %v567 = vmul.f32 %v527, %v559
        %v569 = vlaneseq
        %v570 = vshrl.u32 %v569, 7
        %v571 = vsub.s32 0, %v570
        %v572 = vrot.slane %v501, %v571
        %v573 = vlaneseq
        %v574 = vshrl.u32 %v573, 7
        %v575 = vsub.s32 1, %v574
        %v576 = vrot.slane %v501, %v575
        %v579 = vmul.f32 %v560, %v572
        %v580 = vmul.f32 %v561, %v576
        %v581 = vmul.f32 %v562, %v572
        %v582 = vmul.f32 %v563, %v576
        %v583 = vmul.f32 %v564, %v572
        %v584 = vmul.f32 %v565, %v576
        %v585 = vmul.f32 %v566, %v572
        %v586 = vmul.f32 %v567, %v576
        %v588 = vlaneseq
        %v589 = vshrl.u32 %v588, 7
        %v590 = vsub.s32 0, %v589
        %v591 = vrot.slane %v502, %v590
        %v592 = vlaneseq
        %v593 = vshrl.u32 %v592, 7
        %v594 = vsub.s32 1, %v593
        %v595 = vrot.slane %v502, %v594
        %v598 = vadd.f32 %v579, %v591
        %v599 = vadd.f32 %v580, %v595
        %v600 = vadd.f32 %v581, %v591
        %v601 = vadd.f32 %v582, %v595
        %v602 = vadd.f32 %v583, %v591
        %v603 = vadd.f32 %v584, %v595
        %v604 = vadd.f32 %v585, %v591
        %v605 = vadd.f32 %v586, %v595
        %v606 = vpack.c.bf16 %v600, %v598
        %v607 = vpack.c.bf16 %v601, %v599
        %v608 = vpack.c.bf16 %v604, %v602
        %v609 = vpack.c.bf16 %v605, %v603
        %v610 = vld [vmem:[%s3] sm:$0xff]
        %v611 = vld [vmem:[%s3 + $0x8] sm:$0xff]
        %v612 = vld [vmem:[%s3 + $0x10] sm:$0xff]
        %v613 = vld [vmem:[%s3 + $0x18] sm:$0xff]
        %v614 = vld [vmem:[%s3 + $0x20] sm:$0xff]
        %v615 = vld [vmem:[%s3 + $0x28] sm:$0xff]
        %v616 = vld [vmem:[%s3 + $0x30] sm:$0xff]
        %v617 = vld [vmem:[%s3 + $0x38] sm:$0xff]
        %v618 = vld [vmem:[%s3 + $0x40] sm:$0xff]
        %v619 = vld [vmem:[%s3 + $0x48] sm:$0xff]
        %v620 = vld [vmem:[%s3 + $0x50] sm:$0xff]
        %v621 = vld [vmem:[%s3 + $0x58] sm:$0xff]
        %v622 = vld [vmem:[%s3 + $0x60] sm:$0xff]
        %v623 = vld [vmem:[%s3 + $0x68] sm:$0xff]
        %v624 = vld [vmem:[%s3 + $0x70] sm:$0xff]
        %v625 = vld [vmem:[%s3 + $0x78] sm:$0xff]
        %v626 = vld [vmem:[%s3 + $0x80] sm:$0xff]
        %v627 = vld [vmem:[%s3 + $0x88] sm:$0xff]
        %v628 = vld [vmem:[%s3 + $0x90] sm:$0xff]
        %v629 = vld [vmem:[%s3 + $0x98] sm:$0xff]
        %v630 = vld [vmem:[%s3 + $0xa0] sm:$0xff]
        %v631 = vld [vmem:[%s3 + $0xa8] sm:$0xff]
        %v632 = vld [vmem:[%s3 + $0xb0] sm:$0xff]
        %v633 = vld [vmem:[%s3 + $0xb8] sm:$0xff]
        %v634 = vld [vmem:[%s3 + $0xc0] sm:$0xff]
        %v635 = vld [vmem:[%s3 + $0xc8] sm:$0xff]
        %v636 = vld [vmem:[%s3 + $0xd0] sm:$0xff]
        %v637 = vld [vmem:[%s3 + $0xd8] sm:$0xff]
        %v638 = vld [vmem:[%s3 + $0xe0] sm:$0xff]
        %v639 = vld [vmem:[%s3 + $0xe8] sm:$0xff]
        %v640 = vld [vmem:[%s3 + $0xf0] sm:$0xff]
        %v641 = vld [vmem:[%s3 + $0xf8] sm:$0xff]
        %v642 = vld [vmem:[%s4] sm:$0x3]
        %v644 = vlaneseq
        %v645 = vshrl.u32 %v644, 7
        %v646 = vsub.s32 0, %v645
        %v647 = vrot.slane %v642, %v646
        %v648 = vlaneseq
        %v649 = vshrl.u32 %v648, 7
        %v650 = vsub.s32 1, %v649
        %v651 = vrot.slane %v642, %v650
        %v686 = vunpack.c.l.b16 %v610
        %v687 = vunpack.c.h.b16 %v610
        %v688 = vunpack.c.l.b16 %v611
        %v689 = vunpack.c.h.b16 %v611
        %v690 = vunpack.c.l.b16 %v612
        %v691 = vunpack.c.h.b16 %v612
        %v692 = vunpack.c.l.b16 %v613
        %v693 = vunpack.c.h.b16 %v613
        %v694 = vunpack.c.l.b16 %v614
        %v695 = vunpack.c.h.b16 %v614
        %v696 = vunpack.c.l.b16 %v615
        %v697 = vunpack.c.h.b16 %v615
        %v698 = vunpack.c.l.b16 %v616
        %v699 = vunpack.c.h.b16 %v616
        %v700 = vunpack.c.l.b16 %v617
        %v701 = vunpack.c.h.b16 %v617
        %v702 = vunpack.c.l.b16 %v618
        %v703 = vunpack.c.h.b16 %v618
        %v704 = vunpack.c.l.b16 %v619
        %v705 = vunpack.c.h.b16 %v619
        %v706 = vunpack.c.l.b16 %v620
        %v707 = vunpack.c.h.b16 %v620
        %v708 = vunpack.c.l.b16 %v621
        %v709 = vunpack.c.h.b16 %v621
        %v710 = vunpack.c.l.b16 %v622
        %v711 = vunpack.c.h.b16 %v622
        %v712 = vunpack.c.l.b16 %v623
        %v713 = vunpack.c.h.b16 %v623
        %v714 = vunpack.c.l.b16 %v624
        %v715 = vunpack.c.h.b16 %v624
        %v716 = vunpack.c.l.b16 %v625
        %v717 = vunpack.c.h.b16 %v625
        %v718 = vunpack.c.l.b16 %v626
        %v719 = vunpack.c.h.b16 %v626
        %v720 = vunpack.c.l.b16 %v627
        %v721 = vunpack.c.h.b16 %v627
        %v722 = vunpack.c.l.b16 %v628
        %v723 = vunpack.c.h.b16 %v628
        %v724 = vunpack.c.l.b16 %v629
        %v725 = vunpack.c.h.b16 %v629
        %v726 = vunpack.c.l.b16 %v630
        %v727 = vunpack.c.h.b16 %v630
        %v728 = vunpack.c.l.b16 %v631
        %v729 = vunpack.c.h.b16 %v631
        %v730 = vunpack.c.l.b16 %v632
        %v731 = vunpack.c.h.b16 %v632
        %v732 = vunpack.c.l.b16 %v633
        %v733 = vunpack.c.h.b16 %v633
        %v734 = vunpack.c.l.b16 %v634
        %v735 = vunpack.c.h.b16 %v634
        %v736 = vunpack.c.l.b16 %v635
        %v737 = vunpack.c.h.b16 %v635
        %v738 = vunpack.c.l.b16 %v636
        %v739 = vunpack.c.h.b16 %v636
        %v740 = vunpack.c.l.b16 %v637
        %v741 = vunpack.c.h.b16 %v637
        %v742 = vunpack.c.l.b16 %v638
        %v743 = vunpack.c.h.b16 %v638
        %v744 = vunpack.c.l.b16 %v639
        %v745 = vunpack.c.h.b16 %v639
        %v746 = vunpack.c.l.b16 %v640
        %v747 = vunpack.c.h.b16 %v640
        %v748 = vunpack.c.l.b16 %v641
        %v749 = vunpack.c.h.b16 %v641
        %v750 = vpack.c.b16 %v688, %v686
        %v751 = vpack.c.b16 %v689, %v687
        %v752 = vpack.c.b16 %v692, %v690
        %v753 = vpack.c.b16 %v693, %v691
        %v754 = vpack.c.b16 %v696, %v694
        %v755 = vpack.c.b16 %v697, %v695
        %v756 = vpack.c.b16 %v700, %v698
        %v757 = vpack.c.b16 %v701, %v699
        %v758 = vpack.c.b16 %v704, %v702
        %v759 = vpack.c.b16 %v705, %v703
        %v760 = vpack.c.b16 %v708, %v706
        %v761 = vpack.c.b16 %v709, %v707
        %v762 = vpack.c.b16 %v712, %v710
        %v763 = vpack.c.b16 %v713, %v711
        %v764 = vpack.c.b16 %v716, %v714
        %v765 = vpack.c.b16 %v717, %v715
        %v766 = vpack.c.b16 %v720, %v718
        %v767 = vpack.c.b16 %v721, %v719
        %v768 = vpack.c.b16 %v724, %v722
        %v769 = vpack.c.b16 %v725, %v723
        %v770 = vpack.c.b16 %v728, %v726
        %v771 = vpack.c.b16 %v729, %v727
        %v772 = vpack.c.b16 %v732, %v730
        %v773 = vpack.c.b16 %v733, %v731
        %v774 = vpack.c.b16 %v736, %v734
        %v775 = vpack.c.b16 %v737, %v735
        %v776 = vpack.c.b16 %v740, %v738
        %v777 = vpack.c.b16 %v741, %v739
        %v778 = vpack.c.b16 %v744, %v742
        %v779 = vpack.c.b16 %v745, %v743
        %v780 = vpack.c.b16 %v748, %v746
        %v781 = vpack.c.b16 %v749, %v747
        %814 = vmatprep.subr.bf16.mxu0 %v751
        %815 = vmatpush1.bf16.msra.mxu0 %v750
        %816 = vmatprep.subr.bf16.mxu0 %v753
        %817 = vmatpush1.bf16.msra.mxu0 %v752
        %818 = vmatprep.subr.bf16.mxu0 %v755
        %819 = vmatpush1.bf16.msra.mxu0 %v754
        %820 = vmatprep.subr.bf16.mxu0 %v757
        %821 = vmatpush1.bf16.msra.mxu0 %v756
        %822 = vmatprep.subr.bf16.mxu0 %v759
        %823 = vmatpush1.bf16.msra.mxu0 %v758
        %824 = vmatprep.subr.bf16.mxu0 %v761
        %825 = vmatpush1.bf16.msra.mxu0 %v760
        %826 = vmatprep.subr.bf16.mxu0 %v763
        %827 = vmatpush1.bf16.msra.mxu0 %v762
        %828 = vmatprep.subr.bf16.mxu0 %v765
        %829 = vmatpush1.bf16.msra.mxu0 %v764
        %830 = vmatprep.subr.bf16.mxu0 %v767
        %831 = vmatpush1.bf16.msra.mxu0 %v766
        %832 = vmatprep.subr.bf16.mxu0 %v769
        %833 = vmatpush1.bf16.msra.mxu0 %v768
        %834 = vmatprep.subr.bf16.mxu0 %v771
        %835 = vmatpush1.bf16.msra.mxu0 %v770
        %836 = vmatprep.subr.bf16.mxu0 %v773
        %837 = vmatpush1.bf16.msra.mxu0 %v772
        %838 = vmatprep.subr.bf16.mxu0 %v775
        %839 = vmatpush1.bf16.msra.mxu0 %v774
        %840 = vmatprep.subr.bf16.mxu0 %v777
        %841 = vmatpush1.bf16.msra.mxu0 %v776
        %842 = vmatprep.subr.bf16.mxu0 %v779
        %843 = vmatpush1.bf16.msra.mxu0 %v778
        %844 = vmatprep.subr.bf16.mxu0 %v781
        %845 = vmatpush1.bf16.msra.mxu0 %v780
        %846 = vmatprep.mubr.bf16.mxu0 %v607
        %847 = vmatmul.mubr.bf16.gmra.mrb[0].mxu0 %v606
        %v848 = vpop.f32.mrb[0].mxu0
        %v849 = vadd.f32 %v647, %v848
        %v850 = vpop.f32.mrb[0].mxu0
        %v851 = vadd.f32 %v651, %v850
        %v852 = vpop.f32.mrb[0].mxu0
        %v853 = vadd.f32 %v647, %v852
        %v854 = vpop.f32.mrb[0].mxu0
        %v855 = vadd.f32 %v651, %v854
        %856 = vmatprep.mubr.bf16.mxu0 %v609
        %857 = vmatmul.mubr.bf16.gmra.mrb[0].mxu0 %v608
        %v858 = vpop.f32.mrb[0].mxu0
        %v859 = vadd.f32 %v647, %v858
        %v860 = vpop.f32.mrb[0].mxu0
        %v861 = vadd.f32 %v651, %v860
        %v862 = vpop.f32.mrb[0].mxu0
        %v863 = vadd.f32 %v647, %v862
        %v864 = vpop.f32.mrb[0].mxu0
        %v865 = vadd.f32 %v651, %v864
        %866 = vdwg.mxu0
        %875 = vrot.lane.b32.xlu0 %v849, 64
        %v876 = vpop.permute.xlu0 %875
        %877 = vrot.lane.b32.xlu0 %v851, 64
        %v878 = vpop.permute.xlu0 %877
        %879 = vrot.lane.b32.xlu0 %v853, 64
        %v880 = vpop.permute.xlu0 %879
        %881 = vrot.lane.b32.xlu0 %v855, 64
        %v882 = vpop.permute.xlu0 %881
        %883 = vrot.lane.b32.xlu0 %v859, 64
        %v884 = vpop.permute.xlu0 %883
        %885 = vrot.lane.b32.xlu0 %v861, 64
        %v886 = vpop.permute.xlu0 %885
        %887 = vrot.lane.b32.xlu0 %v863, 64
        %v888 = vpop.permute.xlu0 %887
        %889 = vrot.lane.b32.xlu0 %v865, 64
        %v890 = vpop.permute.xlu0 %889
        %vm891 = vcmask 523264
        %v892 = vsel %vm891, %v876, %v878
        %v893 = vsel %vm891, %v880, %v882
        %v894 = vsel %vm891, %v884, %v886
        %v895 = vsel %vm891, %v888, %v890
        %900 = vst [vmem:[%s486] sm:$0xff] %v892
        %901 = vst [vmem:[%s486 + $0x8] sm:$0xff] %v893
        %902 = vst [vmem:[%s486 + $0x10] sm:$0xff] %v894
        %903 = vst [vmem:[%s486 + $0x18] sm:$0xff] %v895
        %904 = vrot.lane.b32.xlu0 %v849, 96
        %v905 = vpop.permute.xlu0 %904
        %906 = vrot.lane.b32.xlu0 %v853, 96
        %v907 = vpop.permute.xlu0 %906
        %908 = vrot.lane.b32.xlu0 %v859, 96
        %v909 = vpop.permute.xlu0 %908
        %910 = vrot.lane.b32.xlu0 %v863, 96
        %v911 = vpop.permute.xlu0 %910
        %v916 = vpack.c.bf16 %v853, %v849
        %v917 = vpack.c.bf16 %v863, %v859
        %v918 = vpack.c.bf16 %v907, %v905
        %v919 = vpack.c.bf16 %v911, %v909
        %920 = vrot.lane.b32.xlu0 %v851, 96
        %v921 = vpop.permute.xlu0 %920
        %922 = vrot.lane.b32.xlu0 %v855, 96
        %v923 = vpop.permute.xlu0 %922
        %924 = vrot.lane.b32.xlu0 %v861, 96
        %v925 = vpop.permute.xlu0 %924
        %926 = vrot.lane.b32.xlu0 %v865, 96
        %v927 = vpop.permute.xlu0 %926
        %v932 = vpack.c.bf16 %v855, %v851
        %v933 = vpack.c.bf16 %v865, %v861
        %v934 = vpack.c.bf16 %v923, %v921
        %v935 = vpack.c.bf16 %v927, %v925
        %938 = vrot.lane.b32.xlu0 %v916, 64
        %v939 = vpop.permute.xlu0 %938
        %940 = vrot.lane.b32.xlu0 %v917, 64
        %v941 = vpop.permute.xlu0 %940
        %vm942 = vcmask 261120
        %v944 = vsel %vm942, %v916, 0
        %v947 = vsel %vm942, %v917, 0
        %v950 = vsel %vm942, %v939, 0
        %v953 = vsel %vm942, %v941, 0
        %955 = vmatprep.subr.bf16.mxu0 0
        %956 = vmatpush1.bf16.xpose.msra.mxu0 %v950
        %957 = vmatprep.subr.bf16.mxu0 0
        %958 = vmatpush1.bf16.xpose.msra.mxu0 %v953
        %959 = vmatprep.subr.bf16.mxu0 0
        %960 = vmatpush1.bf16.xpose.msra.mxu0 0
        %961 = vmatprep.subr.bf16.mxu0 0
        %962 = vmatpush1.bf16.xpose.msra.mxu0 0
        %963 = vmatprep.subr.bf16.mxu0 0
        %964 = vmatpush1.bf16.xpose.msra.mxu0 0
        %965 = vmatprep.subr.bf16.mxu0 0
        %966 = vmatpush1.bf16.xpose.msra.mxu0 0
        %967 = vmatprep.subr.bf16.mxu0 0
        %968 = vmatpush1.bf16.xpose.msra.mxu0 0
        %969 = vmatprep.subr.bf16.mxu0 0
        %970 = vmatpush1.bf16.xpose.msra.mxu0 0
        %971 = vmatprep.subr.bf16.mxu0 0
        %972 = vmatpush1.bf16.xpose.msra.mxu0 0
        %973 = vmatprep.subr.bf16.mxu0 0
        %974 = vmatpush1.bf16.xpose.msra.mxu0 0
        %975 = vmatprep.subr.bf16.mxu0 0
        %976 = vmatpush1.bf16.xpose.msra.mxu0 0
        %977 = vmatprep.subr.bf16.mxu0 0
        %978 = vmatpush1.bf16.xpose.msra.mxu0 0
        %979 = vmatprep.subr.bf16.mxu0 0
        %980 = vmatpush1.bf16.xpose.msra.mxu0 0
        %981 = vmatprep.subr.bf16.mxu0 0
        %982 = vmatpush1.bf16.xpose.msra.mxu0 0
        %983 = vmatprep.subr.bf16.mxu0 0
        %984 = vmatpush1.bf16.xpose.msra.mxu0 0
        %985 = vmatprep.subr.bf16.mxu0 0
        %986 = vmatpush1.bf16.xpose.msra.mxu0 0
        %987 = vmatprep.mubr.bf16.mxu0 0
        %988 = vmatmul.mubr.bf16.gmra.mrb[0].mxu0 %v944
        %v989 = vpop.f32.mrb[0].mxu0
        %v990 = vadd.f32 0.0, %v989
        %v991 = vpop.f32.mrb[0].mxu0
        %v992 = vpop.f32.mrb[0].mxu0
        %v993 = vadd.f32 0.0, %v992
        %v994 = vpop.f32.mrb[0].mxu0
        %995 = vmatprep.mubr.bf16.mxu0 0
        %996 = vmatmul.mubr.bf16.gmra.mrb[0].mxu0 %v947
        %v997 = vpop.f32.mrb[0].mxu0
        %v998 = vadd.f32 0.0, %v997
        %v999 = vpop.f32.mrb[0].mxu0
        %v1000 = vpop.f32.mrb[0].mxu0
        %v1001 = vadd.f32 0.0, %v1000
        %v1002 = vpop.f32.mrb[0].mxu0
        %1003 = vdwg.mxu0
        %1006 = vrot.lane.b32.xlu0 %v918, 64
        %v1007 = vpop.permute.xlu0 %1006
        %1008 = vrot.lane.b32.xlu0 %v919, 64
        %v1009 = vpop.permute.xlu0 %1008
        %v1011 = vsel %vm942, %v918, 0
        %v1014 = vsel %vm942, %v919, 0
        %v1017 = vsel %vm942, %v1007, 0
        %v1020 = vsel %vm942, %v1009, 0
        %1022 = vmatprep.subr.bf16.mxu0 0
        %1023 = vmatpush1.bf16.xpose.msra.mxu0 %v1017
        %1024 = vmatprep.subr.bf16.mxu0 0
        %1025 = vmatpush1.bf16.xpose.msra.mxu0 %v1020
        %1026 = vmatprep.subr.bf16.mxu0 0
        %1027 = vmatpush1.bf16.xpose.msra.mxu0 0
        %1028 = vmatprep.subr.bf16.mxu0 0
        %1029 = vmatpush1.bf16.xpose.msra.mxu0 0
        %1030 = vmatprep.subr.bf16.mxu0 0
        %1031 = vmatpush1.bf16.xpose.msra.mxu0 0
        %1032 = vmatprep.subr.bf16.mxu0 0
        %1033 = vmatpush1.bf16.xpose.msra.mxu0 0
        %1034 = vmatprep.subr.bf16.mxu0 0
        %1035 = vmatpush1.bf16.xpose.msra.mxu0 0
        %1036 = vmatprep.subr.bf16.mxu0 0
        %1037 = vmatpush1.bf16.xpose.msra.mxu0 0
        %1038 = vmatprep.subr.bf16.mxu0 0
        %1039 = vmatpush1.bf16.xpose.msra.mxu0 0
        %1040 = vmatprep.subr.bf16.mxu0 0
        %1041 = vmatpush1.bf16.xpose.msra.mxu0 0
        %1042 = vmatprep.subr.bf16.mxu0 0
        %1043 = vmatpush1.bf16.xpose.msra.mxu0 0
        %1044 = vmatprep.subr.bf16.mxu0 0
        %1045 = vmatpush1.bf16.xpose.msra.mxu0 0
        %1046 = vmatprep.subr.bf16.mxu0 0
        %1047 = vmatpush1.bf16.xpose.msra.mxu0 0
        %1048 = vmatprep.subr.bf16.mxu0 0
        %1049 = vmatpush1.bf16.xpose.msra.mxu0 0
        %1050 = vmatprep.subr.bf16.mxu0 0
        %1051 = vmatpush1.bf16.xpose.msra.mxu0 0
        %1052 = vmatprep.subr.bf16.mxu0 0
        %1053 = vmatpush1.bf16.xpose.msra.mxu0 0
        %1054 = vmatprep.mubr.bf16.mxu0 0
        %1055 = vmatmul.mubr.bf16.gmra.mrb[0].mxu0 %v1011
        %v1056 = vpop.f32.mrb[0].mxu0
        %v1057 = vadd.f32 0.0, %v1056
        %v1058 = vpop.f32.mrb[0].mxu0
        %v1059 = vpop.f32.mrb[0].mxu0
        %v1060 = vadd.f32 0.0, %v1059
        %v1061 = vpop.f32.mrb[0].mxu0
        %1062 = vmatprep.mubr.bf16.mxu0 0
        %1063 = vmatmul.mubr.bf16.gmra.mrb[0].mxu0 %v1014
        %v1064 = vpop.f32.mrb[0].mxu0
        %v1065 = vadd.f32 0.0, %v1064
        %v1066 = vpop.f32.mrb[0].mxu0
        %v1067 = vpop.f32.mrb[0].mxu0
        %v1068 = vadd.f32 0.0, %v1067
        %v1069 = vpop.f32.mrb[0].mxu0
        %1070 = vdwg.mxu0
        %v1071 = vmul.f32 %v990, 0.17677669
        %v1072 = vmul.f32 %v993, 0.17677669
        %v1073 = vmul.f32 %v998, 0.17677669
        %v1074 = vmul.f32 %v1001, 0.17677669
        %v1075 = vmul.f32 %v1057, 0.17677669
        %v1076 = vmul.f32 %v1060, 0.17677669
        %v1077 = vmul.f32 %v1065, 0.17677669
        %v1078 = vmul.f32 %v1068, 0.17677669
        %v1079 = vlaneseq
        %v1080 = vshrl.u32 %v1079, 7
        %v1081 = vadd.s32 %v1080, 8
        %v1082 = vadd.s32 %v1080, 16
        %v1083 = vadd.s32 %v1080, 24
        %v1084 = vlaneseq
        %v1085 = vand.u32 %v1084, 127
        %vm1086 = vcmp.ge.s32.totalorder %v1080, %v1085
        %vm1087 = vcmp.ge.s32.totalorder %v1081, %v1085
        %vm1088 = vcmp.ge.s32.totalorder %v1082, %v1085
        %vm1089 = vcmp.ge.s32.totalorder %v1083, %v1085
        %v1090 = vsel %vm1086, 1, 0
        %v1091 = vsel %vm1087, 1, 0
        %v1092 = vsel %vm1088, 1, 0
        %v1093 = vsel %vm1089, 1, 0
        %vm1094 = vcmp.eq.s32.totalorder %v1090, 1
        %vm1095 = vcmp.eq.s32.totalorder %v1091, 1
        %vm1096 = vcmp.eq.s32.totalorder %v1092, 1
        %vm1097 = vcmp.eq.s32.totalorder %v1093, 1
        %v1098 = vsel %vm1094, %v1071, -1e+30
        %v1099 = vsel %vm1095, %v1072, -1e+30
        %v1100 = vsel %vm1096, %v1073, -1e+30
        %v1101 = vsel %vm1097, %v1074, -1e+30
        %v1102 = vsel %vm1094, %v1075, -1e+30
        %v1103 = vsel %vm1095, %v1076, -1e+30
        %v1104 = vsel %vm1096, %v1077, -1e+30
        %v1105 = vsel %vm1097, %v1078, -1e+30
        %v1106 = vsel %vm942, %v1098, -inf
        %1107 = vmax.xlane.f32.xlu0 %v1106
        %v1108 = vpop.xlane.xlu0 %1107
        %v1109 = vsel %vm942, %v1099, -inf
        %1110 = vmax.xlane.f32.xlu0 %v1109
        %v1111 = vpop.xlane.xlu0 %1110
        %v1112 = vsel %vm942, %v1100, -inf
        %1113 = vmax.xlane.f32.xlu0 %v1112
        %v1114 = vpop.xlane.xlu0 %1113
        %v1115 = vsel %vm942, %v1101, -inf
        %1116 = vmax.xlane.f32.xlu0 %v1115
        %v1117 = vpop.xlane.xlu0 %1116
        %v1118 = vsel %vm942, %v1102, -inf
        %1119 = vmax.xlane.f32.xlu0 %v1118
        %v1120 = vpop.xlane.xlu0 %1119
        %v1121 = vsel %vm942, %v1103, -inf
        %1122 = vmax.xlane.f32.xlu0 %v1121
        %v1123 = vpop.xlane.xlu0 %1122
        %v1124 = vsel %vm942, %v1104, -inf
        %1125 = vmax.xlane.f32.xlu0 %v1124
        %v1126 = vpop.xlane.xlu0 %1125
        %v1127 = vsel %vm942, %v1105, -inf
        %1128 = vmax.xlane.f32.xlu0 %v1127
        %v1129 = vpop.xlane.xlu0 %1128
        %v1130 = vsub.f32 %v1098, %v1108
        %v1131 = vsub.f32 %v1099, %v1111
        %v1132 = vsub.f32 %v1100, %v1114
        %v1133 = vsub.f32 %v1101, %v1117
        %v1134 = vsub.f32 %v1102, %v1120
        %v1135 = vsub.f32 %v1103, %v1123
        %v1136 = vsub.f32 %v1104, %v1126
        %v1137 = vsub.f32 %v1105, %v1129
        %v1138 = vmul.f32 %v1130, 1.442695
        %v1139 = vpow.pop %v1138
        %v1140 = vmul.f32 %v1131, 1.442695
        %v1141 = vpow.pop %v1140
        %v1142 = vmul.f32 %v1132, 1.442695
        %v1143 = vpow.pop %v1142
        %v1144 = vmul.f32 %v1133, 1.442695
        %v1145 = vpow.pop %v1144
        %v1146 = vmul.f32 %v1134, 1.442695
        %v1147 = vpow.pop %v1146
        %v1148 = vmul.f32 %v1135, 1.442695
        %v1149 = vpow.pop %v1148
        %v1150 = vmul.f32 %v1136, 1.442695
        %v1151 = vpow.pop %v1150
        %v1152 = vmul.f32 %v1137, 1.442695
        %v1153 = vpow.pop %v1152
        %v1154 = vsel %vm942, %v1139, 0.0
        %1155 = vadd.xlane.f32.xlu0 %v1154
        %v1156 = vpop.xlane.xlu0 %1155
        %v1157 = vsel %vm942, %v1141, 0.0
        %1158 = vadd.xlane.f32.xlu0 %v1157
        %v1159 = vpop.xlane.xlu0 %1158
        %v1160 = vsel %vm942, %v1143, 0.0
        %1161 = vadd.xlane.f32.xlu0 %v1160
        %v1162 = vpop.xlane.xlu0 %1161
        %v1163 = vsel %vm942, %v1145, 0.0
        %1164 = vadd.xlane.f32.xlu0 %v1163
        %v1165 = vpop.xlane.xlu0 %1164
        %v1166 = vsel %vm942, %v1147, 0.0
        %1167 = vadd.xlane.f32.xlu0 %v1166
        %v1168 = vpop.xlane.xlu0 %1167
        %v1169 = vsel %vm942, %v1149, 0.0
        %1170 = vadd.xlane.f32.xlu0 %v1169
        %v1171 = vpop.xlane.xlu0 %1170
        %v1172 = vsel %vm942, %v1151, 0.0
        %1173 = vadd.xlane.f32.xlu0 %v1172
        %v1174 = vpop.xlane.xlu0 %1173
        %v1175 = vsel %vm942, %v1153, 0.0
        %1176 = vadd.xlane.f32.xlu0 %v1175
        %v1177 = vpop.xlane.xlu0 %1176
        %v1178 = vrcp.pop %v1156
        %v1179 = vrcp.pop %v1159
        %v1180 = vrcp.pop %v1162
        %v1181 = vrcp.pop %v1165
        %v1182 = vrcp.pop %v1168
        %v1183 = vrcp.pop %v1171
        %v1184 = vrcp.pop %v1174
        %v1185 = vrcp.pop %v1177
        %v1186 = vmul.f32 %v1139, %v1178
        %v1187 = vmul.f32 %v1141, %v1179
        %v1188 = vmul.f32 %v1143, %v1180
        %v1189 = vmul.f32 %v1145, %v1181
        %v1190 = vmul.f32 %v1147, %v1182
        %v1191 = vmul.f32 %v1149, %v1183
        %v1192 = vmul.f32 %v1151, %v1184
        %v1193 = vmul.f32 %v1153, %v1185
        %v1194 = vpack.c.bf16 %v1187, %v1186
        %v1195 = vpack.c.bf16 %v1189, %v1188
        %v1196 = vpack.c.bf16 %v1191, %v1190
        %v1197 = vpack.c.bf16 %v1193, %v1192
        %v1199 = vsel %vm942, %v1194, 0
        %v1202 = vsel %vm942, %v1195, 0
        %1204 = vmatprep.subr.bf16.mxu0 0
        %1205 = vmatpush1.bf16.msra.mxu0 %v932
        %1206 = vmatprep.subr.bf16.mxu0 0
        %1207 = vmatpush1.bf16.msra.mxu0 %v933
        %1208 = vmatprep.subr.bf16.mxu0 0
        %1209 = vmatpush1.bf16.msra.mxu0 0
        %1210 = vmatprep.subr.bf16.mxu0 0
        %1211 = vmatpush1.bf16.msra.mxu0 0
        %1212 = vmatprep.subr.bf16.mxu0 0
        %1213 = vmatpush1.bf16.msra.mxu0 0
        %1214 = vmatprep.subr.bf16.mxu0 0
        %1215 = vmatpush1.bf16.msra.mxu0 0
        %1216 = vmatprep.subr.bf16.mxu0 0
        %1217 = vmatpush1.bf16.msra.mxu0 0
        %1218 = vmatprep.subr.bf16.mxu0 0
        %1219 = vmatpush1.bf16.msra.mxu0 0
        %1220 = vmatprep.subr.bf16.mxu0 0
        %1221 = vmatpush1.bf16.msra.mxu0 0
        %1222 = vmatprep.subr.bf16.mxu0 0
        %1223 = vmatpush1.bf16.msra.mxu0 0
        %1224 = vmatprep.subr.bf16.mxu0 0
        %1225 = vmatpush1.bf16.msra.mxu0 0
        %1226 = vmatprep.subr.bf16.mxu0 0
        %1227 = vmatpush1.bf16.msra.mxu0 0
        %1228 = vmatprep.subr.bf16.mxu0 0
        %1229 = vmatpush1.bf16.msra.mxu0 0
        %1230 = vmatprep.subr.bf16.mxu0 0
        %1231 = vmatpush1.bf16.msra.mxu0 0
        %1232 = vmatprep.subr.bf16.mxu0 0
        %1233 = vmatpush1.bf16.msra.mxu0 0
        %1234 = vmatprep.subr.bf16.mxu0 0
        %1235 = vmatpush1.bf16.msra.mxu0 0
        %1236 = vmatprep.mubr.bf16.mxu0 0
        %1237 = vmatmul.mubr.bf16.gmra.mrb[0].mxu0 %v1199
        %v1238 = vpop.f32.mrb[0].mxu0
        %v1239 = vadd.f32 0.0, %v1238
        %v1240 = vpop.f32.mrb[0].mxu0
        %v1241 = vpop.f32.mrb[0].mxu0
        %v1242 = vadd.f32 0.0, %v1241
        %v1243 = vpop.f32.mrb[0].mxu0
        %1244 = vmatprep.mubr.bf16.mxu0 0
        %1245 = vmatmul.mubr.bf16.gmra.mrb[0].mxu0 %v1202
        %v1246 = vpop.f32.mrb[0].mxu0
        %v1247 = vadd.f32 0.0, %v1246
        %v1248 = vpop.f32.mrb[0].mxu0
        %v1249 = vpop.f32.mrb[0].mxu0
        %v1250 = vadd.f32 0.0, %v1249
        %v1251 = vpop.f32.mrb[0].mxu0
        %1252 = vdwg.mxu0
        %v1254 = vsel %vm942, %v1196, 0
        %v1257 = vsel %vm942, %v1197, 0
        %1259 = vmatprep.subr.bf16.mxu0 0
        %1260 = vmatpush1.bf16.msra.mxu0 %v934
        %1261 = vmatprep.subr.bf16.mxu0 0
        %1262 = vmatpush1.bf16.msra.mxu0 %v935
        %1263 = vmatprep.subr.bf16.mxu0 0
        %1264 = vmatpush1.bf16.msra.mxu0 0
        %1265 = vmatprep.subr.bf16.mxu0 0
        %1266 = vmatpush1.bf16.msra.mxu0 0
        %1267 = vmatprep.subr.bf16.mxu0 0
        %1268 = vmatpush1.bf16.msra.mxu0 0
        %1269 = vmatprep.subr.bf16.mxu0 0
        %1270 = vmatpush1.bf16.msra.mxu0 0
        %1271 = vmatprep.subr.bf16.mxu0 0
        %1272 = vmatpush1.bf16.msra.mxu0 0
        %1273 = vmatprep.subr.bf16.mxu0 0
        %1274 = vmatpush1.bf16.msra.mxu0 0
        %1275 = vmatprep.subr.bf16.mxu0 0
        %1276 = vmatpush1.bf16.msra.mxu0 0
        %1277 = vmatprep.subr.bf16.mxu0 0
        %1278 = vmatpush1.bf16.msra.mxu0 0
        %1279 = vmatprep.subr.bf16.mxu0 0
        %1280 = vmatpush1.bf16.msra.mxu0 0
        %1281 = vmatprep.subr.bf16.mxu0 0
        %1282 = vmatpush1.bf16.msra.mxu0 0
        %1283 = vmatprep.subr.bf16.mxu0 0
        %1284 = vmatpush1.bf16.msra.mxu0 0
        %1285 = vmatprep.subr.bf16.mxu0 0
        %1286 = vmatpush1.bf16.msra.mxu0 0
        %1287 = vmatprep.subr.bf16.mxu0 0
        %1288 = vmatpush1.bf16.msra.mxu0 0
        %1289 = vmatprep.subr.bf16.mxu0 0
        %1290 = vmatpush1.bf16.msra.mxu0 0
        %1291 = vmatprep.mubr.bf16.mxu0 0
        %1292 = vmatmul.mubr.bf16.gmra.mrb[0].mxu0 %v1254
        %v1293 = vpop.f32.mrb[0].mxu0
        %v1294 = vadd.f32 0.0, %v1293
        %v1295 = vpop.f32.mrb[0].mxu0
        %v1296 = vpop.f32.mrb[0].mxu0
        %v1297 = vadd.f32 0.0, %v1296
        %v1298 = vpop.f32.mrb[0].mxu0
        %1299 = vmatprep.mubr.bf16.mxu0 0
        %1300 = vmatmul.mubr.bf16.gmra.mrb[0].mxu0 %v1257
        %v1301 = vpop.f32.mrb[0].mxu0
        %v1302 = vadd.f32 0.0, %v1301
        %v1303 = vpop.f32.mrb[0].mxu0
        %v1304 = vpop.f32.mrb[0].mxu0
        %v1305 = vadd.f32 0.0, %v1304
        %v1306 = vpop.f32.mrb[0].mxu0
        %1307 = vdwg.mxu0
        %v1308 = vpack.c.bf16 %v1242, %v1239
        %v1309 = vpack.c.bf16 %v1250, %v1247
        %v1310 = vpack.c.bf16 %v1297, %v1294
        %v1311 = vpack.c.bf16 %v1305, %v1302
        %v1312 = vld [vmem:[%s5] sm:$0xff]
        %v1313 = vld [vmem:[%s5 + $0x8] sm:$0xff]
        %v1314 = vld [vmem:[%s5 + $0x10] sm:$0xff]
        %v1315 = vld [vmem:[%s5 + $0x18] sm:$0xff]
        %v1316 = vld [vmem:[%s5 + $0x20] sm:$0xff]
        %v1317 = vld [vmem:[%s5 + $0x28] sm:$0xff]
        %v1318 = vld [vmem:[%s5 + $0x30] sm:$0xff]
        %v1319 = vld [vmem:[%s5 + $0x38] sm:$0xff]
        %v1324 = vunpack.c.l.b16 %v1312
        %v1325 = vunpack.c.h.b16 %v1312
        %v1326 = vunpack.c.l.b16 %v1313
        %v1327 = vunpack.c.h.b16 %v1313
        %v1328 = vunpack.c.l.b16 %v1314
        %v1329 = vunpack.c.h.b16 %v1314
        %v1330 = vunpack.c.l.b16 %v1315
        %v1331 = vunpack.c.h.b16 %v1315
        %v1332 = vpack.c.b16 %v1326, %v1324
        %v1333 = vpack.c.b16 %v1327, %v1325
        %v1334 = vpack.c.b16 %v1330, %v1328
        %v1335 = vpack.c.b16 %v1331, %v1329
        %v1341 = vsel %vm942, %v1308, 0
        %v1344 = vsel %vm942, %v1309, 0
        %1346 = vmatprep.subr.bf16.mxu0 %v1333
        %1347 = vmatpush1.bf16.msra.mxu0 %v1332
        %1348 = vmatprep.subr.bf16.mxu0 %v1335
        %1349 = vmatpush1.bf16.msra.mxu0 %v1334
        %1350 = vmatprep.subr.bf16.mxu0 0
        %1351 = vmatpush1.bf16.msra.mxu0 0
        %1352 = vmatprep.subr.bf16.mxu0 0
        %1353 = vmatpush1.bf16.msra.mxu0 0
        %1354 = vmatprep.subr.bf16.mxu0 0
        %1355 = vmatpush1.bf16.msra.mxu0 0
        %1356 = vmatprep.subr.bf16.mxu0 0
        %1357 = vmatpush1.bf16.msra.mxu0 0
        %1358 = vmatprep.subr.bf16.mxu0 0
        %1359 = vmatpush1.bf16.msra.mxu0 0
        %1360 = vmatprep.subr.bf16.mxu0 0
        %1361 = vmatpush1.bf16.msra.mxu0 0
        %1362 = vmatprep.subr.bf16.mxu0 0
        %1363 = vmatpush1.bf16.msra.mxu0 0
        %1364 = vmatprep.subr.bf16.mxu0 0
        %1365 = vmatpush1.bf16.msra.mxu0 0
        %1366 = vmatprep.subr.bf16.mxu0 0
        %1367 = vmatpush1.bf16.msra.mxu0 0
        %1368 = vmatprep.subr.bf16.mxu0 0
        %1369 = vmatpush1.bf16.msra.mxu0 0
        %1370 = vmatprep.subr.bf16.mxu0 0
        %1371 = vmatpush1.bf16.msra.mxu0 0
        %1372 = vmatprep.subr.bf16.mxu0 0
        %1373 = vmatpush1.bf16.msra.mxu0 0
        %1374 = vmatprep.subr.bf16.mxu0 0
        %1375 = vmatpush1.bf16.msra.mxu0 0
        %1376 = vmatprep.subr.bf16.mxu0 0
        %1377 = vmatpush1.bf16.msra.mxu0 0
        %1378 = vmatprep.mubr.bf16.mxu0 0
        %1379 = vmatmul.mubr.bf16.gmra.mrb[0].mxu0 %v1341
        %v1380 = vpop.f32.mrb[0].mxu0
        %v1381 = vadd.f32 0.0, %v1380
        %v1382 = vpop.f32.mrb[0].mxu0
        %v1383 = vadd.f32 0.0, %v1382
        %v1384 = vpop.f32.mrb[0].mxu0
        %v1385 = vadd.f32 0.0, %v1384
        %v1386 = vpop.f32.mrb[0].mxu0
        %v1387 = vadd.f32 0.0, %v1386
        %1388 = vmatprep.mubr.bf16.mxu0 0
        %1389 = vmatmul.mubr.bf16.gmra.mrb[0].mxu0 %v1344
        %v1390 = vpop.f32.mrb[0].mxu0
        %v1391 = vadd.f32 0.0, %v1390
        %v1392 = vpop.f32.mrb[0].mxu0
        %v1393 = vadd.f32 0.0, %v1392
        %v1394 = vpop.f32.mrb[0].mxu0
        %v1395 = vadd.f32 0.0, %v1394
        %v1396 = vpop.f32.mrb[0].mxu0
        %v1397 = vadd.f32 0.0, %v1396
        %1398 = vdwg.mxu0
        %v1403 = vunpack.c.l.b16 %v1316
        %v1404 = vunpack.c.h.b16 %v1316
        %v1405 = vunpack.c.l.b16 %v1317
        %v1406 = vunpack.c.h.b16 %v1317
        %v1407 = vunpack.c.l.b16 %v1318
        %v1408 = vunpack.c.h.b16 %v1318
        %v1409 = vunpack.c.l.b16 %v1319
        %v1410 = vunpack.c.h.b16 %v1319
        %v1411 = vpack.c.b16 %v1405, %v1403
        %v1412 = vpack.c.b16 %v1406, %v1404
        %v1413 = vpack.c.b16 %v1409, %v1407
        %v1414 = vpack.c.b16 %v1410, %v1408
        %v1420 = vsel %vm942, %v1310, 0
        %v1423 = vsel %vm942, %v1311, 0
        %1425 = vmatprep.subr.bf16.mxu0 %v1412
        %1426 = vmatpush1.bf16.msra.mxu0 %v1411
        %1427 = vmatprep.subr.bf16.mxu0 %v1414
        %1428 = vmatpush1.bf16.msra.mxu0 %v1413
        %1429 = vmatprep.subr.bf16.mxu0 0
        %1430 = vmatpush1.bf16.msra.mxu0 0
        %1431 = vmatprep.subr.bf16.mxu0 0
        %1432 = vmatpush1.bf16.msra.mxu0 0
        %1433 = vmatprep.subr.bf16.mxu0 0
        %1434 = vmatpush1.bf16.msra.mxu0 0
        %1435 = vmatprep.subr.bf16.mxu0 0
        %1436 = vmatpush1.bf16.msra.mxu0 0
        %1437 = vmatprep.subr.bf16.mxu0 0
        %1438 = vmatpush1.bf16.msra.mxu0 0
        %1439 = vmatprep.subr.bf16.mxu0 0
        %1440 = vmatpush1.bf16.msra.mxu0 0
        %1441 = vmatprep.subr.bf16.mxu0 0
        %1442 = vmatpush1.bf16.msra.mxu0 0
        %1443 = vmatprep.subr.bf16.mxu0 0
        %1444 = vmatpush1.bf16.msra.mxu0 0
        %1445 = vmatprep.subr.bf16.mxu0 0
        %1446 = vmatpush1.bf16.msra.mxu0 0
        %1447 = vmatprep.subr.bf16.mxu0 0
        %1448 = vmatpush1.bf16.msra.mxu0 0
        %1449 = vmatprep.subr.bf16.mxu0 0
        %1450 = vmatpush1.bf16.msra.mxu0 0
        %1451 = vmatprep.subr.bf16.mxu0 0
        %1452 = vmatpush1.bf16.msra.mxu0 0
        %1453 = vmatprep.subr.bf16.mxu0 0
        %1454 = vmatpush1.bf16.msra.mxu0 0
        %1455 = vmatprep.subr.bf16.mxu0 0
        %1456 = vmatpush1.bf16.msra.mxu0 0
        %1457 = vmatprep.mubr.bf16.mxu0 0
        %1458 = vmatmul.mubr.bf16.gmra.mrb[0].mxu0 %v1420
        %v1459 = vpop.f32.mrb[0].mxu0
        %v1460 = vadd.f32 0.0, %v1459
        %v1461 = vpop.f32.mrb[0].mxu0
        %v1462 = vadd.f32 0.0, %v1461
        %v1463 = vpop.f32.mrb[0].mxu0
        %v1464 = vadd.f32 0.0, %v1463
        %v1465 = vpop.f32.mrb[0].mxu0
        %v1466 = vadd.f32 0.0, %v1465
        %1467 = vmatprep.mubr.bf16.mxu0 0
        %1468 = vmatmul.mubr.bf16.gmra.mrb[0].mxu0 %v1423
        %v1469 = vpop.f32.mrb[0].mxu0
        %v1470 = vadd.f32 0.0, %v1469
        %v1471 = vpop.f32.mrb[0].mxu0
        %v1472 = vadd.f32 0.0, %v1471
        %v1473 = vpop.f32.mrb[0].mxu0
        %v1474 = vadd.f32 0.0, %v1473
        %v1475 = vpop.f32.mrb[0].mxu0
        %v1476 = vadd.f32 0.0, %v1475
        %1477 = vdwg.mxu0
        %v1478 = vadd.f32 %v1381, %v1460
        %v1479 = vadd.f32 %v1383, %v1462
        %v1480 = vadd.f32 %v1385, %v1464
        %v1481 = vadd.f32 %v1387, %v1466
        %v1482 = vadd.f32 %v1391, %v1470
        %v1483 = vadd.f32 %v1393, %v1472
        %v1484 = vadd.f32 %v1395, %v1474
        %v1485 = vadd.f32 %v1397, %v1476
        %v1486 = vld [vmem:[%s6] sm:$0x3]
        %v1488 = vlaneseq
        %v1489 = vshrl.u32 %v1488, 7
        %v1490 = vsub.s32 0, %v1489
        %v1491 = vrot.slane %v1486, %v1490
        %v1492 = vlaneseq
        %v1493 = vshrl.u32 %v1492, 7
        %v1494 = vsub.s32 1, %v1493
        %v1495 = vrot.slane %v1486, %v1494
        %v1498 = vadd.f32 %v1478, %v1491
        %v1499 = vadd.f32 %v1479, %v1495
        %v1500 = vadd.f32 %v1480, %v1491
        %v1501 = vadd.f32 %v1481, %v1495
        %v1502 = vadd.f32 %v1482, %v1491
        %v1503 = vadd.f32 %v1483, %v1495
        %v1504 = vadd.f32 %v1484, %v1491
        %v1505 = vadd.f32 %v1485, %v1495
        %v1506 = vadd.f32 %v493, %v1498
        %v1507 = vadd.f32 %v494, %v1499
        %v1508 = vadd.f32 %v495, %v1500
        %v1509 = vadd.f32 %v496, %v1501
        %v1510 = vadd.f32 %v497, %v1502
        %v1511 = vadd.f32 %v498, %v1503
        %v1512 = vadd.f32 %v499, %v1504
        %v1513 = vadd.f32 %v500, %v1505
        %v1514 = vld [vmem:[%s7] sm:$0x3]
        %v1515 = vld [vmem:[%s8] sm:$0x3]
        %v1516 = vadd.f32 %v1506, %v1507
        %1517 = vadd.xlane.f32.xlu0 %v1516
        %v1518 = vpop.xlane.xlu0 %1517
        %v1519 = vadd.f32 %v1508, %v1509
        %1520 = vadd.xlane.f32.xlu0 %v1519
        %v1521 = vpop.xlane.xlu0 %1520
        %v1522 = vadd.f32 %v1510, %v1511
        %1523 = vadd.xlane.f32.xlu0 %v1522
        %v1524 = vpop.xlane.xlu0 %1523
        %v1525 = vadd.f32 %v1512, %v1513
        %1526 = vadd.xlane.f32.xlu0 %v1525
        %v1527 = vpop.xlane.xlu0 %1526
        %v1528 = vmul.f32 %v1518, %v515
        %v1529 = vmul.f32 %v1521, %v515
        %v1530 = vmul.f32 %v1524, %v515
        %v1531 = vmul.f32 %v1527, %v515
        %v1532 = vsub.f32 %v1506, %v1528
        %v1533 = vsub.f32 %v1507, %v1528
        %v1534 = vsub.f32 %v1508, %v1529
        %v1535 = vsub.f32 %v1509, %v1529
        %v1536 = vsub.f32 %v1510, %v1530
        %v1537 = vsub.f32 %v1511, %v1530
        %v1538 = vsub.f32 %v1512, %v1531
        %v1539 = vsub.f32 %v1513, %v1531
        %v1540 = vmul.f32 %v1532, %v1532
        %v1541 = vmul.f32 %v1533, %v1533
        %v1542 = vmul.f32 %v1534, %v1534
        %v1543 = vmul.f32 %v1535, %v1535
        %v1544 = vmul.f32 %v1536, %v1536
        %v1545 = vmul.f32 %v1537, %v1537
        %v1546 = vmul.f32 %v1538, %v1538
        %v1547 = vmul.f32 %v1539, %v1539
        %v1548 = vadd.f32 %v1540, %v1541
        %1549 = vadd.xlane.f32.xlu0 %v1548
        %v1550 = vpop.xlane.xlu0 %1549
        %v1551 = vadd.f32 %v1542, %v1543
        %1552 = vadd.xlane.f32.xlu0 %v1551
        %v1553 = vpop.xlane.xlu0 %1552
        %v1554 = vadd.f32 %v1544, %v1545
        %1555 = vadd.xlane.f32.xlu0 %v1554
        %v1556 = vpop.xlane.xlu0 %1555
        %v1557 = vadd.f32 %v1546, %v1547
        %1558 = vadd.xlane.f32.xlu0 %v1557
        %v1559 = vpop.xlane.xlu0 %1558
        %v1560 = vmul.f32 %v1550, %v515
        %v1561 = vmul.f32 %v1553, %v515
        %v1562 = vmul.f32 %v1556, %v515
        %v1563 = vmul.f32 %v1559, %v515
        %v1564 = vadd.f32 %v1560, 1e-05
        %v1565 = vadd.f32 %v1561, 1e-05
        %v1566 = vadd.f32 %v1562, 1e-05
        %v1567 = vadd.f32 %v1563, 1e-05
        %v1568 = vrsqrt.pop %v1564
        %v1569 = vrsqrt.pop %v1565
        %v1570 = vrsqrt.pop %v1566
        %v1571 = vrsqrt.pop %v1567
        %v1572 = vmul.f32 %v1532, %v1568
        %v1573 = vmul.f32 %v1533, %v1568
        %v1574 = vmul.f32 %v1534, %v1569
        %v1575 = vmul.f32 %v1535, %v1569
        %v1576 = vmul.f32 %v1536, %v1570
        %v1577 = vmul.f32 %v1537, %v1570
        %v1578 = vmul.f32 %v1538, %v1571
        %v1579 = vmul.f32 %v1539, %v1571
        %v1581 = vlaneseq
        %v1582 = vshrl.u32 %v1581, 7
        %v1583 = vsub.s32 0, %v1582
        %v1584 = vrot.slane %v1514, %v1583
        %v1585 = vlaneseq
        %v1586 = vshrl.u32 %v1585, 7
        %v1587 = vsub.s32 1, %v1586
        %v1588 = vrot.slane %v1514, %v1587
        %v1591 = vmul.f32 %v1572, %v1584
        %v1592 = vmul.f32 %v1573, %v1588
        %v1593 = vmul.f32 %v1574, %v1584
        %v1594 = vmul.f32 %v1575, %v1588
        %v1595 = vmul.f32 %v1576, %v1584
        %v1596 = vmul.f32 %v1577, %v1588
        %v1597 = vmul.f32 %v1578, %v1584
        %v1598 = vmul.f32 %v1579, %v1588
        %v1600 = vlaneseq
        %v1601 = vshrl.u32 %v1600, 7
        %v1602 = vsub.s32 0, %v1601
        %v1603 = vrot.slane %v1515, %v1602
        %v1604 = vlaneseq
        %v1605 = vshrl.u32 %v1604, 7
        %v1606 = vsub.s32 1, %v1605
        %v1607 = vrot.slane %v1515, %v1606
        %v1610 = vadd.f32 %v1591, %v1603
        %v1611 = vadd.f32 %v1592, %v1607
        %v1612 = vadd.f32 %v1593, %v1603
        %v1613 = vadd.f32 %v1594, %v1607
        %v1614 = vadd.f32 %v1595, %v1603
        %v1615 = vadd.f32 %v1596, %v1607
        %v1616 = vadd.f32 %v1597, %v1603
        %v1617 = vadd.f32 %v1598, %v1607
        %v1618 = vpack.c.bf16 %v1612, %v1610
        %v1619 = vpack.c.bf16 %v1613, %v1611
        %v1620 = vpack.c.bf16 %v1616, %v1614
        %v1621 = vpack.c.bf16 %v1617, %v1615
        %v1622 = vld [vmem:[%s9] sm:$0xff]
        %v1623 = vld [vmem:[%s9 + $0x8] sm:$0xff]
        %v1624 = vld [vmem:[%s9 + $0x10] sm:$0xff]
        %v1625 = vld [vmem:[%s9 + $0x18] sm:$0xff]
        %v1626 = vld [vmem:[%s9 + $0x20] sm:$0xff]
        %v1627 = vld [vmem:[%s9 + $0x28] sm:$0xff]
        %v1628 = vld [vmem:[%s9 + $0x30] sm:$0xff]
        %v1629 = vld [vmem:[%s9 + $0x38] sm:$0xff]
        %v1630 = vld [vmem:[%s9 + $0x40] sm:$0xff]
        %v1631 = vld [vmem:[%s9 + $0x48] sm:$0xff]
        %v1632 = vld [vmem:[%s9 + $0x50] sm:$0xff]
        %v1633 = vld [vmem:[%s9 + $0x58] sm:$0xff]
        %v1634 = vld [vmem:[%s9 + $0x60] sm:$0xff]
        %v1635 = vld [vmem:[%s9 + $0x68] sm:$0xff]
        %v1636 = vld [vmem:[%s9 + $0x70] sm:$0xff]
        %v1637 = vld [vmem:[%s9 + $0x78] sm:$0xff]
        %v1638 = vld [vmem:[%s9 + $0x80] sm:$0xff]
        %v1639 = vld [vmem:[%s9 + $0x88] sm:$0xff]
        %v1640 = vld [vmem:[%s9 + $0x90] sm:$0xff]
        %v1641 = vld [vmem:[%s9 + $0x98] sm:$0xff]
        %v1642 = vld [vmem:[%s9 + $0xa0] sm:$0xff]
        %v1643 = vld [vmem:[%s9 + $0xa8] sm:$0xff]
        %v1644 = vld [vmem:[%s9 + $0xb0] sm:$0xff]
        %v1645 = vld [vmem:[%s9 + $0xb8] sm:$0xff]
        %v1646 = vld [vmem:[%s9 + $0xc0] sm:$0xff]
        %v1647 = vld [vmem:[%s9 + $0xc8] sm:$0xff]
        %v1648 = vld [vmem:[%s9 + $0xd0] sm:$0xff]
        %v1649 = vld [vmem:[%s9 + $0xd8] sm:$0xff]
        %v1650 = vld [vmem:[%s9 + $0xe0] sm:$0xff]
        %v1651 = vld [vmem:[%s9 + $0xe8] sm:$0xff]
        %v1652 = vld [vmem:[%s9 + $0xf0] sm:$0xff]
        %v1653 = vld [vmem:[%s9 + $0xf8] sm:$0xff]
        %v1654 = vld [vmem:[%s10] sm:$0x3]
        %v1656 = vlaneseq
        %v1657 = vshrl.u32 %v1656, 7
        %v1658 = vsub.s32 0, %v1657
        %v1659 = vrot.slane %v1654, %v1658
        %v1660 = vlaneseq
        %v1661 = vshrl.u32 %v1660, 7
        %v1662 = vsub.s32 1, %v1661
        %v1663 = vrot.slane %v1654, %v1662
        %v1698 = vunpack.c.l.b16 %v1622
        %v1699 = vunpack.c.h.b16 %v1622
        %v1700 = vunpack.c.l.b16 %v1623
        %v1701 = vunpack.c.h.b16 %v1623
        %v1702 = vunpack.c.l.b16 %v1624
        %v1703 = vunpack.c.h.b16 %v1624
        %v1704 = vunpack.c.l.b16 %v1625
        %v1705 = vunpack.c.h.b16 %v1625
        %v1706 = vunpack.c.l.b16 %v1626
        %v1707 = vunpack.c.h.b16 %v1626
        %v1708 = vunpack.c.l.b16 %v1627
        %v1709 = vunpack.c.h.b16 %v1627
        %v1710 = vunpack.c.l.b16 %v1628
        %v1711 = vunpack.c.h.b16 %v1628
        %v1712 = vunpack.c.l.b16 %v1629
        %v1713 = vunpack.c.h.b16 %v1629
        %v1714 = vunpack.c.l.b16 %v1630
        %v1715 = vunpack.c.h.b16 %v1630
        %v1716 = vunpack.c.l.b16 %v1631
        %v1717 = vunpack.c.h.b16 %v1631
        %v1718 = vunpack.c.l.b16 %v1632
        %v1719 = vunpack.c.h.b16 %v1632
        %v1720 = vunpack.c.l.b16 %v1633
        %v1721 = vunpack.c.h.b16 %v1633
        %v1722 = vunpack.c.l.b16 %v1634
        %v1723 = vunpack.c.h.b16 %v1634
        %v1724 = vunpack.c.l.b16 %v1635
        %v1725 = vunpack.c.h.b16 %v1635
        %v1726 = vunpack.c.l.b16 %v1636
        %v1727 = vunpack.c.h.b16 %v1636
        %v1728 = vunpack.c.l.b16 %v1637
        %v1729 = vunpack.c.h.b16 %v1637
        %v1730 = vunpack.c.l.b16 %v1638
        %v1731 = vunpack.c.h.b16 %v1638
        %v1732 = vunpack.c.l.b16 %v1639
        %v1733 = vunpack.c.h.b16 %v1639
        %v1734 = vunpack.c.l.b16 %v1640
        %v1735 = vunpack.c.h.b16 %v1640
        %v1736 = vunpack.c.l.b16 %v1641
        %v1737 = vunpack.c.h.b16 %v1641
        %v1738 = vunpack.c.l.b16 %v1642
        %v1739 = vunpack.c.h.b16 %v1642
        %v1740 = vunpack.c.l.b16 %v1643
        %v1741 = vunpack.c.h.b16 %v1643
        %v1742 = vunpack.c.l.b16 %v1644
        %v1743 = vunpack.c.h.b16 %v1644
        %v1744 = vunpack.c.l.b16 %v1645
        %v1745 = vunpack.c.h.b16 %v1645
        %v1746 = vunpack.c.l.b16 %v1646
        %v1747 = vunpack.c.h.b16 %v1646
        %v1748 = vunpack.c.l.b16 %v1647
        %v1749 = vunpack.c.h.b16 %v1647
        %v1750 = vunpack.c.l.b16 %v1648
        %v1751 = vunpack.c.h.b16 %v1648
        %v1752 = vunpack.c.l.b16 %v1649
        %v1753 = vunpack.c.h.b16 %v1649
        %v1754 = vunpack.c.l.b16 %v1650
        %v1755 = vunpack.c.h.b16 %v1650
        %v1756 = vunpack.c.l.b16 %v1651
        %v1757 = vunpack.c.h.b16 %v1651
        %v1758 = vunpack.c.l.b16 %v1652
        %v1759 = vunpack.c.h.b16 %v1652
        %v1760 = vunpack.c.l.b16 %v1653
        %v1761 = vunpack.c.h.b16 %v1653
        %v1762 = vpack.c.b16 %v1700, %v1698
        %v1763 = vpack.c.b16 %v1701, %v1699
        %v1764 = vpack.c.b16 %v1704, %v1702
        %v1765 = vpack.c.b16 %v1705, %v1703
        %v1766 = vpack.c.b16 %v1708, %v1706
        %v1767 = vpack.c.b16 %v1709, %v1707
        %v1768 = vpack.c.b16 %v1712, %v1710
        %v1769 = vpack.c.b16 %v1713, %v1711
        %v1770 = vpack.c.b16 %v1716, %v1714
        %v1771 = vpack.c.b16 %v1717, %v1715
        %v1772 = vpack.c.b16 %v1720, %v1718
        %v1773 = vpack.c.b16 %v1721, %v1719
        %v1774 = vpack.c.b16 %v1724, %v1722
        %v1775 = vpack.c.b16 %v1725, %v1723
        %v1776 = vpack.c.b16 %v1728, %v1726
        %v1777 = vpack.c.b16 %v1729, %v1727
        %v1778 = vpack.c.b16 %v1732, %v1730
        %v1779 = vpack.c.b16 %v1733, %v1731
        %v1780 = vpack.c.b16 %v1736, %v1734
        %v1781 = vpack.c.b16 %v1737, %v1735
        %v1782 = vpack.c.b16 %v1740, %v1738
        %v1783 = vpack.c.b16 %v1741, %v1739
        %v1784 = vpack.c.b16 %v1744, %v1742
        %v1785 = vpack.c.b16 %v1745, %v1743
        %v1786 = vpack.c.b16 %v1748, %v1746
        %v1787 = vpack.c.b16 %v1749, %v1747
        %v1788 = vpack.c.b16 %v1752, %v1750
        %v1789 = vpack.c.b16 %v1753, %v1751
        %v1790 = vpack.c.b16 %v1756, %v1754
        %v1791 = vpack.c.b16 %v1757, %v1755
        %v1792 = vpack.c.b16 %v1760, %v1758
        %v1793 = vpack.c.b16 %v1761, %v1759
        %1826 = vmatprep.subr.bf16.mxu0 %v1763
        %1827 = vmatpush1.bf16.msra.mxu0 %v1762
        %1828 = vmatprep.subr.bf16.mxu0 %v1765
        %1829 = vmatpush1.bf16.msra.mxu0 %v1764
        %1830 = vmatprep.subr.bf16.mxu0 %v1767
        %1831 = vmatpush1.bf16.msra.mxu0 %v1766
        %1832 = vmatprep.subr.bf16.mxu0 %v1769
        %1833 = vmatpush1.bf16.msra.mxu0 %v1768
        %1834 = vmatprep.subr.bf16.mxu0 %v1771
        %1835 = vmatpush1.bf16.msra.mxu0 %v1770
        %1836 = vmatprep.subr.bf16.mxu0 %v1773
        %1837 = vmatpush1.bf16.msra.mxu0 %v1772
        %1838 = vmatprep.subr.bf16.mxu0 %v1775
        %1839 = vmatpush1.bf16.msra.mxu0 %v1774
        %1840 = vmatprep.subr.bf16.mxu0 %v1777
        %1841 = vmatpush1.bf16.msra.mxu0 %v1776
        %1842 = vmatprep.subr.bf16.mxu0 %v1779
        %1843 = vmatpush1.bf16.msra.mxu0 %v1778
        %1844 = vmatprep.subr.bf16.mxu0 %v1781
        %1845 = vmatpush1.bf16.msra.mxu0 %v1780
        %1846 = vmatprep.subr.bf16.mxu0 %v1783
        %1847 = vmatpush1.bf16.msra.mxu0 %v1782
        %1848 = vmatprep.subr.bf16.mxu0 %v1785
        %1849 = vmatpush1.bf16.msra.mxu0 %v1784
        %1850 = vmatprep.subr.bf16.mxu0 %v1787
        %1851 = vmatpush1.bf16.msra.mxu0 %v1786
        %1852 = vmatprep.subr.bf16.mxu0 %v1789
        %1853 = vmatpush1.bf16.msra.mxu0 %v1788
        %1854 = vmatprep.subr.bf16.mxu0 %v1791
        %1855 = vmatpush1.bf16.msra.mxu0 %v1790
        %1856 = vmatprep.subr.bf16.mxu0 %v1793
        %1857 = vmatpush1.bf16.msra.mxu0 %v1792
        %1858 = vmatprep.mubr.bf16.mxu0 %v1619
        %1859 = vmatmul.mubr.bf16.gmra.mrb[0].mxu0 %v1618
        %v1860 = vpop.f32.mrb[0].mxu0
        %v1861 = vadd.f32 %v1659, %v1860
        %v1862 = vpop.f32.mrb[0].mxu0
        %v1863 = vadd.f32 %v1663, %v1862
        %v1864 = vpop.f32.mrb[0].mxu0
        %v1865 = vadd.f32 %v1659, %v1864
        %v1866 = vpop.f32.mrb[0].mxu0
        %v1867 = vadd.f32 %v1663, %v1866
        %1868 = vmatprep.mubr.bf16.mxu0 %v1621
        %1869 = vmatmul.mubr.bf16.gmra.mrb[0].mxu0 %v1620
        %v1870 = vpop.f32.mrb[0].mxu0
        %v1871 = vadd.f32 %v1659, %v1870
        %v1872 = vpop.f32.mrb[0].mxu0
        %v1873 = vadd.f32 %v1663, %v1872
        %v1874 = vpop.f32.mrb[0].mxu0
        %v1875 = vadd.f32 %v1659, %v1874
        %v1876 = vpop.f32.mrb[0].mxu0
        %v1877 = vadd.f32 %v1663, %v1876
        %1878 = vdwg.mxu0
        %v1879 = vmul.f32 %v1861, 1.702
        %v1880 = vmul.f32 %v1863, 1.702
        %v1881 = vmul.f32 %v1865, 1.702
        %v1882 = vmul.f32 %v1867, 1.702
        %v1883 = vmul.f32 %v1871, 1.702
        %v1884 = vmul.f32 %v1873, 1.702
        %v1885 = vmul.f32 %v1875, 1.702
        %v1886 = vmul.f32 %v1877, 1.702
        %v1887 = vxor.u32 %v1879, 2147483648
        %v1888 = vxor.u32 %v1880, 2147483648
        %v1889 = vxor.u32 %v1881, 2147483648
        %v1890 = vxor.u32 %v1882, 2147483648
        %v1891 = vxor.u32 %v1883, 2147483648
        %v1892 = vxor.u32 %v1884, 2147483648
        %v1893 = vxor.u32 %v1885, 2147483648
        %v1894 = vxor.u32 %v1886, 2147483648
        %v1895 = vmul.f32 %v1887, 1.442695
        %v1896 = vpow.pop %v1895
        %v1897 = vmul.f32 %v1888, 1.442695
        %v1898 = vpow.pop %v1897
        %v1899 = vmul.f32 %v1889, 1.442695
        %v1900 = vpow.pop %v1899
        %v1901 = vmul.f32 %v1890, 1.442695
        %v1902 = vpow.pop %v1901
        %v1903 = vmul.f32 %v1891, 1.442695
        %v1904 = vpow.pop %v1903
        %v1905 = vmul.f32 %v1892, 1.442695
        %v1906 = vpow.pop %v1905
        %v1907 = vmul.f32 %v1893, 1.442695
        %v1908 = vpow.pop %v1907
        %v1909 = vmul.f32 %v1894, 1.442695
        %v1910 = vpow.pop %v1909
        %v1911 = vadd.f32 %v1896, 1.0
        %v1912 = vadd.f32 %v1898, 1.0
        %v1913 = vadd.f32 %v1900, 1.0
        %v1914 = vadd.f32 %v1902, 1.0
        %v1915 = vadd.f32 %v1904, 1.0
        %v1916 = vadd.f32 %v1906, 1.0
        %v1917 = vadd.f32 %v1908, 1.0
        %v1918 = vadd.f32 %v1910, 1.0
        %v1919 = vrcp.pop %v1911
        %v1920 = vmul.f32 1.0, %v1919
        %v1921 = vrcp.pop %v1912
        %v1922 = vmul.f32 1.0, %v1921
        %v1923 = vrcp.pop %v1913
        %v1924 = vmul.f32 1.0, %v1923
        %v1925 = vrcp.pop %v1914
        %v1926 = vmul.f32 1.0, %v1925
        %v1927 = vrcp.pop %v1915
        %v1928 = vmul.f32 1.0, %v1927
        %v1929 = vrcp.pop %v1916
        %v1930 = vmul.f32 1.0, %v1929
        %v1931 = vrcp.pop %v1917
        %v1932 = vmul.f32 1.0, %v1931
        %v1933 = vrcp.pop %v1918
        %v1934 = vmul.f32 1.0, %v1933
        %v1935 = vmul.f32 %v1861, %v1920
        %v1936 = vmul.f32 %v1863, %v1922
        %v1937 = vmul.f32 %v1865, %v1924
        %v1938 = vmul.f32 %v1867, %v1926
        %v1939 = vmul.f32 %v1871, %v1928
        %v1940 = vmul.f32 %v1873, %v1930
        %v1941 = vmul.f32 %v1875, %v1932
        %v1942 = vmul.f32 %v1877, %v1934
        %v1943 = vpack.c.bf16 %v1937, %v1935
        %v1944 = vpack.c.bf16 %v1938, %v1936
        %v1945 = vpack.c.bf16 %v1941, %v1939
        %v1946 = vpack.c.bf16 %v1942, %v1940
        %v1947 = vld [vmem:[#allocation2] sm:$0xff]
        %v1948 = vld [vmem:[#allocation2 + $0x8] sm:$0xff]
        %v1949 = vld [vmem:[#allocation2 + $0x10] sm:$0xff]
        %v1950 = vld [vmem:[#allocation2 + $0x18] sm:$0xff]
        %v1951 = vld [vmem:[#allocation2 + $0x20] sm:$0xff]
        %v1952 = vld [vmem:[#allocation2 + $0x28] sm:$0xff]
        %v1953 = vld [vmem:[#allocation2 + $0x30] sm:$0xff]
        %v1954 = vld [vmem:[#allocation2 + $0x38] sm:$0xff]
        %v1955 = vld [vmem:[#allocation2 + $0x40] sm:$0xff]
        %v1956 = vld [vmem:[#allocation2 + $0x48] sm:$0xff]
        %v1957 = vld [vmem:[#allocation2 + $0x50] sm:$0xff]
        %v1958 = vld [vmem:[#allocation2 + $0x58] sm:$0xff]
        %v1959 = vld [vmem:[#allocation2 + $0x60] sm:$0xff]
        %v1960 = vld [vmem:[#allocation2 + $0x68] sm:$0xff]
        %v1961 = vld [vmem:[#allocation2 + $0x70] sm:$0xff]
        %v1962 = vld [vmem:[#allocation2 + $0x78] sm:$0xff]
        %v1963 = vld [vmem:[#allocation2 + $0x80] sm:$0xff]
        %v1964 = vld [vmem:[#allocation2 + $0x88] sm:$0xff]
        %v1965 = vld [vmem:[#allocation2 + $0x90] sm:$0xff]
        %v1966 = vld [vmem:[#allocation2 + $0x98] sm:$0xff]
        %v1967 = vld [vmem:[#allocation2 + $0xa0] sm:$0xff]
        %v1968 = vld [vmem:[#allocation2 + $0xa8] sm:$0xff]
        %v1969 = vld [vmem:[#allocation2 + $0xb0] sm:$0xff]
        %v1970 = vld [vmem:[#allocation2 + $0xb8] sm:$0xff]
        %v1971 = vld [vmem:[#allocation2 + $0xc0] sm:$0xff]
        %v1972 = vld [vmem:[#allocation2 + $0xc8] sm:$0xff]
        %v1973 = vld [vmem:[#allocation2 + $0xd0] sm:$0xff]
        %v1974 = vld [vmem:[#allocation2 + $0xd8] sm:$0xff]
        %v1975 = vld [vmem:[#allocation2 + $0xe0] sm:$0xff]
        %v1976 = vld [vmem:[#allocation2 + $0xe8] sm:$0xff]
        %v1977 = vld [vmem:[#allocation2 + $0xf0] sm:$0xff]
        %v1978 = vld [vmem:[#allocation2 + $0xf8] sm:$0xff]
        %v1979 = vld [vmem:[%s12] sm:$0x3]
        %v1981 = vlaneseq
        %v1982 = vshrl.u32 %v1981, 7
        %v1983 = vsub.s32 0, %v1982
        %v1984 = vrot.slane %v1979, %v1983
        %v1985 = vlaneseq
        %v1986 = vshrl.u32 %v1985, 7
        %v1987 = vsub.s32 1, %v1986
        %v1988 = vrot.slane %v1979, %v1987
        %v2023 = vunpack.c.l.b16 %v1947
        %v2024 = vunpack.c.h.b16 %v1947
        %v2025 = vunpack.c.l.b16 %v1948
        %v2026 = vunpack.c.h.b16 %v1948
        %v2027 = vunpack.c.l.b16 %v1949
        %v2028 = vunpack.c.h.b16 %v1949
        %v2029 = vunpack.c.l.b16 %v1950
        %v2030 = vunpack.c.h.b16 %v1950
        %v2031 = vunpack.c.l.b16 %v1951
        %v2032 = vunpack.c.h.b16 %v1951
        %v2033 = vunpack.c.l.b16 %v1952
        %v2034 = vunpack.c.h.b16 %v1952
        %v2035 = vunpack.c.l.b16 %v1953
        %v2036 = vunpack.c.h.b16 %v1953
        %v2037 = vunpack.c.l.b16 %v1954
        %v2038 = vunpack.c.h.b16 %v1954
        %v2039 = vunpack.c.l.b16 %v1955
        %v2040 = vunpack.c.h.b16 %v1955
        %v2041 = vunpack.c.l.b16 %v1956
        %v2042 = vunpack.c.h.b16 %v1956
        %v2043 = vunpack.c.l.b16 %v1957
        %v2044 = vunpack.c.h.b16 %v1957
        %v2045 = vunpack.c.l.b16 %v1958
        %v2046 = vunpack.c.h.b16 %v1958
        %v2047 = vunpack.c.l.b16 %v1959
        %v2048 = vunpack.c.h.b16 %v1959
        %v2049 = vunpack.c.l.b16 %v1960
        %v2050 = vunpack.c.h.b16 %v1960
        %v2051 = vunpack.c.l.b16 %v1961
        %v2052 = vunpack.c.h.b16 %v1961
        %v2053 = vunpack.c.l.b16 %v1962
        %v2054 = vunpack.c.h.b16 %v1962
        %v2055 = vunpack.c.l.b16 %v1963
        %v2056 = vunpack.c.h.b16 %v1963
        %v2057 = vunpack.c.l.b16 %v1964
        %v2058 = vunpack.c.h.b16 %v1964
        %v2059 = vunpack.c.l.b16 %v1965
        %v2060 = vunpack.c.h.b16 %v1965
        %v2061 = vunpack.c.l.b16 %v1966
        %v2062 = vunpack.c.h.b16 %v1966
        %v2063 = vunpack.c.l.b16 %v1967
        %v2064 = vunpack.c.h.b16 %v1967
        %v2065 = vunpack.c.l.b16 %v1968
        %v2066 = vunpack.c.h.b16 %v1968
        %v2067 = vunpack.c.l.b16 %v1969
        %v2068 = vunpack.c.h.b16 %v1969
        %v2069 = vunpack.c.l.b16 %v1970
        %v2070 = vunpack.c.h.b16 %v1970
        %v2071 = vunpack.c.l.b16 %v1971
        %v2072 = vunpack.c.h.b16 %v1971
        %v2073 = vunpack.c.l.b16 %v1972
        %v2074 = vunpack.c.h.b16 %v1972
        %v2075 = vunpack.c.l.b16 %v1973
        %v2076 = vunpack.c.h.b16 %v1973
        %v2077 = vunpack.c.l.b16 %v1974
        %v2078 = vunpack.c.h.b16 %v1974
        %v2079 = vunpack.c.l.b16 %v1975
        %v2080 = vunpack.c.h.b16 %v1975
        %v2081 = vunpack.c.l.b16 %v1976
        %v2082 = vunpack.c.h.b16 %v1976
        %v2083 = vunpack.c.l.b16 %v1977
        %v2084 = vunpack.c.h.b16 %v1977
        %v2085 = vunpack.c.l.b16 %v1978
        %v2086 = vunpack.c.h.b16 %v1978
        %v2087 = vpack.c.b16 %v2025, %v2023
        %v2088 = vpack.c.b16 %v2026, %v2024
        %v2089 = vpack.c.b16 %v2029, %v2027
        %v2090 = vpack.c.b16 %v2030, %v2028
        %v2091 = vpack.c.b16 %v2033, %v2031
        %v2092 = vpack.c.b16 %v2034, %v2032
        %v2093 = vpack.c.b16 %v2037, %v2035
        %v2094 = vpack.c.b16 %v2038, %v2036
        %v2095 = vpack.c.b16 %v2041, %v2039
        %v2096 = vpack.c.b16 %v2042, %v2040
        %v2097 = vpack.c.b16 %v2045, %v2043
        %v2098 = vpack.c.b16 %v2046, %v2044
        %v2099 = vpack.c.b16 %v2049, %v2047
        %v2100 = vpack.c.b16 %v2050, %v2048
        %v2101 = vpack.c.b16 %v2053, %v2051
        %v2102 = vpack.c.b16 %v2054, %v2052
        %v2103 = vpack.c.b16 %v2057, %v2055
        %v2104 = vpack.c.b16 %v2058, %v2056
        %v2105 = vpack.c.b16 %v2061, %v2059
        %v2106 = vpack.c.b16 %v2062, %v2060
        %v2107 = vpack.c.b16 %v2065, %v2063
        %v2108 = vpack.c.b16 %v2066, %v2064
        %v2109 = vpack.c.b16 %v2069, %v2067
        %v2110 = vpack.c.b16 %v2070, %v2068
        %v2111 = vpack.c.b16 %v2073, %v2071
        %v2112 = vpack.c.b16 %v2074, %v2072
        %v2113 = vpack.c.b16 %v2077, %v2075
        %v2114 = vpack.c.b16 %v2078, %v2076
        %v2115 = vpack.c.b16 %v2081, %v2079
        %v2116 = vpack.c.b16 %v2082, %v2080
        %v2117 = vpack.c.b16 %v2085, %v2083
        %v2118 = vpack.c.b16 %v2086, %v2084
        %2151 = vmatprep.subr.bf16.mxu0 %v2088
        %2152 = vmatpush1.bf16.msra.mxu0 %v2087
        %2153 = vmatprep.subr.bf16.mxu0 %v2090
        %2154 = vmatpush1.bf16.msra.mxu0 %v2089
        %2155 = vmatprep.subr.bf16.mxu0 %v2092
        %2156 = vmatpush1.bf16.msra.mxu0 %v2091
        %2157 = vmatprep.subr.bf16.mxu0 %v2094
        %2158 = vmatpush1.bf16.msra.mxu0 %v2093
        %2159 = vmatprep.subr.bf16.mxu0 %v2096
        %2160 = vmatpush1.bf16.msra.mxu0 %v2095
        %2161 = vmatprep.subr.bf16.mxu0 %v2098
        %2162 = vmatpush1.bf16.msra.mxu0 %v2097
        %2163 = vmatprep.subr.bf16.mxu0 %v2100
        %2164 = vmatpush1.bf16.msra.mxu0 %v2099
        %2165 = vmatprep.subr.bf16.mxu0 %v2102
        %2166 = vmatpush1.bf16.msra.mxu0 %v2101
        %2167 = vmatprep.subr.bf16.mxu0 %v2104
        %2168 = vmatpush1.bf16.msra.mxu0 %v2103
        %2169 = vmatprep.subr.bf16.mxu0 %v2106
        %2170 = vmatpush1.bf16.msra.mxu0 %v2105
        %2171 = vmatprep.subr.bf16.mxu0 %v2108
        %2172 = vmatpush1.bf16.msra.mxu0 %v2107
        %2173 = vmatprep.subr.bf16.mxu0 %v2110
        %2174 = vmatpush1.bf16.msra.mxu0 %v2109
        %2175 = vmatprep.subr.bf16.mxu0 %v2112
        %2176 = vmatpush1.bf16.msra.mxu0 %v2111
        %2177 = vmatprep.subr.bf16.mxu0 %v2114
        %2178 = vmatpush1.bf16.msra.mxu0 %v2113
        %2179 = vmatprep.subr.bf16.mxu0 %v2116
        %2180 = vmatpush1.bf16.msra.mxu0 %v2115
        %2181 = vmatprep.subr.bf16.mxu0 %v2118
        %2182 = vmatpush1.bf16.msra.mxu0 %v2117
        %2183 = vmatprep.mubr.bf16.mxu0 %v1944
        %2184 = vmatmul.mubr.bf16.gmra.mrb[0].mxu0 %v1943
        %v2185 = vpop.f32.mrb[0].mxu0
        %v2186 = vadd.f32 %v1984, %v2185
        %v2187 = vpop.f32.mrb[0].mxu0
        %v2188 = vadd.f32 %v1988, %v2187
        %v2189 = vpop.f32.mrb[0].mxu0
        %v2190 = vadd.f32 %v1984, %v2189
        %v2191 = vpop.f32.mrb[0].mxu0
        %v2192 = vadd.f32 %v1988, %v2191
        %2193 = vmatprep.mubr.bf16.mxu0 %v1946
        %2194 = vmatmul.mubr.bf16.gmra.mrb[0].mxu0 %v1945
        %v2195 = vpop.f32.mrb[0].mxu0
        %v2196 = vadd.f32 %v1984, %v2195
        %v2197 = vpop.f32.mrb[0].mxu0
        %v2198 = vadd.f32 %v1988, %v2197
        %v2199 = vpop.f32.mrb[0].mxu0
        %v2200 = vadd.f32 %v1984, %v2199
        %v2201 = vpop.f32.mrb[0].mxu0
        %v2202 = vadd.f32 %v1988, %v2201
        %2203 = vdwg.mxu0
        %v2204 = vadd.f32 %v1498, %v2186
        %v2205 = vadd.f32 %v1499, %v2188
        %v2206 = vadd.f32 %v1500, %v2190
        %v2207 = vadd.f32 %v1501, %v2192
        %v2208 = vadd.f32 %v1502, %v2196
        %v2209 = vadd.f32 %v1503, %v2198
        %v2210 = vadd.f32 %v1504, %v2200
        %v2211 = vadd.f32 %v1505, %v2202
        %v2212 = vadd.f32 %v493, %v2204
        %v2213 = vadd.f32 %v494, %v2205
        %v2214 = vadd.f32 %v495, %v2206
        %v2215 = vadd.f32 %v496, %v2207
        %v2216 = vadd.f32 %v497, %v2208
        %v2217 = vadd.f32 %v498, %v2209
        %v2218 = vadd.f32 %v499, %v2210
        %v2219 = vadd.f32 %v500, %v2211
        %2220 = vst [vmem:[%s479] sm:$0xff] %v2212
        %2221 = vst [vmem:[%s479 + $0x8] sm:$0xff] %v2213
        %2222 = vst [vmem:[%s479 + $0x10] sm:$0xff] %v2214
        %2223 = vst [vmem:[%s479 + $0x18] sm:$0xff] %v2215
        %2224 = vst [vmem:[%s479 + $0x20] sm:$0xff] %v2216
        %2225 = vst [vmem:[%s479 + $0x28] sm:$0xff] %v2217
        %2226 = vst [vmem:[%s479 + $0x30] sm:$0xff] %v2218
        %2227 = vst [vmem:[%s479 + $0x38] sm:$0xff] %v2219
        %s2228 = sand.u32 %s319, 1
        %s2229 = scalar_lea.sflag [#allocation4], %s2228
        %s2230 = sand.u32 %s319, 1
        %s2231 = smul.addr %s2230, 64
        %s2232 = scalar_lea.vmem [#allocation5], %s2231
        %s2233 = sand.u32 %s345, 1
        %s2234 = scalar_lea.sflag [#allocation7], %s2233
        %s2235 = sand.u32 %s345, 1
        %s2236 = smul.addr %s2235, 32
        %s2237 = scalar_lea.vmem [#allocation6], %s2236
        // Predicated region
        $region77: #{tpu_custom_call.1} parent=71 // pred_check
          %p2238 = pneg %p329
        $region78: #{tpu_custom_call.1} parent=71 // pred_check_branch
          %2240 = sbr.rel (%p2238) target = $region80
        $region79: #{tpu_custom_call.1} parent=71 // pred_region
          %s2242 = ssub.s32 1024, 1024
          %2243 = vsyncadd %s2229, %s2242
          %s2244 = smul.addr %s33, 8
          %s2245 = smul.addr %s2244, 128
          %s2246 = scalar_lea.hbm %s13, %s2245
          %s2247 = sshll.u32 %s2232, 4
          %s2248 = int_to_ptr.vmem [resolvable:$true] %s2247
          %2253 = dma.vmem_to_hbm [thread:$0]  %s2248, 1024, %s2246, %s2229, 256, 256, 16
        $region80: #{tpu_custom_call.1} parent=71 // pred_fallthru
          _
        // Predicated region
        $region81: #{tpu_custom_call.1} parent=71 // pred_check
          %p2254 = pneg %p355
        $region82: #{tpu_custom_call.1} parent=71 // pred_check_branch
          %2256 = sbr.rel (%p2254) target = $region84
        $region83: #{tpu_custom_call.1} parent=71 // pred_region
          %s2258 = ssub.s32 512, 512
          %2259 = vsyncadd %s2234, %s2258
          %s2260 = smul.addr %s33, 4
          %s2261 = smul.addr %s2260, 128
          %s2262 = scalar_lea.hbm %s14, %s2261
          %s2263 = sshll.u32 %s2237, 4
          %s2264 = int_to_ptr.vmem [resolvable:$true] %s2263
          %2269 = dma.vmem_to_hbm [thread:$0]  %s2264, 512, %s2262, %s2234, 128, 128, 8
        $region84: #{tpu_custom_call.1} parent=71 // pred_fallthru
          _
      $region72: #{tpu_custom_call.1} parent=5 // pred_fallthru
        _
      %p2270 = scmp.le.s32.totalorder 2, %s28
      // Predicated region
      $region85: #{tpu_custom_call.1} parent=5 // pred_check
        %p2271 = pneg %p2270
      $region86: #{tpu_custom_call.1} parent=5 // pred_check_branch
        %2273 = sbr.rel (%p2271) target = $region88
      $region87: #{tpu_custom_call.1} parent=5 // pred_region
        %s2274 = ssub.s32 %s28, 2
        // Predicated region
        $region89: #{tpu_custom_call.1} parent=87 // pred_check
          %p2275 = pneg %p335
        $region90: #{tpu_custom_call.1} parent=87 // pred_check_branch
          %2277 = sbr.rel (%p2275) target = $region92
        $region91: #{tpu_custom_call.1} parent=87 // pred_region
          %s2278 = sand.u32 %s320, 1
          %s2279 = scalar_lea.sflag [#allocation4], %s2278
          %s2280 = sand.u32 %s320, 1
          %s2281 = smul.addr %s2280, 64
          %s2282 = scalar_lea.vmem [#allocation5], %s2281
          %2283 = dma.done %s2279, 1024
        $region92: #{tpu_custom_call.1} parent=87 // pred_fallthru
          _
        // Predicated region
        $region93: #{tpu_custom_call.1} parent=87 // pred_check
          %p2284 = pneg %p361
        $region94: #{tpu_custom_call.1} parent=87 // pred_check_branch
          %2286 = sbr.rel (%p2284) target = $region96
        $region95: #{tpu_custom_call.1} parent=87 // pred_region
          %s2287 = sand.u32 %s346, 1
          %s2288 = scalar_lea.sflag [#allocation7], %s2287
          %s2289 = sand.u32 %s346, 1
          %s2290 = smul.addr %s2289, 32
          %s2291 = scalar_lea.vmem [#allocation6], %s2290
          %2292 = dma.done %s2288, 512
        $region96: #{tpu_custom_call.1} parent=87 // pred_fallthru
          _
      $region88: #{tpu_custom_call.1} parent=5 // pred_fallthru
        _
    $region6: #{tpu_custom_call.1} parent=1 // loop_footer
      %s32 = sadd.s32 1, %s28
    $region7: #{tpu_custom_call.1} parent=1 // loop_footer_branch
      %27 = sbr.rel target = $region3
    $region8: #{tpu_custom_call.1} parent=1 // loop_exit
      _
    %2293 = vsyncpa [#allocation3], 1
    %s2294 = scalar_lea.sflag [#allocation3], 1
    %2295 = vsyncpa %s2294, 1
    %2296 = vsyncpa [#allocation4], 1
    %s2297 = scalar_lea.sflag [#allocation4], 1
    %2298 = vsyncpa %s2297, 1
    %2299 = vsyncpa [#allocation7], 1
    %s2300 = scalar_lea.sflag [#allocation7], 1
    %2301 = vsyncpa %s2300, 1

// kernel: tpu_custom_call.1
$region0: #{tpu_custom_call.1}
  #allocation0 [shape = 'u32[]', space=smem, size = 0x4, offset = 0x4, fixed_abs, tag = 'smem constant byte address 0x4 - core index']
  #allocation1 [shape = 'u32[144,128]{1,0:T(1,128)}', space=vmem, size = 0x12000, scoped, tag = 'internal scratch']
  %s0 = inlined_call_operand.vmem [shape: f32[2,32,256], index: 0, kind: input, shape index: {}]
  %s1 = inlined_call_operand.vmem [shape: f32[1,256], index: 1, kind: input, shape index: {}]
  %s2 = inlined_call_operand.vmem [shape: f32[1,256], index: 2, kind: input, shape index: {}]
  %s3 = inlined_call_operand.vmem [shape: bf16[256,192], index: 3, kind: input, shape index: {}]
  %s4 = inlined_call_operand.vmem [shape: f32[1,192], index: 4, kind: input, shape index: {}]
  %s5 = inlined_call_operand.vmem [shape: bf16[2,32,256], index: 5, kind: input, shape index: {}]
  %s6 = inlined_call_operand.vmem [shape: f32[1,256], index: 6, kind: input, shape index: {}]
  %s7 = inlined_call_operand.vmem [shape: f32[1,256], index: 7, kind: input, shape index: {}]
  %s8 = inlined_call_operand.vmem [shape: f32[1,256], index: 8, kind: input, shape index: {}]
  %s9 = inlined_call_operand.vmem [shape: bf16[256,256], index: 9, kind: input, shape index: {}]
  %s10 = inlined_call_operand.vmem [shape: f32[1,256], index: 10, kind: input, shape index: {}]
  %s11 = inlined_call_operand.hbm [shape: bf16[256,256], index: 11, kind: input, shape index: {}]
  %s12 = inlined_call_operand.vmem [shape: f32[1,256], index: 12, kind: input, shape index: {}]
  %s13 = inlined_call_operand.hbm [shape: f32[2,32,256], index: 13, kind: output, shape index: {0}]
  %s14 = inlined_call_operand.hbm [shape: f32[2,32,128], index: 14, kind: output, shape index: {1}]
  %15 = xla_tuple %s13, %s14
  %s16 = sld [smem:[#allocation0]]
  $region97: #{tpu_custom_call.1} parent=0
    _
  %s18 = ssub.s32 1, %s16
  %s19 = scalar_select 0, %s18, %s16
  $region1: #{tpu_custom_call.1} parent=0
    #allocation2 [shape = 'u8[131072]{0}', space=vmem, size = 0x20000, scoped, tag = 'input window, operand 11, single buffered']
    #allocation3 [shape = 's32[2]{0}', space=sflag, size = 0x8, scoped, tag = 'scoped memory for tpu_custom_call.1']
    #allocation4 [shape = 's32[2]{0}', space=sflag, size = 0x8, scoped, tag = 'scoped memory for tpu_custom_call.1']
    #allocation5 [shape = 'u8[65536]{0}', space=vmem, size = 0x10000, scoped, tag = 'output window, operand 0']
    #allocation6 [shape = 'u8[32768]{0}', space=vmem, size = 0x8000, scoped, tag = 'output window, operand 1']
    #allocation7 [shape = 's32[2]{0}', space=sflag, size = 0x8, scoped, tag = 'scoped memory for tpu_custom_call.1']
    %20 = vsyncpa [#allocation3], 0
    %21 = vsyncpa [#allocation4], 0
    %s22 = scalar_lea.sflag [#allocation4], 1
    %23 = vsyncpa %s22, 0
    %24 = vsyncpa [#allocation7], 0
    %s25 = scalar_lea.sflag [#allocation7], 1
    %26 = vsyncpa %s25, 0
    loop: start=0, step=1, limit=4
    $region2: #{tpu_custom_call.1} parent=1 // loop_pre_header
      _
    $region3: #{tpu_custom_call.1} parent=1 // loop_header
      %s28 = sphi 0, %s32
      %p29 = scmp.ge.s32.totalorder %s28, 4
      %s38 = sphi 0, %s40
      %s41 = sphi 0, %s38
      %s42 = sphi 0, %s41
      %s58 = sphi 0, %s42
      %s62 = sphi 0, %s62
      %s64 = sphi 0, %s62
      %s65 = sphi 0, %s64
      %s79 = sphi 0, %s65
      %s83 = sphi 0, %s83
      %s85 = sphi 0, %s83
      %s86 = sphi 0, %s85
      %s100 = sphi 0, %s86
      %s104 = sphi 0, %s104
      %s106 = sphi 0, %s104
      %s107 = sphi 0, %s106
      %s121 = sphi 0, %s107
      %s125 = sphi 0, %s125
      %s127 = sphi 0, %s125
      %s128 = sphi 0, %s127
      %s142 = sphi 0, %s128
      %s146 = sphi 0, %s146
      %s148 = sphi 0, %s146
      %s149 = sphi 0, %s148
      %s163 = sphi 0, %s149
      %s167 = sphi 0, %s167
      %s169 = sphi 0, %s167
      %s170 = sphi 0, %s169
      %s184 = sphi 0, %s170
      %s188 = sphi 0, %s188
      %s190 = sphi 0, %s188
      %s191 = sphi 0, %s190
      %s205 = sphi 0, %s191
      %s209 = sphi 0, %s209
      %s211 = sphi 0, %s209
      %s212 = sphi 0, %s211
      %s226 = sphi 0, %s212
      %s230 = sphi 0, %s230
      %s232 = sphi 0, %s230
      %s233 = sphi 0, %s232
      %s247 = sphi 0, %s233
      %s251 = sphi 0, %s251
      %s253 = sphi 0, %s251
      %s254 = sphi 0, %s253
      %s268 = sphi 0, %s254
      %s272 = sphi 0, %s272
      %s274 = sphi 0, %s272
      %s275 = sphi 0, %s274
      %s289 = sphi 0, %s275
      %s293 = sphi 0, %s293
      %s295 = sphi 0, %s293
      %s296 = sphi 0, %s295
      %s310 = sphi 0, %s296
      %s316 = sphi 0, %s318
      %s319 = sphi 0, %s316
      %s320 = sphi 0, %s319
      %s336 = sphi 0, %s320
      %s342 = sphi 0, %s344
      %s345 = sphi 0, %s342
      %s346 = sphi 0, %s345
      %s362 = sphi 0, %s346
    $region4: #{tpu_custom_call.1} parent=1 // loop_header_branch
      %31 = sbr.rel (%p29) target = $region8
    $region5: #{tpu_custom_call.1} parent=1 // loop_body
      %s33 = ssub.s32 %s28, 1
      %s34 = ssub.s32 %s28, 2
      %s35 = sadd.s32 %s28, 1
      %s36 = ssub.s32 %s28, %s35
      %p37 = scmp.eq.s32.totalorder %s36, 0
      %s39 = sadd.s32 %s38, 1
      %s40 = scalar_select %p37, %s38, %s39
      %p43 = pneg %p37
      %p44 = scmp.eq.s32.totalorder %s28, 1
      %p45 = por %p43, %p44
      %p46 = scmp.ne.s32.totalorder %s38, %s41
      %p47 = scmp.eq.s32.totalorder %s28, 0
      %p48 = por %p46, %p47
      %p49 = scmp.ne.s32.totalorder %s38, %s41
      %p50 = scmp.eq.s32.totalorder %s33, 1
      %p51 = por %p49, %p50
      %p52 = scmp.ne.s32.totalorder %s41, %s42
      %p53 = scmp.eq.s32.totalorder %s33, 0
      %p54 = por %p52, %p53
      %p55 = scmp.ne.s32.totalorder %s41, %s42
      %p56 = scmp.eq.s32.totalorder %s34, 1
      %p57 = por %p55, %p56
      %p59 = scmp.ne.s32.totalorder %s42, %s58
      %p60 = scmp.eq.s32.totalorder %s34, 0
      %p61 = por %p59, %p60
      %s63 = sadd.s32 %s62, 1
      %p66 = scmp.eq.s32.totalorder %s28, 1
      %p67 = scmp.ne.s32.totalorder %s62, %s64
      %p68 = scmp.eq.s32.totalorder %s28, 0
      %p69 = por %p67, %p68
      %p70 = scmp.ne.s32.totalorder %s62, %s64
      %p71 = scmp.eq.s32.totalorder %s33, 1
      %p72 = por %p70, %p71
      %p73 = scmp.ne.s32.totalorder %s64, %s65
      %p74 = scmp.eq.s32.totalorder %s33, 0
      %p75 = por %p73, %p74
      %p76 = scmp.ne.s32.totalorder %s64, %s65
      %p77 = scmp.eq.s32.totalorder %s34, 1
      %p78 = por %p76, %p77
      %p80 = scmp.ne.s32.totalorder %s65, %s79
      %p81 = scmp.eq.s32.totalorder %s34, 0
      %p82 = por %p80, %p81
      %s84 = sadd.s32 %s83, 1
      %p87 = scmp.eq.s32.totalorder %s28, 1
      %p88 = scmp.ne.s32.totalorder %s83, %s85
      %p89 = scmp.eq.s32.totalorder %s28, 0
      %p90 = por %p88, %p89
      %p91 = scmp.ne.s32.totalorder %s83, %s85
      %p92 = scmp.eq.s32.totalorder %s33, 1
      %p93 = por %p91, %p92
      %p94 = scmp.ne.s32.totalorder %s85, %s86
      %p95 = scmp.eq.s32.totalorder %s33, 0
      %p96 = por %p94, %p95
      %p97 = scmp.ne.s32.totalorder %s85, %s86
      %p98 = scmp.eq.s32.totalorder %s34, 1
      %p99 = por %p97, %p98
      %p101 = scmp.ne.s32.totalorder %s86, %s100
      %p102 = scmp.eq.s32.totalorder %s34, 0
      %p103 = por %p101, %p102
      %s105 = sadd.s32 %s104, 1
      %p108 = scmp.eq.s32.totalorder %s28, 1
      %p109 = scmp.ne.s32.totalorder %s104, %s106
      %p110 = scmp.eq.s32.totalorder %s28, 0
      %p111 = por %p109, %p110
      %p112 = scmp.ne.s32.totalorder %s104, %s106
      %p113 = scmp.eq.s32.totalorder %s33, 1
      %p114 = por %p112, %p113
      %p115 = scmp.ne.s32.totalorder %s106, %s107
      %p116 = scmp.eq.s32.totalorder %s33, 0
      %p117 = por %p115, %p116
      %p118 = scmp.ne.s32.totalorder %s106, %s107
      %p119 = scmp.eq.s32.totalorder %s34, 1
      %p120 = por %p118, %p119
      %p122 = scmp.ne.s32.totalorder %s107, %s121
      %p123 = scmp.eq.s32.totalorder %s34, 0
      %p124 = por %p122, %p123
      %s126 = sadd.s32 %s125, 1
      %p129 = scmp.eq.s32.totalorder %s28, 1
      %p130 = scmp.ne.s32.totalorder %s125, %s127
      %p131 = scmp.eq.s32.totalorder %s28, 0
      %p132 = por %p130, %p131
      %p133 = scmp.ne.s32.totalorder %s125, %s127
      %p134 = scmp.eq.s32.totalorder %s33, 1
      %p135 = por %p133, %p134
      %p136 = scmp.ne.s32.totalorder %s127, %s128
      %p137 = scmp.eq.s32.totalorder %s33, 0
      %p138 = por %p136, %p137
      %p139 = scmp.ne.s32.totalorder %s127, %s128
      %p140 = scmp.eq.s32.totalorder %s34, 1
      %p141 = por %p139, %p140
      %p143 = scmp.ne.s32.totalorder %s128, %s142
      %p144 = scmp.eq.s32.totalorder %s34, 0
      %p145 = por %p143, %p144
      %s147 = sadd.s32 %s146, 1
      %p150 = scmp.eq.s32.totalorder %s28, 1
      %p151 = scmp.ne.s32.totalorder %s146, %s148
      %p152 = scmp.eq.s32.totalorder %s28, 0
      %p153 = por %p151, %p152
      %p154 = scmp.ne.s32.totalorder %s146, %s148
      %p155 = scmp.eq.s32.totalorder %s33, 1
      %p156 = por %p154, %p155
      %p157 = scmp.ne.s32.totalorder %s148, %s149
      %p158 = scmp.eq.s32.totalorder %s33, 0
      %p159 = por %p157, %p158
      %p160 = scmp.ne.s32.totalorder %s148, %s149
      %p161 = scmp.eq.s32.totalorder %s34, 1
      %p162 = por %p160, %p161
      %p164 = scmp.ne.s32.totalorder %s149, %s163
      %p165 = scmp.eq.s32.totalorder %s34, 0
      %p166 = por %p164, %p165
      %s168 = sadd.s32 %s167, 1
      %p171 = scmp.eq.s32.totalorder %s28, 1
      %p172 = scmp.ne.s32.totalorder %s167, %s169
      %p173 = scmp.eq.s32.totalorder %s28, 0
      %p174 = por %p172, %p173
      %p175 = scmp.ne.s32.totalorder %s167, %s169
      %p176 = scmp.eq.s32.totalorder %s33, 1
      %p177 = por %p175, %p176
      %p178 = scmp.ne.s32.totalorder %s169, %s170
      %p179 = scmp.eq.s32.totalorder %s33, 0
      %p180 = por %p178, %p179
      %p181 = scmp.ne.s32.totalorder %s169, %s170
      %p182 = scmp.eq.s32.totalorder %s34, 1
      %p183 = por %p181, %p182
      %p185 = scmp.ne.s32.totalorder %s170, %s184
      %p186 = scmp.eq.s32.totalorder %s34, 0
      %p187 = por %p185, %p186
      %s189 = sadd.s32 %s188, 1
      %p192 = scmp.eq.s32.totalorder %s28, 1
      %p193 = scmp.ne.s32.totalorder %s188, %s190
      %p194 = scmp.eq.s32.totalorder %s28, 0
      %p195 = por %p193, %p194
      %p196 = scmp.ne.s32.totalorder %s188, %s190
      %p197 = scmp.eq.s32.totalorder %s33, 1
      %p198 = por %p196, %p197
      %p199 = scmp.ne.s32.totalorder %s190, %s191
      %p200 = scmp.eq.s32.totalorder %s33, 0
      %p201 = por %p199, %p200
      %p202 = scmp.ne.s32.totalorder %s190, %s191
      %p203 = scmp.eq.s32.totalorder %s34, 1
      %p204 = por %p202, %p203
      %p206 = scmp.ne.s32.totalorder %s191, %s205
      %p207 = scmp.eq.s32.totalorder %s34, 0
      %p208 = por %p206, %p207
      %s210 = sadd.s32 %s209, 1
      %p213 = scmp.eq.s32.totalorder %s28, 1
      %p214 = scmp.ne.s32.totalorder %s209, %s211
      %p215 = scmp.eq.s32.totalorder %s28, 0
      %p216 = por %p214, %p215
      %p217 = scmp.ne.s32.totalorder %s209, %s211
      %p218 = scmp.eq.s32.totalorder %s33, 1
      %p219 = por %p217, %p218
      %p220 = scmp.ne.s32.totalorder %s211, %s212
      %p221 = scmp.eq.s32.totalorder %s33, 0
      %p222 = por %p220, %p221
      %p223 = scmp.ne.s32.totalorder %s211, %s212
      %p224 = scmp.eq.s32.totalorder %s34, 1
      %p225 = por %p223, %p224
      %p227 = scmp.ne.s32.totalorder %s212, %s226
      %p228 = scmp.eq.s32.totalorder %s34, 0
      %p229 = por %p227, %p228
      %s231 = sadd.s32 %s230, 1
      %p234 = scmp.eq.s32.totalorder %s28, 1
      %p235 = scmp.ne.s32.totalorder %s230, %s232
      %p236 = scmp.eq.s32.totalorder %s28, 0
      %p237 = por %p235, %p236
      %p238 = scmp.ne.s32.totalorder %s230, %s232
      %p239 = scmp.eq.s32.totalorder %s33, 1
      %p240 = por %p238, %p239
      %p241 = scmp.ne.s32.totalorder %s232, %s233
      %p242 = scmp.eq.s32.totalorder %s33, 0
      %p243 = por %p241, %p242
      %p244 = scmp.ne.s32.totalorder %s232, %s233
      %p245 = scmp.eq.s32.totalorder %s34, 1
      %p246 = por %p244, %p245
      %p248 = scmp.ne.s32.totalorder %s233, %s247
      %p249 = scmp.eq.s32.totalorder %s34, 0
      %p250 = por %p248, %p249
      %s252 = sadd.s32 %s251, 1
      %p255 = scmp.eq.s32.totalorder %s28, 1
      %p256 = scmp.ne.s32.totalorder %s251, %s253
      %p257 = scmp.eq.s32.totalorder %s28, 0
      %p258 = por %p256, %p257
      %p259 = scmp.ne.s32.totalorder %s251, %s253
      %p260 = scmp.eq.s32.totalorder %s33, 1
      %p261 = por %p259, %p260
      %p262 = scmp.ne.s32.totalorder %s253, %s254
      %p263 = scmp.eq.s32.totalorder %s33, 0
      %p264 = por %p262, %p263
      %p265 = scmp.ne.s32.totalorder %s253, %s254
      %p266 = scmp.eq.s32.totalorder %s34, 1
      %p267 = por %p265, %p266
      %p269 = scmp.ne.s32.totalorder %s254, %s268
      %p270 = scmp.eq.s32.totalorder %s34, 0
      %p271 = por %p269, %p270
      %s273 = sadd.s32 %s272, 1
      %p276 = scmp.eq.s32.totalorder %s28, 1
      %p277 = scmp.ne.s32.totalorder %s272, %s274
      %p278 = scmp.eq.s32.totalorder %s28, 0
      %p279 = por %p277, %p278
      %p280 = scmp.ne.s32.totalorder %s272, %s274
      %p281 = scmp.eq.s32.totalorder %s33, 1
      %p282 = por %p280, %p281
      %p283 = scmp.ne.s32.totalorder %s274, %s275
      %p284 = scmp.eq.s32.totalorder %s33, 0
      %p285 = por %p283, %p284
      %p286 = scmp.ne.s32.totalorder %s274, %s275
      %p287 = scmp.eq.s32.totalorder %s34, 1
      %p288 = por %p286, %p287
      %p290 = scmp.ne.s32.totalorder %s275, %s289
      %p291 = scmp.eq.s32.totalorder %s34, 0
      %p292 = por %p290, %p291
      %s294 = sadd.s32 %s293, 1
      %p297 = scmp.eq.s32.totalorder %s28, 1
      %p298 = scmp.ne.s32.totalorder %s293, %s295
      %p299 = scmp.eq.s32.totalorder %s28, 0
      %p300 = por %p298, %p299
      %p301 = scmp.ne.s32.totalorder %s293, %s295
      %p302 = scmp.eq.s32.totalorder %s33, 1
      %p303 = por %p301, %p302
      %p304 = scmp.ne.s32.totalorder %s295, %s296
      %p305 = scmp.eq.s32.totalorder %s33, 0
      %p306 = por %p304, %p305
      %p307 = scmp.ne.s32.totalorder %s295, %s296
      %p308 = scmp.eq.s32.totalorder %s34, 1
      %p309 = por %p307, %p308
      %p311 = scmp.ne.s32.totalorder %s296, %s310
      %p312 = scmp.eq.s32.totalorder %s34, 0
      %p313 = por %p311, %p312
      %s314 = ssub.s32 %s28, %s35
      %p315 = scmp.eq.s32.totalorder %s314, 0
      %s317 = sadd.s32 %s316, 1
      %s318 = scalar_select %p315, %s316, %s317
      %p321 = pneg %p315
      %p322 = scmp.eq.s32.totalorder %s28, 1
      %p323 = por %p321, %p322
      %p324 = scmp.ne.s32.totalorder %s316, %s319
      %p325 = scmp.eq.s32.totalorder %s28, 0
      %p326 = por %p324, %p325
      %p327 = scmp.ne.s32.totalorder %s316, %s319
      %p328 = scmp.eq.s32.totalorder %s33, 1
      %p329 = por %p327, %p328
      %p330 = scmp.ne.s32.totalorder %s319, %s320
      %p331 = scmp.eq.s32.totalorder %s33, 0
      %p332 = por %p330, %p331
      %p333 = scmp.ne.s32.totalorder %s319, %s320
      %p334 = scmp.eq.s32.totalorder %s34, 1
      %p335 = por %p333, %p334
      %p337 = scmp.ne.s32.totalorder %s320, %s336
      %p338 = scmp.eq.s32.totalorder %s34, 0
      %p339 = por %p337, %p338
      %s340 = ssub.s32 %s28, %s35
      %p341 = scmp.eq.s32.totalorder %s340, 0
      %s343 = sadd.s32 %s342, 1
      %s344 = scalar_select %p341, %s342, %s343
      %p347 = pneg %p341
      %p348 = scmp.eq.s32.totalorder %s28, 1
      %p349 = por %p347, %p348
      %p350 = scmp.ne.s32.totalorder %s342, %s345
      %p351 = scmp.eq.s32.totalorder %s28, 0
      %p352 = por %p350, %p351
      %p353 = scmp.ne.s32.totalorder %s342, %s345
      %p354 = scmp.eq.s32.totalorder %s33, 1
      %p355 = por %p353, %p354
      %p356 = scmp.ne.s32.totalorder %s345, %s346
      %p357 = scmp.eq.s32.totalorder %s33, 0
      %p358 = por %p356, %p357
      %p359 = scmp.ne.s32.totalorder %s345, %s346
      %p360 = scmp.eq.s32.totalorder %s34, 1
      %p361 = por %p359, %p360
      %p363 = scmp.ne.s32.totalorder %s346, %s362
      %p364 = scmp.eq.s32.totalorder %s34, 0
      %p365 = por %p363, %p364
      %p366 = scmp.le.s32.totalorder 1, %s28
      %p367 = scmp.lt.s32.totalorder %s28, 3
      %p368 = pnand %p366, %p367
      %p369 = pneg %p368
      // Predicated region
      $region9: #{tpu_custom_call.1} parent=5 // pred_check
        _
      $region10: #{tpu_custom_call.1} parent=5 // pred_check_branch
        %371 = sbr.rel (%p368) target = $region12
      $region11: #{tpu_custom_call.1} parent=5 // pred_region
        %s372 = ssub.s32 %s28, 1
        // Predicated region
        $region13: #{tpu_custom_call.1} parent=11 // pred_check
          %p373 = pneg %p75
        $region14: #{tpu_custom_call.1} parent=11 // pred_check_branch
          %375 = sbr.rel (%p373) target = $region16
        $region15: #{tpu_custom_call.1} parent=11 // pred_region
          _
        $region16: #{tpu_custom_call.1} parent=11 // pred_fallthru
          _
        // Predicated region
        $region17: #{tpu_custom_call.1} parent=11 // pred_check
          %p376 = pneg %p96
        $region18: #{tpu_custom_call.1} parent=11 // pred_check_branch
          %378 = sbr.rel (%p376) target = $region20
        $region19: #{tpu_custom_call.1} parent=11 // pred_region
          _
        $region20: #{tpu_custom_call.1} parent=11 // pred_fallthru
          _
        // Predicated region
        $region21: #{tpu_custom_call.1} parent=11 // pred_check
          %p379 = pneg %p117
        $region22: #{tpu_custom_call.1} parent=11 // pred_check_branch
          %381 = sbr.rel (%p379) target = $region24
        $region23: #{tpu_custom_call.1} parent=11 // pred_region
          _
        $region24: #{tpu_custom_call.1} parent=11 // pred_fallthru
          _
        // Predicated region
        $region25: #{tpu_custom_call.1} parent=11 // pred_check
          %p382 = pneg %p138
        $region26: #{tpu_custom_call.1} parent=11 // pred_check_branch
          %384 = sbr.rel (%p382) target = $region28
        $region27: #{tpu_custom_call.1} parent=11 // pred_region
          _
        $region28: #{tpu_custom_call.1} parent=11 // pred_fallthru
          _
        // Predicated region
        $region29: #{tpu_custom_call.1} parent=11 // pred_check
          %p385 = pneg %p159
        $region30: #{tpu_custom_call.1} parent=11 // pred_check_branch
          %387 = sbr.rel (%p385) target = $region32
        $region31: #{tpu_custom_call.1} parent=11 // pred_region
          _
        $region32: #{tpu_custom_call.1} parent=11 // pred_fallthru
          _
        // Predicated region
        $region33: #{tpu_custom_call.1} parent=11 // pred_check
          %p388 = pneg %p180
        $region34: #{tpu_custom_call.1} parent=11 // pred_check_branch
          %390 = sbr.rel (%p388) target = $region36
        $region35: #{tpu_custom_call.1} parent=11 // pred_region
          _
        $region36: #{tpu_custom_call.1} parent=11 // pred_fallthru
          _
        // Predicated region
        $region37: #{tpu_custom_call.1} parent=11 // pred_check
          %p391 = pneg %p201
        $region38: #{tpu_custom_call.1} parent=11 // pred_check_branch
          %393 = sbr.rel (%p391) target = $region40
        $region39: #{tpu_custom_call.1} parent=11 // pred_region
          _
        $region40: #{tpu_custom_call.1} parent=11 // pred_fallthru
          _
        // Predicated region
        $region41: #{tpu_custom_call.1} parent=11 // pred_check
          %p394 = pneg %p222
        $region42: #{tpu_custom_call.1} parent=11 // pred_check_branch
          %396 = sbr.rel (%p394) target = $region44
        $region43: #{tpu_custom_call.1} parent=11 // pred_region
          _
        $region44: #{tpu_custom_call.1} parent=11 // pred_fallthru
          _
        // Predicated region
        $region45: #{tpu_custom_call.1} parent=11 // pred_check
          %p397 = pneg %p243
        $region46: #{tpu_custom_call.1} parent=11 // pred_check_branch
          %399 = sbr.rel (%p397) target = $region48
        $region47: #{tpu_custom_call.1} parent=11 // pred_region
          _
        $region48: #{tpu_custom_call.1} parent=11 // pred_fallthru
          _
        // Predicated region
        $region49: #{tpu_custom_call.1} parent=11 // pred_check
          %p400 = pneg %p264
        $region50: #{tpu_custom_call.1} parent=11 // pred_check_branch
          %402 = sbr.rel (%p400) target = $region52
        $region51: #{tpu_custom_call.1} parent=11 // pred_region
          _
        $region52: #{tpu_custom_call.1} parent=11 // pred_fallthru
          _
        // Predicated region
        $region53: #{tpu_custom_call.1} parent=11 // pred_check
          %p403 = pneg %p285
        $region54: #{tpu_custom_call.1} parent=11 // pred_check_branch
          %405 = sbr.rel (%p403) target = $region56
        $region55: #{tpu_custom_call.1} parent=11 // pred_region
          %s407 = ssub.s32 4096, 4096
          %408 = vsyncadd [#allocation3], %s407
          %s409 = sshll.u32 [#allocation2], 4
          %s410 = int_to_ptr.vmem [resolvable:$true] %s409
          %415 = dma.hbm_to_vmem [thread:$0]  %s11, 4096, %s410, [#allocation3], 128, 128, 8
        $region56: #{tpu_custom_call.1} parent=11 // pred_fallthru
          _
        // Predicated region
        $region57: #{tpu_custom_call.1} parent=11 // pred_check
          %p416 = pneg %p306
        $region58: #{tpu_custom_call.1} parent=11 // pred_check_branch
          %418 = sbr.rel (%p416) target = $region60
        $region59: #{tpu_custom_call.1} parent=11 // pred_region
          _
        $region60: #{tpu_custom_call.1} parent=11 // pred_fallthru
          _
      $region12: #{tpu_custom_call.1} parent=5 // pred_fallthru
        _
      %p419 = scmp.lt.s32.totalorder %s28, 2
      // Predicated region
      $region61: #{tpu_custom_call.1} parent=5 // pred_check
        %p420 = pneg %p419
      $region62: #{tpu_custom_call.1} parent=5 // pred_check_branch
        %422 = sbr.rel (%p420) target = $region64
      $region63: #{tpu_custom_call.1} parent=5 // pred_region
        // Predicated region
        $region65: #{tpu_custom_call.1} parent=63 // pred_check
          %p423 = pneg %p48
        $region66: #{tpu_custom_call.1} parent=63 // pred_check_branch
          %425 = sbr.rel (%p423) target = $region68
        $region67: #{tpu_custom_call.1} parent=63 // pred_region
          %p426 = scmp.lt.s32.totalorder %s28, 1
          %s427 = scalar_select %p426, %s28, 1
          %s428 = smul.addr %s427, 8
          %s429 = smul.addr %s428, 8
          %s430 = scalar_lea.vmem %s0, %s429
        $region68: #{tpu_custom_call.1} parent=63 // pred_fallthru
          _
      $region64: #{tpu_custom_call.1} parent=5 // pred_fallthru
        _
      %p431 = scmp.le.s32.totalorder 1, %s28
      %p432 = scmp.lt.s32.totalorder %s28, 3
      %p433 = pnand %p431, %p432
      %p434 = pneg %p433
      // Predicated region
      $region69: #{tpu_custom_call.1} parent=5 // pred_check
        _
      $region70: #{tpu_custom_call.1} parent=5 // pred_check_branch
        %436 = sbr.rel (%p433) target = $region72
      $region71: #{tpu_custom_call.1} parent=5 // pred_region
        %s437 = ssub.s32 %s28, 1
        // Predicated region
        $region73: #{tpu_custom_call.1} parent=71 // pred_check
          %p438 = pneg %p285
        $region74: #{tpu_custom_call.1} parent=71 // pred_check_branch
          %440 = sbr.rel (%p438) target = $region76
        $region75: #{tpu_custom_call.1} parent=71 // pred_region
          %441 = dma.done [#allocation3], 4096
        $region76: #{tpu_custom_call.1} parent=71 // pred_fallthru
          _
        %p442 = scmp.lt.s32.totalorder %s33, 1
        %s443 = scalar_select %p442, %s33, 1
        %s444 = smul.addr %s443, 8
        %s445 = smul.addr %s444, 8
        %s446 = scalar_lea.vmem %s0, %s445
        %p447 = pneg %p54
        %p448 = pneg %p51
        %p449 = pneg %p75
        %p450 = pneg %p72
        %p451 = pneg %p96
        %p452 = pneg %p93
        %p453 = pneg %p117
        %p454 = pneg %p114
        %p455 = pneg %p138
        %p456 = pneg %p135
        %p457 = pneg %p159
        %p458 = pneg %p156
        %p459 = pneg %p180
        %p460 = pneg %p177
        %p461 = pneg %p201
        %p462 = pneg %p198
        %p463 = pneg %p222
        %p464 = pneg %p219
        %p465 = pneg %p243
        %p466 = pneg %p240
        %p467 = pneg %p264
        %p468 = pneg %p261
        %p469 = pneg %p285
        %p470 = pneg %p282
        %p471 = pneg %p306
        %p472 = pneg %p303
        %p473 = pneg %p332
        %p474 = pneg %p329
        %s475 = sand.u32 %s319, 1
        %s476 = scalar_lea.sflag [#allocation4], %s475
        %s477 = sand.u32 %s319, 1
        %s478 = smul.addr %s477, 64
        %s479 = scalar_lea.vmem [#allocation5], %s478
        %p480 = pneg %p358
        %p481 = pneg %p355
        %s482 = sand.u32 %s345, 1
        %s483 = scalar_lea.sflag [#allocation7], %s482
        %s484 = sand.u32 %s345, 1
        %s485 = smul.addr %s484, 32
        %s486 = scalar_lea.vmem [#allocation6], %s485
        %p487 = scmp.lt.s32.totalorder %s33, 1
        %s488 = scalar_select %p487, %s33, 1
        %s489 = smul.addr %s488, 8
        %s490 = smul.addr %s489, 8
        %s491 = scalar_lea.vmem %s0, %s490
        %v493 = vld [vmem:[%s491] sm:$0xff]
        %v494 = vld [vmem:[%s491 + $0x8] sm:$0xff]
        %v495 = vld [vmem:[%s491 + $0x10] sm:$0xff]
        %v496 = vld [vmem:[%s491 + $0x18] sm:$0xff]
        %v497 = vld [vmem:[%s491 + $0x20] sm:$0xff]
        %v498 = vld [vmem:[%s491 + $0x28] sm:$0xff]
        %v499 = vld [vmem:[%s491 + $0x30] sm:$0xff]
        %v500 = vld [vmem:[%s491 + $0x38] sm:$0xff]
        %v501 = vld [vmem:[%s1] sm:$0x3]
        %v502 = vld [vmem:[%s2] sm:$0x3]
        %v503 = vadd.f32 %v493, %v494
        %504 = vadd.xlane.f32.xlu0 %v503
        %v505 = vpop.xlane.xlu0 %504
        %v506 = vadd.f32 %v495, %v496
        %507 = vadd.xlane.f32.xlu0 %v506
        %v508 = vpop.xlane.xlu0 %507
        %v509 = vadd.f32 %v497, %v498
        %510 = vadd.xlane.f32.xlu0 %v509
        %v511 = vpop.xlane.xlu0 %510
        %v512 = vadd.f32 %v499, %v500
        %513 = vadd.xlane.f32.xlu0 %v512
        %v514 = vpop.xlane.xlu0 %513
        %v515 = vrcp.pop 256.0
        %v516 = vmul.f32 %v505, %v515
        %v517 = vmul.f32 %v508, %v515
        %v518 = vmul.f32 %v511, %v515
        %v519 = vmul.f32 %v514, %v515
        %v520 = vsub.f32 %v493, %v516
        %v521 = vsub.f32 %v494, %v516
        %v522 = vsub.f32 %v495, %v517
        %v523 = vsub.f32 %v496, %v517
        %v524 = vsub.f32 %v497, %v518
        %v525 = vsub.f32 %v498, %v518
        %v526 = vsub.f32 %v499, %v519
        %v527 = vsub.f32 %v500, %v519
        %v528 = vmul.f32 %v520, %v520
        %v529 = vmul.f32 %v521, %v521
        %v530 = vmul.f32 %v522, %v522
        %v531 = vmul.f32 %v523, %v523
        %v532 = vmul.f32 %v524, %v524
        %v533 = vmul.f32 %v525, %v525
        %v534 = vmul.f32 %v526, %v526
        %v535 = vmul.f32 %v527, %v527
        %v536 = vadd.f32 %v528, %v529
        %537 = vadd.xlane.f32.xlu0 %v536
        %v538 = vpop.xlane.xlu0 %537
        %v539 = vadd.f32 %v530, %v531
        %540 = vadd.xlane.f32.xlu0 %v539
        %v541 = vpop.xlane.xlu0 %540
        %v542 = vadd.f32 %v532, %v533
        %543 = vadd.xlane.f32.xlu0 %v542
        %v544 = vpop.xlane.xlu0 %543
        %v545 = vadd.f32 %v534, %v535
        %546 = vadd.xlane.f32.xlu0 %v545
        %v547 = vpop.xlane.xlu0 %546
        %v548 = vmul.f32 %v538, %v515
        %v549 = vmul.f32 %v541, %v515
        %v550 = vmul.f32 %v544, %v515
        %v551 = vmul.f32 %v547, %v515
        %v552 = vadd.f32 %v548, 1e-05
        %v553 = vadd.f32 %v549, 1e-05
        %v554 = vadd.f32 %v550, 1e-05
        %v555 = vadd.f32 %v551, 1e-05
        %v556 = vrsqrt.pop %v552
        %v557 = vrsqrt.pop %v553
        %v558 = vrsqrt.pop %v554
        %v559 = vrsqrt.pop %v555
        %v560 = vmul.f32 %v520, %v556
        %v561 = vmul.f32 %v521, %v556
        %v562 = vmul.f32 %v522, %v557
        %v563 = vmul.f32 %v523, %v557
        %v564 = vmul.f32 %v524, %v558
        %v565 = vmul.f32 %v525, %v558
        %v566 = vmul.f32 %v526, %v559
        %v567 = vmul.f32 %v527, %v559
        %v569 = vlaneseq
        %v570 = vshrl.u32 %v569, 7
        %v571 = vsub.s32 0, %v570
        %v572 = vrot.slane %v501, %v571
        %v573 = vlaneseq
        %v574 = vshrl.u32 %v573, 7
        %v575 = vsub.s32 1, %v574
        %v576 = vrot.slane %v501, %v575
        %v579 = vmul.f32 %v560, %v572
        %v580 = vmul.f32 %v561, %v576
        %v581 = vmul.f32 %v562, %v572
        %v582 = vmul.f32 %v563, %v576
        %v583 = vmul.f32 %v564, %v572
        %v584 = vmul.f32 %v565, %v576
        %v585 = vmul.f32 %v566, %v572
        %v586 = vmul.f32 %v567, %v576
        %v588 = vlaneseq
        %v589 = vshrl.u32 %v588, 7
        %v590 = vsub.s32 0, %v589
        %v591 = vrot.slane %v502, %v590
        %v592 = vlaneseq
        %v593 = vshrl.u32 %v592, 7
        %v594 = vsub.s32 1, %v593
        %v595 = vrot.slane %v502, %v594
        %v598 = vadd.f32 %v579, %v591
        %v599 = vadd.f32 %v580, %v595
        %v600 = vadd.f32 %v581, %v591
        %v601 = vadd.f32 %v582, %v595
        %v602 = vadd.f32 %v583, %v591
        %v603 = vadd.f32 %v584, %v595
        %v604 = vadd.f32 %v585, %v591
        %v605 = vadd.f32 %v586, %v595
        %v606 = vpack.c.bf16 %v600, %v598
        %v607 = vpack.c.bf16 %v601, %v599
        %v608 = vpack.c.bf16 %v604, %v602
        %v609 = vpack.c.bf16 %v605, %v603
        %v610 = vld [vmem:[%s3] sm:$0xff]
        %v611 = vld [vmem:[%s3 + $0x8] sm:$0xff]
        %v612 = vld [vmem:[%s3 + $0x10] sm:$0xff]
        %v613 = vld [vmem:[%s3 + $0x18] sm:$0xff]
        %v614 = vld [vmem:[%s3 + $0x20] sm:$0xff]
        %v615 = vld [vmem:[%s3 + $0x28] sm:$0xff]
        %v616 = vld [vmem:[%s3 + $0x30] sm:$0xff]
        %v617 = vld [vmem:[%s3 + $0x38] sm:$0xff]
        %v618 = vld [vmem:[%s3 + $0x40] sm:$0xff]
        %v619 = vld [vmem:[%s3 + $0x48] sm:$0xff]
        %v620 = vld [vmem:[%s3 + $0x50] sm:$0xff]
        %v621 = vld [vmem:[%s3 + $0x58] sm:$0xff]
        %v622 = vld [vmem:[%s3 + $0x60] sm:$0xff]
        %v623 = vld [vmem:[%s3 + $0x68] sm:$0xff]
        %v624 = vld [vmem:[%s3 + $0x70] sm:$0xff]
        %v625 = vld [vmem:[%s3 + $0x78] sm:$0xff]
        %v626 = vld [vmem:[%s3 + $0x80] sm:$0xff]
        %v627 = vld [vmem:[%s3 + $0x88] sm:$0xff]
        %v628 = vld [vmem:[%s3 + $0x90] sm:$0xff]
        %v629 = vld [vmem:[%s3 + $0x98] sm:$0xff]
        %v630 = vld [vmem:[%s3 + $0xa0] sm:$0xff]
        %v631 = vld [vmem:[%s3 + $0xa8] sm:$0xff]
        %v632 = vld [vmem:[%s3 + $0xb0] sm:$0xff]
        %v633 = vld [vmem:[%s3 + $0xb8] sm:$0xff]
        %v634 = vld [vmem:[%s3 + $0xc0] sm:$0xff]
        %v635 = vld [vmem:[%s3 + $0xc8] sm:$0xff]
        %v636 = vld [vmem:[%s3 + $0xd0] sm:$0xff]
        %v637 = vld [vmem:[%s3 + $0xd8] sm:$0xff]
        %v638 = vld [vmem:[%s3 + $0xe0] sm:$0xff]
        %v639 = vld [vmem:[%s3 + $0xe8] sm:$0xff]
        %v640 = vld [vmem:[%s3 + $0xf0] sm:$0xff]
        %v641 = vld [vmem:[%s3 + $0xf8] sm:$0xff]
        %v642 = vld [vmem:[%s4] sm:$0x3]
        %v644 = vlaneseq
        %v645 = vshrl.u32 %v644, 7
        %v646 = vsub.s32 0, %v645
        %v647 = vrot.slane %v642, %v646
        %v648 = vlaneseq
        %v649 = vshrl.u32 %v648, 7
        %v650 = vsub.s32 1, %v649
        %v651 = vrot.slane %v642, %v650
        %v686 = vunpack.c.l.b16 %v610
        %v687 = vunpack.c.h.b16 %v610
        %v688 = vunpack.c.l.b16 %v611
        %v689 = vunpack.c.h.b16 %v611
        %v690 = vunpack.c.l.b16 %v612
        %v691 = vunpack.c.h.b16 %v612
        %v692 = vunpack.c.l.b16 %v613
        %v693 = vunpack.c.h.b16 %v613
        %v694 = vunpack.c.l.b16 %v614
        %v695 = vunpack.c.h.b16 %v614
        %v696 = vunpack.c.l.b16 %v615
        %v697 = vunpack.c.h.b16 %v615
        %v698 = vunpack.c.l.b16 %v616
        %v699 = vunpack.c.h.b16 %v616
        %v700 = vunpack.c.l.b16 %v617
        %v701 = vunpack.c.h.b16 %v617
        %v702 = vunpack.c.l.b16 %v618
        %v703 = vunpack.c.h.b16 %v618
        %v704 = vunpack.c.l.b16 %v619
        %v705 = vunpack.c.h.b16 %v619
        %v706 = vunpack.c.l.b16 %v620
        %v707 = vunpack.c.h.b16 %v620
        %v708 = vunpack.c.l.b16 %v621
        %v709 = vunpack.c.h.b16 %v621
        %v710 = vunpack.c.l.b16 %v622
        %v711 = vunpack.c.h.b16 %v622
        %v712 = vunpack.c.l.b16 %v623
        %v713 = vunpack.c.h.b16 %v623
        %v714 = vunpack.c.l.b16 %v624
        %v715 = vunpack.c.h.b16 %v624
        %v716 = vunpack.c.l.b16 %v625
        %v717 = vunpack.c.h.b16 %v625
        %v718 = vunpack.c.l.b16 %v626
        %v719 = vunpack.c.h.b16 %v626
        %v720 = vunpack.c.l.b16 %v627
        %v721 = vunpack.c.h.b16 %v627
        %v722 = vunpack.c.l.b16 %v628
        %v723 = vunpack.c.h.b16 %v628
        %v724 = vunpack.c.l.b16 %v629
        %v725 = vunpack.c.h.b16 %v629
        %v726 = vunpack.c.l.b16 %v630
        %v727 = vunpack.c.h.b16 %v630
        %v728 = vunpack.c.l.b16 %v631
        %v729 = vunpack.c.h.b16 %v631
        %v730 = vunpack.c.l.b16 %v632
        %v731 = vunpack.c.h.b16 %v632
        %v732 = vunpack.c.l.b16 %v633
        %v733 = vunpack.c.h.b16 %v633
        %v734 = vunpack.c.l.b16 %v634
        %v735 = vunpack.c.h.b16 %v634
        %v736 = vunpack.c.l.b16 %v635
        %v737 = vunpack.c.h.b16 %v635
        %v738 = vunpack.c.l.b16 %v636
        %v739 = vunpack.c.h.b16 %v636
        %v740 = vunpack.c.l.b16 %v637
        %v741 = vunpack.c.h.b16 %v637
        %v742 = vunpack.c.l.b16 %v638
        %v743 = vunpack.c.h.b16 %v638
        %v744 = vunpack.c.l.b16 %v639
        %v745 = vunpack.c.h.b16 %v639
        %v746 = vunpack.c.l.b16 %v640
        %v747 = vunpack.c.h.b16 %v640
        %v748 = vunpack.c.l.b16 %v641
        %v749 = vunpack.c.h.b16 %v641
        %v750 = vpack.c.b16 %v688, %v686
        %v751 = vpack.c.b16 %v689, %v687
        %v752 = vpack.c.b16 %v692, %v690
        %v753 = vpack.c.b16 %v693, %v691
        %v754 = vpack.c.b16 %v696, %v694
        %v755 = vpack.c.b16 %v697, %v695
        %v756 = vpack.c.b16 %v700, %v698
        %v757 = vpack.c.b16 %v701, %v699
        %v758 = vpack.c.b16 %v704, %v702
        %v759 = vpack.c.b16 %v705, %v703
        %v760 = vpack.c.b16 %v708, %v706
        %v761 = vpack.c.b16 %v709, %v707
        %v762 = vpack.c.b16 %v712, %v710
        %v763 = vpack.c.b16 %v713, %v711
        %v764 = vpack.c.b16 %v716, %v714
        %v765 = vpack.c.b16 %v717, %v715
        %v766 = vpack.c.b16 %v720, %v718
        %v767 = vpack.c.b16 %v721, %v719
        %v768 = vpack.c.b16 %v724, %v722
        %v769 = vpack.c.b16 %v725, %v723
        %v770 = vpack.c.b16 %v728, %v726
        %v771 = vpack.c.b16 %v729, %v727
        %v772 = vpack.c.b16 %v732, %v730
        %v773 = vpack.c.b16 %v733, %v731
        %v774 = vpack.c.b16 %v736, %v734
        %v775 = vpack.c.b16 %v737, %v735
        %v776 = vpack.c.b16 %v740, %v738
        %v777 = vpack.c.b16 %v741, %v739
        %v778 = vpack.c.b16 %v744, %v742
        %v779 = vpack.c.b16 %v745, %v743
        %v780 = vpack.c.b16 %v748, %v746
        %v781 = vpack.c.b16 %v749, %v747
        %814 = vmatprep.subr.bf16.mxu0 %v751
        %815 = vmatpush1.bf16.msra.mxu0 %v750
        %816 = vmatprep.subr.bf16.mxu0 %v753
        %817 = vmatpush1.bf16.msra.mxu0 %v752
        %818 = vmatprep.subr.bf16.mxu0 %v755
        %819 = vmatpush1.bf16.msra.mxu0 %v754
        %820 = vmatprep.subr.bf16.mxu0 %v757
        %821 = vmatpush1.bf16.msra.mxu0 %v756
        %822 = vmatprep.subr.bf16.mxu0 %v759
        %823 = vmatpush1.bf16.msra.mxu0 %v758
        %824 = vmatprep.subr.bf16.mxu0 %v761
        %825 = vmatpush1.bf16.msra.mxu0 %v760
        %826 = vmatprep.subr.bf16.mxu0 %v763
        %827 = vmatpush1.bf16.msra.mxu0 %v762
        %828 = vmatprep.subr.bf16.mxu0 %v765
        %829 = vmatpush1.bf16.msra.mxu0 %v764
        %830 = vmatprep.subr.bf16.mxu0 %v767
        %831 = vmatpush1.bf16.msra.mxu0 %v766
        %832 = vmatprep.subr.bf16.mxu0 %v769
        %833 = vmatpush1.bf16.msra.mxu0 %v768
        %834 = vmatprep.subr.bf16.mxu0 %v771
        %835 = vmatpush1.bf16.msra.mxu0 %v770
        %836 = vmatprep.subr.bf16.mxu0 %v773
        %837 = vmatpush1.bf16.msra.mxu0 %v772
        %838 = vmatprep.subr.bf16.mxu0 %v775
        %839 = vmatpush1.bf16.msra.mxu0 %v774
        %840 = vmatprep.subr.bf16.mxu0 %v777
        %841 = vmatpush1.bf16.msra.mxu0 %v776
        %842 = vmatprep.subr.bf16.mxu0 %v779
        %843 = vmatpush1.bf16.msra.mxu0 %v778
        %844 = vmatprep.subr.bf16.mxu0 %v781
        %845 = vmatpush1.bf16.msra.mxu0 %v780
        %846 = vmatprep.mubr.bf16.mxu0 %v607
        %847 = vmatmul.mubr.bf16.gmra.mrb[0].mxu0 %v606
        %v848 = vpop.f32.mrb[0].mxu0
        %v849 = vadd.f32 %v647, %v848
        %v850 = vpop.f32.mrb[0].mxu0
        %v851 = vadd.f32 %v651, %v850
        %v852 = vpop.f32.mrb[0].mxu0
        %v853 = vadd.f32 %v647, %v852
        %v854 = vpop.f32.mrb[0].mxu0
        %v855 = vadd.f32 %v651, %v854
        %856 = vmatprep.mubr.bf16.mxu0 %v609
        %857 = vmatmul.mubr.bf16.gmra.mrb[0].mxu0 %v608
        %v858 = vpop.f32.mrb[0].mxu0
        %v859 = vadd.f32 %v647, %v858
        %v860 = vpop.f32.mrb[0].mxu0
        %v861 = vadd.f32 %v651, %v860
        %v862 = vpop.f32.mrb[0].mxu0
        %v863 = vadd.f32 %v647, %v862
        %v864 = vpop.f32.mrb[0].mxu0
        %v865 = vadd.f32 %v651, %v864
        %866 = vdwg.mxu0
        %875 = vrot.lane.b32.xlu0 %v849, 64
        %v876 = vpop.permute.xlu0 %875
        %877 = vrot.lane.b32.xlu0 %v851, 64
        %v878 = vpop.permute.xlu0 %877
        %879 = vrot.lane.b32.xlu0 %v853, 64
        %v880 = vpop.permute.xlu0 %879
        %881 = vrot.lane.b32.xlu0 %v855, 64
        %v882 = vpop.permute.xlu0 %881
        %883 = vrot.lane.b32.xlu0 %v859, 64
        %v884 = vpop.permute.xlu0 %883
        %885 = vrot.lane.b32.xlu0 %v861, 64
        %v886 = vpop.permute.xlu0 %885
        %887 = vrot.lane.b32.xlu0 %v863, 64
        %v888 = vpop.permute.xlu0 %887
        %889 = vrot.lane.b32.xlu0 %v865, 64
        %v890 = vpop.permute.xlu0 %889
        %vm891 = vcmask 523264
        %v892 = vsel %vm891, %v876, %v878
        %v893 = vsel %vm891, %v880, %v882
        %v894 = vsel %vm891, %v884, %v886
        %v895 = vsel %vm891, %v888, %v890
        %900 = vst [vmem:[%s486] sm:$0xff] %v892
        %901 = vst [vmem:[%s486 + $0x8] sm:$0xff] %v893
        %902 = vst [vmem:[%s486 + $0x10] sm:$0xff] %v894
        %903 = vst [vmem:[%s486 + $0x18] sm:$0xff] %v895
        %904 = vrot.lane.b32.xlu0 %v849, 96
        %v905 = vpop.permute.xlu0 %904
        %906 = vrot.lane.b32.xlu0 %v853, 96
        %v907 = vpop.permute.xlu0 %906
        %908 = vrot.lane.b32.xlu0 %v859, 96
        %v909 = vpop.permute.xlu0 %908
        %910 = vrot.lane.b32.xlu0 %v863, 96
        %v911 = vpop.permute.xlu0 %910
        %v916 = vpack.c.bf16 %v853, %v849
        %v917 = vpack.c.bf16 %v863, %v859
        %v918 = vpack.c.bf16 %v907, %v905
        %v919 = vpack.c.bf16 %v911, %v909
        %920 = vrot.lane.b32.xlu0 %v851, 96
        %v921 = vpop.permute.xlu0 %920
        %922 = vrot.lane.b32.xlu0 %v855, 96
        %v923 = vpop.permute.xlu0 %922
        %924 = vrot.lane.b32.xlu0 %v861, 96
        %v925 = vpop.permute.xlu0 %924
        %926 = vrot.lane.b32.xlu0 %v865, 96
        %v927 = vpop.permute.xlu0 %926
        %v932 = vpack.c.bf16 %v855, %v851
        %v933 = vpack.c.bf16 %v865, %v861
        %v934 = vpack.c.bf16 %v923, %v921
        %v935 = vpack.c.bf16 %v927, %v925
        %938 = vrot.lane.b32.xlu0 %v916, 64
        %v939 = vpop.permute.xlu0 %938
        %940 = vrot.lane.b32.xlu0 %v917, 64
        %v941 = vpop.permute.xlu0 %940
        %vm942 = vcmask 261120
        %v944 = vsel %vm942, %v916, 0
        %v947 = vsel %vm942, %v917, 0
        %v950 = vsel %vm942, %v939, 0
        %v953 = vsel %vm942, %v941, 0
        %955 = vmatprep.subr.bf16.mxu0 0
        %956 = vmatpush1.bf16.xpose.msra.mxu0 %v950
        %957 = vmatprep.subr.bf16.mxu0 0
        %958 = vmatpush1.bf16.xpose.msra.mxu0 %v953
        %959 = vmatprep.subr.bf16.mxu0 0
        %960 = vmatpush1.bf16.xpose.msra.mxu0 0
        %961 = vmatprep.subr.bf16.mxu0 0
        %962 = vmatpush1.bf16.xpose.msra.mxu0 0
        %963 = vmatprep.subr.bf16.mxu0 0
        %964 = vmatpush1.bf16.xpose.msra.mxu0 0
        %965 = vmatprep.subr.bf16.mxu0 0
        %966 = vmatpush1.bf16.xpose.msra.mxu0 0
        %967 = vmatprep.subr.bf16.mxu0 0
        %968 = vmatpush1.bf16.xpose.msra.mxu0 0
        %969 = vmatprep.subr.bf16.mxu0 0
        %970 = vmatpush1.bf16.xpose.msra.mxu0 0
        %971 = vmatprep.subr.bf16.mxu0 0
        %972 = vmatpush1.bf16.xpose.msra.mxu0 0
        %973 = vmatprep.subr.bf16.mxu0 0
        %974 = vmatpush1.bf16.xpose.msra.mxu0 0
        %975 = vmatprep.subr.bf16.mxu0 0
        %976 = vmatpush1.bf16.xpose.msra.mxu0 0
        %977 = vmatprep.subr.bf16.mxu0 0
        %978 = vmatpush1.bf16.xpose.msra.mxu0 0
        %979 = vmatprep.subr.bf16.mxu0 0
        %980 = vmatpush1.bf16.xpose.msra.mxu0 0
        %981 = vmatprep.subr.bf16.mxu0 0
        %982 = vmatpush1.bf16.xpose.msra.mxu0 0
        %983 = vmatprep.subr.bf16.mxu0 0
        %984 = vmatpush1.bf16.xpose.msra.mxu0 0
        %985 = vmatprep.subr.bf16.mxu0 0
        %986 = vmatpush1.bf16.xpose.msra.mxu0 0
        %987 = vmatprep.mubr.bf16.mxu0 0
        %988 = vmatmul.mubr.bf16.gmra.mrb[0].mxu0 %v944
        %v989 = vpop.f32.mrb[0].mxu0
        %v990 = vadd.f32 0.0, %v989
        %v991 = vpop.f32.mrb[0].mxu0
        %v992 = vpop.f32.mrb[0].mxu0
        %v993 = vadd.f32 0.0, %v992
        %v994 = vpop.f32.mrb[0].mxu0
        %995 = vmatprep.mubr.bf16.mxu0 0
        %996 = vmatmul.mubr.bf16.gmra.mrb[0].mxu0 %v947
        %v997 = vpop.f32.mrb[0].mxu0
        %v998 = vadd.f32 0.0, %v997
        %v999 = vpop.f32.mrb[0].mxu0
        %v1000 = vpop.f32.mrb[0].mxu0
        %v1001 = vadd.f32 0.0, %v1000
        %v1002 = vpop.f32.mrb[0].mxu0
        %1003 = vdwg.mxu0
        %1006 = vrot.lane.b32.xlu0 %v918, 64
        %v1007 = vpop.permute.xlu0 %1006
        %1008 = vrot.lane.b32.xlu0 %v919, 64
        %v1009 = vpop.permute.xlu0 %1008
        %v1011 = vsel %vm942, %v918, 0
        %v1014 = vsel %vm942, %v919, 0
        %v1017 = vsel %vm942, %v1007, 0
        %v1020 = vsel %vm942, %v1009, 0
        %1022 = vmatprep.subr.bf16.mxu0 0
        %1023 = vmatpush1.bf16.xpose.msra.mxu0 %v1017
        %1024 = vmatprep.subr.bf16.mxu0 0
        %1025 = vmatpush1.bf16.xpose.msra.mxu0 %v1020
        %1026 = vmatprep.subr.bf16.mxu0 0
        %1027 = vmatpush1.bf16.xpose.msra.mxu0 0
        %1028 = vmatprep.subr.bf16.mxu0 0
        %1029 = vmatpush1.bf16.xpose.msra.mxu0 0
        %1030 = vmatprep.subr.bf16.mxu0 0
        %1031 = vmatpush1.bf16.xpose.msra.mxu0 0
        %1032 = vmatprep.subr.bf16.mxu0 0
        %1033 = vmatpush1.bf16.xpose.msra.mxu0 0
        %1034 = vmatprep.subr.bf16.mxu0 0
        %1035 = vmatpush1.bf16.xpose.msra.mxu0 0
        %1036 = vmatprep.subr.bf16.mxu0 0
        %1037 = vmatpush1.bf16.xpose.msra.mxu0 0
        %1038 = vmatprep.subr.bf16.mxu0 0
        %1039 = vmatpush1.bf16.xpose.msra.mxu0 0
        %1040 = vmatprep.subr.bf16.mxu0 0
        %1041 = vmatpush1.bf16.xpose.msra.mxu0 0
        %1042 = vmatprep.subr.bf16.mxu0 0
        %1043 = vmatpush1.bf16.xpose.msra.mxu0 0
        %1044 = vmatprep.subr.bf16.mxu0 0
        %1045 = vmatpush1.bf16.xpose.msra.mxu0 0
        %1046 = vmatprep.subr.bf16.mxu0 0
        %1047 = vmatpush1.bf16.xpose.msra.mxu0 0
        %1048 = vmatprep.subr.bf16.mxu0 0
        %1049 = vmatpush1.bf16.xpose.msra.mxu0 0
        %1050 = vmatprep.subr.bf16.mxu0 0
        %1051 = vmatpush1.bf16.xpose.msra.mxu0 0
        %1052 = vmatprep.subr.bf16.mxu0 0
        %1053 = vmatpush1.bf16.xpose.msra.mxu0 0
        %1054 = vmatprep.mubr.bf16.mxu0 0
        %1055 = vmatmul.mubr.bf16.gmra.mrb[0].mxu0 %v1011
        %v1056 = vpop.f32.mrb[0].mxu0
        %v1057 = vadd.f32 0.0, %v1056
        %v1058 = vpop.f32.mrb[0].mxu0
        %v1059 = vpop.f32.mrb[0].mxu0
        %v1060 = vadd.f32 0.0, %v1059
        %v1061 = vpop.f32.mrb[0].mxu0
        %1062 = vmatprep.mubr.bf16.mxu0 0
        %1063 = vmatmul.mubr.bf16.gmra.mrb[0].mxu0 %v1014
        %v1064 = vpop.f32.mrb[0].mxu0
        %v1065 = vadd.f32 0.0, %v1064
        %v1066 = vpop.f32.mrb[0].mxu0
        %v1067 = vpop.f32.mrb[0].mxu0
        %v1068 = vadd.f32 0.0, %v1067
        %v1069 = vpop.f32.mrb[0].mxu0
        %1070 = vdwg.mxu0
        %v1071 = vmul.f32 %v990, 0.17677669
        %v1072 = vmul.f32 %v993, 0.17677669
        %v1073 = vmul.f32 %v998, 0.17677669
        %v1074 = vmul.f32 %v1001, 0.17677669
        %v1075 = vmul.f32 %v1057, 0.17677669
        %v1076 = vmul.f32 %v1060, 0.17677669
        %v1077 = vmul.f32 %v1065, 0.17677669
        %v1078 = vmul.f32 %v1068, 0.17677669
        %v1079 = vlaneseq
        %v1080 = vshrl.u32 %v1079, 7
        %v1081 = vadd.s32 %v1080, 8
        %v1082 = vadd.s32 %v1080, 16
        %v1083 = vadd.s32 %v1080, 24
        %v1084 = vlaneseq
        %v1085 = vand.u32 %v1084, 127
        %vm1086 = vcmp.ge.s32.totalorder %v1080, %v1085
        %vm1087 = vcmp.ge.s32.totalorder %v1081, %v1085
        %vm1088 = vcmp.ge.s32.totalorder %v1082, %v1085
        %vm1089 = vcmp.ge.s32.totalorder %v1083, %v1085
        %v1090 = vsel %vm1086, 1, 0
        %v1091 = vsel %vm1087, 1, 0
        %v1092 = vsel %vm1088, 1, 0
        %v1093 = vsel %vm1089, 1, 0
        %vm1094 = vcmp.eq.s32.totalorder %v1090, 1
        %vm1095 = vcmp.eq.s32.totalorder %v1091, 1
        %vm1096 = vcmp.eq.s32.totalorder %v1092, 1
        %vm1097 = vcmp.eq.s32.totalorder %v1093, 1
        %v1098 = vsel %vm1094, %v1071, -1e+30
        %v1099 = vsel %vm1095, %v1072, -1e+30
        %v1100 = vsel %vm1096, %v1073, -1e+30
        %v1101 = vsel %vm1097, %v1074, -1e+30
        %v1102 = vsel %vm1094, %v1075, -1e+30
        %v1103 = vsel %vm1095, %v1076, -1e+30
        %v1104 = vsel %vm1096, %v1077, -1e+30
        %v1105 = vsel %vm1097, %v1078, -1e+30
        %v1106 = vsel %vm942, %v1098, -inf
        %1107 = vmax.xlane.f32.xlu0 %v1106
        %v1108 = vpop.xlane.xlu0 %1107
        %v1109 = vsel %vm942, %v1099, -inf
        %1110 = vmax.xlane.f32.xlu0 %v1109
        %v1111 = vpop.xlane.xlu0 %1110
        %v1112 = vsel %vm942, %v1100, -inf
        %1113 = vmax.xlane.f32.xlu0 %v1112
        %v1114 = vpop.xlane.xlu0 %1113
        %v1115 = vsel %vm942, %v1101, -inf
        %1116 = vmax.xlane.f32.xlu0 %v1115
        %v1117 = vpop.xlane.xlu0 %1116
        %v1118 = vsel %vm942, %v1102, -inf
        %1119 = vmax.xlane.f32.xlu0 %v1118
        %v1120 = vpop.xlane.xlu0 %1119
        %v1121 = vsel %vm942, %v1103, -inf
        %1122 = vmax.xlane.f32.xlu0 %v1121
        %v1123 = vpop.xlane.xlu0 %1122
        %v1124 = vsel %vm942, %v1104, -inf
        %1125 = vmax.xlane.f32.xlu0 %v1124
        %v1126 = vpop.xlane.xlu0 %1125
        %v1127 = vsel %vm942, %v1105, -inf
        %1128 = vmax.xlane.f32.xlu0 %v1127
        %v1129 = vpop.xlane.xlu0 %1128
        %v1130 = vsub.f32 %v1098, %v1108
        %v1131 = vsub.f32 %v1099, %v1111
        %v1132 = vsub.f32 %v1100, %v1114
        %v1133 = vsub.f32 %v1101, %v1117
        %v1134 = vsub.f32 %v1102, %v1120
        %v1135 = vsub.f32 %v1103, %v1123
        %v1136 = vsub.f32 %v1104, %v1126
        %v1137 = vsub.f32 %v1105, %v1129
        %v1138 = vmul.f32 %v1130, 1.442695
        %v1139 = vpow.pop %v1138
        %v1140 = vmul.f32 %v1131, 1.442695
        %v1141 = vpow.pop %v1140
        %v1142 = vmul.f32 %v1132, 1.442695
        %v1143 = vpow.pop %v1142
        %v1144 = vmul.f32 %v1133, 1.442695
        %v1145 = vpow.pop %v1144
        %v1146 = vmul.f32 %v1134, 1.442695
        %v1147 = vpow.pop %v1146
        %v1148 = vmul.f32 %v1135, 1.442695
        %v1149 = vpow.pop %v1148
        %v1150 = vmul.f32 %v1136, 1.442695
        %v1151 = vpow.pop %v1150
        %v1152 = vmul.f32 %v1137, 1.442695
        %v1153 = vpow.pop %v1152
        %v1154 = vsel %vm942, %v1139, 0.0
        %1155 = vadd.xlane.f32.xlu0 %v1154
        %v1156 = vpop.xlane.xlu0 %1155
        %v1157 = vsel %vm942, %v1141, 0.0
        %1158 = vadd.xlane.f32.xlu0 %v1157
        %v1159 = vpop.xlane.xlu0 %1158
        %v1160 = vsel %vm942, %v1143, 0.0
        %1161 = vadd.xlane.f32.xlu0 %v1160
        %v1162 = vpop.xlane.xlu0 %1161
        %v1163 = vsel %vm942, %v1145, 0.0
        %1164 = vadd.xlane.f32.xlu0 %v1163
        %v1165 = vpop.xlane.xlu0 %1164
        %v1166 = vsel %vm942, %v1147, 0.0
        %1167 = vadd.xlane.f32.xlu0 %v1166
        %v1168 = vpop.xlane.xlu0 %1167
        %v1169 = vsel %vm942, %v1149, 0.0
        %1170 = vadd.xlane.f32.xlu0 %v1169
        %v1171 = vpop.xlane.xlu0 %1170
        %v1172 = vsel %vm942, %v1151, 0.0
        %1173 = vadd.xlane.f32.xlu0 %v1172
        %v1174 = vpop.xlane.xlu0 %1173
        %v1175 = vsel %vm942, %v1153, 0.0
        %1176 = vadd.xlane.f32.xlu0 %v1175
        %v1177 = vpop.xlane.xlu0 %1176
        %v1178 = vrcp.pop %v1156
        %v1179 = vrcp.pop %v1159
        %v1180 = vrcp.pop %v1162
        %v1181 = vrcp.pop %v1165
        %v1182 = vrcp.pop %v1168
        %v1183 = vrcp.pop %v1171
        %v1184 = vrcp.pop %v1174
        %v1185 = vrcp.pop %v1177
        %v1186 = vmul.f32 %v1139, %v1178
        %v1187 = vmul.f32 %v1141, %v1179
        %v1188 = vmul.f32 %v1143, %v1180
        %v1189 = vmul.f32 %v1145, %v1181
        %v1190 = vmul.f32 %v1147, %v1182
        %v1191 = vmul.f32 %v1149, %v1183
        %v1192 = vmul.f32 %v1151, %v1184
        %v1193 = vmul.f32 %v1153, %v1185
        %v1194 = vpack.c.bf16 %v1187, %v1186
        %v1195 = vpack.c.bf16 %v1189, %v1188
        %v1196 = vpack.c.bf16 %v1191, %v1190
        %v1197 = vpack.c.bf16 %v1193, %v1192
        %v1199 = vsel %vm942, %v1194, 0
        %v1202 = vsel %vm942, %v1195, 0
        %1204 = vmatprep.subr.bf16.mxu0 0
        %1205 = vmatpush1.bf16.msra.mxu0 %v932
        %1206 = vmatprep.subr.bf16.mxu0 0
        %1207 = vmatpush1.bf16.msra.mxu0 %v933
        %1208 = vmatprep.subr.bf16.mxu0 0
        %1209 = vmatpush1.bf16.msra.mxu0 0
        %1210 = vmatprep.subr.bf16.mxu0 0
        %1211 = vmatpush1.bf16.msra.mxu0 0
        %1212 = vmatprep.subr.bf16.mxu0 0
        %1213 = vmatpush1.bf16.msra.mxu0 0
        %1214 = vmatprep.subr.bf16.mxu0 0
        %1215 = vmatpush1.bf16.msra.mxu0 0
        %1216 = vmatprep.subr.bf16.mxu0 0
        %1217 = vmatpush1.bf16.msra.mxu0 0
        %1218 = vmatprep.subr.bf16.mxu0 0
        %1219 = vmatpush1.bf16.msra.mxu0 0
        %1220 = vmatprep.subr.bf16.mxu0 0
        %1221 = vmatpush1.bf16.msra.mxu0 0
        %1222 = vmatprep.subr.bf16.mxu0 0
        %1223 = vmatpush1.bf16.msra.mxu0 0
        %1224 = vmatprep.subr.bf16.mxu0 0
        %1225 = vmatpush1.bf16.msra.mxu0 0
        %1226 = vmatprep.subr.bf16.mxu0 0
        %1227 = vmatpush1.bf16.msra.mxu0 0
        %1228 = vmatprep.subr.bf16.mxu0 0
        %1229 = vmatpush1.bf16.msra.mxu0 0
        %1230 = vmatprep.subr.bf16.mxu0 0
        %1231 = vmatpush1.bf16.msra.mxu0 0
        %1232 = vmatprep.subr.bf16.mxu0 0
        %1233 = vmatpush1.bf16.msra.mxu0 0
        %1234 = vmatprep.subr.bf16.mxu0 0
        %1235 = vmatpush1.bf16.msra.mxu0 0
        %1236 = vmatprep.mubr.bf16.mxu0 0
        %1237 = vmatmul.mubr.bf16.gmra.mrb[0].mxu0 %v1199
        %v1238 = vpop.f32.mrb[0].mxu0
        %v1239 = vadd.f32 0.0, %v1238
        %v1240 = vpop.f32.mrb[0].mxu0
        %v1241 = vpop.f32.mrb[0].mxu0
        %v1242 = vadd.f32 0.0, %v1241
        %v1243 = vpop.f32.mrb[0].mxu0
        %1244 = vmatprep.mubr.bf16.mxu0 0
        %1245 = vmatmul.mubr.bf16.gmra.mrb[0].mxu0 %v1202
        %v1246 = vpop.f32.mrb[0].mxu0
        %v1247 = vadd.f32 0.0, %v1246
        %v1248 = vpop.f32.mrb[0].mxu0
        %v1249 = vpop.f32.mrb[0].mxu0
        %v1250 = vadd.f32 0.0, %v1249
        %v1251 = vpop.f32.mrb[0].mxu0
        %1252 = vdwg.mxu0
        %v1254 = vsel %vm942, %v1196, 0
        %v1257 = vsel %vm942, %v1197, 0
        %1259 = vmatprep.subr.bf16.mxu0 0
        %1260 = vmatpush1.bf16.msra.mxu0 %v934
        %1261 = vmatprep.subr.bf16.mxu0 0
        %1262 = vmatpush1.bf16.msra.mxu0 %v935
        %1263 = vmatprep.subr.bf16.mxu0 0
        %1264 = vmatpush1.bf16.msra.mxu0 0
        %1265 = vmatprep.subr.bf16.mxu0 0
        %1266 = vmatpush1.bf16.msra.mxu0 0
        %1267 = vmatprep.subr.bf16.mxu0 0
        %1268 = vmatpush1.bf16.msra.mxu0 0
        %1269 = vmatprep.subr.bf16.mxu0 0
        %1270 = vmatpush1.bf16.msra.mxu0 0
        %1271 = vmatprep.subr.bf16.mxu0 0
        %1272 = vmatpush1.bf16.msra.mxu0 0
        %1273 = vmatprep.subr.bf16.mxu0 0
        %1274 = vmatpush1.bf16.msra.mxu0 0
        %1275 = vmatprep.subr.bf16.mxu0 0
        %1276 = vmatpush1.bf16.msra.mxu0 0
        %1277 = vmatprep.subr.bf16.mxu0 0
        %1278 = vmatpush1.bf16.msra.mxu0 0
        %1279 = vmatprep.subr.bf16.mxu0 0
        %1280 = vmatpush1.bf16.msra.mxu0 0
        %1281 = vmatprep.subr.bf16.mxu0 0
        %1282 = vmatpush1.bf16.msra.mxu0 0
        %1283 = vmatprep.subr.bf16.mxu0 0
        %1284 = vmatpush1.bf16.msra.mxu0 0
        %1285 = vmatprep.subr.bf16.mxu0 0
        %1286 = vmatpush1.bf16.msra.mxu0 0
        %1287 = vmatprep.subr.bf16.mxu0 0
        %1288 = vmatpush1.bf16.msra.mxu0 0
        %1289 = vmatprep.subr.bf16.mxu0 0
        %1290 = vmatpush1.bf16.msra.mxu0 0
        %1291 = vmatprep.mubr.bf16.mxu0 0
        %1292 = vmatmul.mubr.bf16.gmra.mrb[0].mxu0 %v1254
        %v1293 = vpop.f32.mrb[0].mxu0
        %v1294 = vadd.f32 0.0, %v1293
        %v1295 = vpop.f32.mrb[0].mxu0
        %v1296 = vpop.f32.mrb[0].mxu0
        %v1297 = vadd.f32 0.0, %v1296
        %v1298 = vpop.f32.mrb[0].mxu0
        %1299 = vmatprep.mubr.bf16.mxu0 0
        %1300 = vmatmul.mubr.bf16.gmra.mrb[0].mxu0 %v1257
        %v1301 = vpop.f32.mrb[0].mxu0
        %v1302 = vadd.f32 0.0, %v1301
        %v1303 = vpop.f32.mrb[0].mxu0
        %v1304 = vpop.f32.mrb[0].mxu0
        %v1305 = vadd.f32 0.0, %v1304
        %v1306 = vpop.f32.mrb[0].mxu0
        %1307 = vdwg.mxu0
        %v1308 = vpack.c.bf16 %v1242, %v1239
        %v1309 = vpack.c.bf16 %v1250, %v1247
        %v1310 = vpack.c.bf16 %v1297, %v1294
        %v1311 = vpack.c.bf16 %v1305, %v1302
        %v1312 = vld [vmem:[%s5] sm:$0xff]
        %v1313 = vld [vmem:[%s5 + $0x8] sm:$0xff]
        %v1314 = vld [vmem:[%s5 + $0x10] sm:$0xff]
        %v1315 = vld [vmem:[%s5 + $0x18] sm:$0xff]
        %v1316 = vld [vmem:[%s5 + $0x20] sm:$0xff]
        %v1317 = vld [vmem:[%s5 + $0x28] sm:$0xff]
        %v1318 = vld [vmem:[%s5 + $0x30] sm:$0xff]
        %v1319 = vld [vmem:[%s5 + $0x38] sm:$0xff]
        %v1324 = vunpack.c.l.b16 %v1312
        %v1325 = vunpack.c.h.b16 %v1312
        %v1326 = vunpack.c.l.b16 %v1313
        %v1327 = vunpack.c.h.b16 %v1313
        %v1328 = vunpack.c.l.b16 %v1314
        %v1329 = vunpack.c.h.b16 %v1314
        %v1330 = vunpack.c.l.b16 %v1315
        %v1331 = vunpack.c.h.b16 %v1315
        %v1332 = vpack.c.b16 %v1326, %v1324
        %v1333 = vpack.c.b16 %v1327, %v1325
        %v1334 = vpack.c.b16 %v1330, %v1328
        %v1335 = vpack.c.b16 %v1331, %v1329
        %v1341 = vsel %vm942, %v1308, 0
        %v1344 = vsel %vm942, %v1309, 0
        %1346 = vmatprep.subr.bf16.mxu0 %v1333
        %1347 = vmatpush1.bf16.msra.mxu0 %v1332
        %1348 = vmatprep.subr.bf16.mxu0 %v1335
        %1349 = vmatpush1.bf16.msra.mxu0 %v1334
        %1350 = vmatprep.subr.bf16.mxu0 0
        %1351 = vmatpush1.bf16.msra.mxu0 0
        %1352 = vmatprep.subr.bf16.mxu0 0
        %1353 = vmatpush1.bf16.msra.mxu0 0
        %1354 = vmatprep.subr.bf16.mxu0 0
        %1355 = vmatpush1.bf16.msra.mxu0 0
        %1356 = vmatprep.subr.bf16.mxu0 0
        %1357 = vmatpush1.bf16.msra.mxu0 0
        %1358 = vmatprep.subr.bf16.mxu0 0
        %1359 = vmatpush1.bf16.msra.mxu0 0
        %1360 = vmatprep.subr.bf16.mxu0 0
        %1361 = vmatpush1.bf16.msra.mxu0 0
        %1362 = vmatprep.subr.bf16.mxu0 0
        %1363 = vmatpush1.bf16.msra.mxu0 0
        %1364 = vmatprep.subr.bf16.mxu0 0
        %1365 = vmatpush1.bf16.msra.mxu0 0
        %1366 = vmatprep.subr.bf16.mxu0 0
        %1367 = vmatpush1.bf16.msra.mxu0 0
        %1368 = vmatprep.subr.bf16.mxu0 0
        %1369 = vmatpush1.bf16.msra.mxu0 0
        %1370 = vmatprep.subr.bf16.mxu0 0
        %1371 = vmatpush1.bf16.msra.mxu0 0
        %1372 = vmatprep.subr.bf16.mxu0 0
        %1373 = vmatpush1.bf16.msra.mxu0 0
        %1374 = vmatprep.subr.bf16.mxu0 0
        %1375 = vmatpush1.bf16.msra.mxu0 0
        %1376 = vmatprep.subr.bf16.mxu0 0
        %1377 = vmatpush1.bf16.msra.mxu0 0
        %1378 = vmatprep.mubr.bf16.mxu0 0
        %1379 = vmatmul.mubr.bf16.gmra.mrb[0].mxu0 %v1341
        %v1380 = vpop.f32.mrb[0].mxu0
        %v1381 = vadd.f32 0.0, %v1380
        %v1382 = vpop.f32.mrb[0].mxu0
        %v1383 = vadd.f32 0.0, %v1382
        %v1384 = vpop.f32.mrb[0].mxu0
        %v1385 = vadd.f32 0.0, %v1384
        %v1386 = vpop.f32.mrb[0].mxu0
        %v1387 = vadd.f32 0.0, %v1386
        %1388 = vmatprep.mubr.bf16.mxu0 0
        %1389 = vmatmul.mubr.bf16.gmra.mrb[0].mxu0 %v1344
        %v1390 = vpop.f32.mrb[0].mxu0
        %v1391 = vadd.f32 0.0, %v1390
        %v1392 = vpop.f32.mrb[0].mxu0
        %v1393 = vadd.f32 0.0, %v1392
        %v1394 = vpop.f32.mrb[0].mxu0
        %v1395 = vadd.f32 0.0, %v1394
        %v1396 = vpop.f32.mrb[0].mxu0
        %v1397 = vadd.f32 0.0, %v1396
        %1398 = vdwg.mxu0
        %v1403 = vunpack.c.l.b16 %v1316
        %v1404 = vunpack.c.h.b16 %v1316
        %v1405 = vunpack.c.l.b16 %v1317
        %v1406 = vunpack.c.h.b16 %v1317
        %v1407 = vunpack.c.l.b16 %v1318
        %v1408 = vunpack.c.h.b16 %v1318
        %v1409 = vunpack.c.l.b16 %v1319
        %v1410 = vunpack.c.h.b16 %v1319
        %v1411 = vpack.c.b16 %v1405, %v1403
        %v1412 = vpack.c.b16 %v1406, %v1404
        %v1413 = vpack.c.b16 %v1409, %v1407
        %v1414 = vpack.c.b16 %v1410, %v1408
        %v1420 = vsel %vm942, %v1310, 0
        %v1423 = vsel %vm942, %v1311, 0
        %1425 = vmatprep.subr.bf16.mxu0 %v1412
        %1426 = vmatpush1.bf16.msra.mxu0 %v1411
        %1427 = vmatprep.subr.bf16.mxu0 %v1414
        %1428 = vmatpush1.bf16.msra.mxu0 %v1413
        %1429 = vmatprep.subr.bf16.mxu0 0
        %1430 = vmatpush1.bf16.msra.mxu0 0
        %1431 = vmatprep.subr.bf16.mxu0 0
        %1432 = vmatpush1.bf16.msra.mxu0 0
        %1433 = vmatprep.subr.bf16.mxu0 0
        %1434 = vmatpush1.bf16.msra.mxu0 0
        %1435 = vmatprep.subr.bf16.mxu0 0
        %1436 = vmatpush1.bf16.msra.mxu0 0
        %1437 = vmatprep.subr.bf16.mxu0 0
        %1438 = vmatpush1.bf16.msra.mxu0 0
        %1439 = vmatprep.subr.bf16.mxu0 0
        %1440 = vmatpush1.bf16.msra.mxu0 0
        %1441 = vmatprep.subr.bf16.mxu0 0
        %1442 = vmatpush1.bf16.msra.mxu0 0
        %1443 = vmatprep.subr.bf16.mxu0 0
        %1444 = vmatpush1.bf16.msra.mxu0 0
        %1445 = vmatprep.subr.bf16.mxu0 0
        %1446 = vmatpush1.bf16.msra.mxu0 0
        %1447 = vmatprep.subr.bf16.mxu0 0
        %1448 = vmatpush1.bf16.msra.mxu0 0
        %1449 = vmatprep.subr.bf16.mxu0 0
        %1450 = vmatpush1.bf16.msra.mxu0 0
        %1451 = vmatprep.subr.bf16.mxu0 0
        %1452 = vmatpush1.bf16.msra.mxu0 0
        %1453 = vmatprep.subr.bf16.mxu0 0
        %1454 = vmatpush1.bf16.msra.mxu0 0
        %1455 = vmatprep.subr.bf16.mxu0 0
        %1456 = vmatpush1.bf16.msra.mxu0 0
        %1457 = vmatprep.mubr.bf16.mxu0 0
        %1458 = vmatmul.mubr.bf16.gmra.mrb[0].mxu0 %v1420
        %v1459 = vpop.f32.mrb[0].mxu0
        %v1460 = vadd.f32 0.0, %v1459
        %v1461 = vpop.f32.mrb[0].mxu0
        %v1462 = vadd.f32 0.0, %v1461
        %v1463 = vpop.f32.mrb[0].mxu0
        %v1464 = vadd.f32 0.0, %v1463
        %v1465 = vpop.f32.mrb[0].mxu0
        %v1466 = vadd.f32 0.0, %v1465
        %1467 = vmatprep.mubr.bf16.mxu0 0
        %1468 = vmatmul.mubr.bf16.gmra.mrb[0].mxu0 %v1423
        %v1469 = vpop.f32.mrb[0].mxu0
        %v1470 = vadd.f32 0.0, %v1469
        %v1471 = vpop.f32.mrb[0].mxu0
        %v1472 = vadd.f32 0.0, %v1471
        %v1473 = vpop.f32.mrb[0].mxu0
        %v1474 = vadd.f32 0.0, %v1473
        %v1475 = vpop.f32.mrb[0].mxu0
        %v1476 = vadd.f32 0.0, %v1475
        %1477 = vdwg.mxu0
        %v1478 = vadd.f32 %v1381, %v1460
        %v1479 = vadd.f32 %v1383, %v1462
        %v1480 = vadd.f32 %v1385, %v1464
        %v1481 = vadd.f32 %v1387, %v1466
        %v1482 = vadd.f32 %v1391, %v1470
        %v1483 = vadd.f32 %v1393, %v1472
        %v1484 = vadd.f32 %v1395, %v1474
        %v1485 = vadd.f32 %v1397, %v1476
        %v1486 = vld [vmem:[%s6] sm:$0x3]
        %v1488 = vlaneseq
        %v1489 = vshrl.u32 %v1488, 7
        %v1490 = vsub.s32 0, %v1489
        %v1491 = vrot.slane %v1486, %v1490
        %v1492 = vlaneseq
        %v1493 = vshrl.u32 %v1492, 7
        %v1494 = vsub.s32 1, %v1493
        %v1495 = vrot.slane %v1486, %v1494
        %v1498 = vadd.f32 %v1478, %v1491
        %v1499 = vadd.f32 %v1479, %v1495
        %v1500 = vadd.f32 %v1480, %v1491
        %v1501 = vadd.f32 %v1481, %v1495
        %v1502 = vadd.f32 %v1482, %v1491
        %v1503 = vadd.f32 %v1483, %v1495
        %v1504 = vadd.f32 %v1484, %v1491
        %v1505 = vadd.f32 %v1485, %v1495
        %v1506 = vadd.f32 %v493, %v1498
        %v1507 = vadd.f32 %v494, %v1499
        %v1508 = vadd.f32 %v495, %v1500
        %v1509 = vadd.f32 %v496, %v1501
        %v1510 = vadd.f32 %v497, %v1502
        %v1511 = vadd.f32 %v498, %v1503
        %v1512 = vadd.f32 %v499, %v1504
        %v1513 = vadd.f32 %v500, %v1505
        %v1514 = vld [vmem:[%s7] sm:$0x3]
        %v1515 = vld [vmem:[%s8] sm:$0x3]
        %v1516 = vadd.f32 %v1506, %v1507
        %1517 = vadd.xlane.f32.xlu0 %v1516
        %v1518 = vpop.xlane.xlu0 %1517
        %v1519 = vadd.f32 %v1508, %v1509
        %1520 = vadd.xlane.f32.xlu0 %v1519
        %v1521 = vpop.xlane.xlu0 %1520
        %v1522 = vadd.f32 %v1510, %v1511
        %1523 = vadd.xlane.f32.xlu0 %v1522
        %v1524 = vpop.xlane.xlu0 %1523
        %v1525 = vadd.f32 %v1512, %v1513
        %1526 = vadd.xlane.f32.xlu0 %v1525
        %v1527 = vpop.xlane.xlu0 %1526
        %v1528 = vmul.f32 %v1518, %v515
        %v1529 = vmul.f32 %v1521, %v515
        %v1530 = vmul.f32 %v1524, %v515
        %v1531 = vmul.f32 %v1527, %v515
        %v1532 = vsub.f32 %v1506, %v1528
        %v1533 = vsub.f32 %v1507, %v1528
        %v1534 = vsub.f32 %v1508, %v1529
        %v1535 = vsub.f32 %v1509, %v1529
        %v1536 = vsub.f32 %v1510, %v1530
        %v1537 = vsub.f32 %v1511, %v1530
        %v1538 = vsub.f32 %v1512, %v1531
        %v1539 = vsub.f32 %v1513, %v1531
        %v1540 = vmul.f32 %v1532, %v1532
        %v1541 = vmul.f32 %v1533, %v1533
        %v1542 = vmul.f32 %v1534, %v1534
        %v1543 = vmul.f32 %v1535, %v1535
        %v1544 = vmul.f32 %v1536, %v1536
        %v1545 = vmul.f32 %v1537, %v1537
        %v1546 = vmul.f32 %v1538, %v1538
        %v1547 = vmul.f32 %v1539, %v1539
        %v1548 = vadd.f32 %v1540, %v1541
        %1549 = vadd.xlane.f32.xlu0 %v1548
        %v1550 = vpop.xlane.xlu0 %1549
        %v1551 = vadd.f32 %v1542, %v1543
        %1552 = vadd.xlane.f32.xlu0 %v1551
        %v1553 = vpop.xlane.xlu0 %1552
        %v1554 = vadd.f32 %v1544, %v1545
        %1555 = vadd.xlane.f32.xlu0 %v1554
        %v1556 = vpop.xlane.xlu0 %1555
        %v1557 = vadd.f32 %v1546, %v1547
        %1558 = vadd.xlane.f32.xlu0 %v1557
        %v1559 = vpop.xlane.xlu0 %1558
        %v1560 = vmul.f32 %v1550, %v515
        %v1561 = vmul.f32 %v1553, %v515
        %v1562 = vmul.f32 %v1556, %v515
        %v1563 = vmul.f32 %v1559, %v515
        %v1564 = vadd.f32 %v1560, 1e-05
        %v1565 = vadd.f32 %v1561, 1e-05
        %v1566 = vadd.f32 %v1562, 1e-05
        %v1567 = vadd.f32 %v1563, 1e-05
        %v1568 = vrsqrt.pop %v1564
        %v1569 = vrsqrt.pop %v1565
        %v1570 = vrsqrt.pop %v1566
        %v1571 = vrsqrt.pop %v1567
        %v1572 = vmul.f32 %v1532, %v1568
        %v1573 = vmul.f32 %v1533, %v1568
        %v1574 = vmul.f32 %v1534, %v1569
        %v1575 = vmul.f32 %v1535, %v1569
        %v1576 = vmul.f32 %v1536, %v1570
        %v1577 = vmul.f32 %v1537, %v1570
        %v1578 = vmul.f32 %v1538, %v1571
        %v1579 = vmul.f32 %v1539, %v1571
        %v1581 = vlaneseq
        %v1582 = vshrl.u32 %v1581, 7
        %v1583 = vsub.s32 0, %v1582
        %v1584 = vrot.slane %v1514, %v1583
        %v1585 = vlaneseq
        %v1586 = vshrl.u32 %v1585, 7
        %v1587 = vsub.s32 1, %v1586
        %v1588 = vrot.slane %v1514, %v1587
        %v1591 = vmul.f32 %v1572, %v1584
        %v1592 = vmul.f32 %v1573, %v1588
        %v1593 = vmul.f32 %v1574, %v1584
        %v1594 = vmul.f32 %v1575, %v1588
        %v1595 = vmul.f32 %v1576, %v1584
        %v1596 = vmul.f32 %v1577, %v1588
        %v1597 = vmul.f32 %v1578, %v1584
        %v1598 = vmul.f32 %v1579, %v1588
        %v1600 = vlaneseq
        %v1601 = vshrl.u32 %v1600, 7
        %v1602 = vsub.s32 0, %v1601
        %v1603 = vrot.slane %v1515, %v1602
        %v1604 = vlaneseq
        %v1605 = vshrl.u32 %v1604, 7
        %v1606 = vsub.s32 1, %v1605
        %v1607 = vrot.slane %v1515, %v1606
        %v1610 = vadd.f32 %v1591, %v1603
        %v1611 = vadd.f32 %v1592, %v1607
        %v1612 = vadd.f32 %v1593, %v1603
        %v1613 = vadd.f32 %v1594, %v1607
        %v1614 = vadd.f32 %v1595, %v1603
        %v1615 = vadd.f32 %v1596, %v1607
        %v1616 = vadd.f32 %v1597, %v1603
        %v1617 = vadd.f32 %v1598, %v1607
        %v1618 = vpack.c.bf16 %v1612, %v1610
        %v1619 = vpack.c.bf16 %v1613, %v1611
        %v1620 = vpack.c.bf16 %v1616, %v1614
        %v1621 = vpack.c.bf16 %v1617, %v1615
        %v1622 = vld [vmem:[%s9] sm:$0xff]
        %v1623 = vld [vmem:[%s9 + $0x8] sm:$0xff]
        %v1624 = vld [vmem:[%s9 + $0x10] sm:$0xff]
        %v1625 = vld [vmem:[%s9 + $0x18] sm:$0xff]
        %v1626 = vld [vmem:[%s9 + $0x20] sm:$0xff]
        %v1627 = vld [vmem:[%s9 + $0x28] sm:$0xff]
        %v1628 = vld [vmem:[%s9 + $0x30] sm:$0xff]
        %v1629 = vld [vmem:[%s9 + $0x38] sm:$0xff]
        %v1630 = vld [vmem:[%s9 + $0x40] sm:$0xff]
        %v1631 = vld [vmem:[%s9 + $0x48] sm:$0xff]
        %v1632 = vld [vmem:[%s9 + $0x50] sm:$0xff]
        %v1633 = vld [vmem:[%s9 + $0x58] sm:$0xff]
        %v1634 = vld [vmem:[%s9 + $0x60] sm:$0xff]
        %v1635 = vld [vmem:[%s9 + $0x68] sm:$0xff]
        %v1636 = vld [vmem:[%s9 + $0x70] sm:$0xff]
        %v1637 = vld [vmem:[%s9 + $0x78] sm:$0xff]
        %v1638 = vld [vmem:[%s9 + $0x80] sm:$0xff]
        %v1639 = vld [vmem:[%s9 + $0x88] sm:$0xff]
        %v1640 = vld [vmem:[%s9 + $0x90] sm:$0xff]
        %v1641 = vld [vmem:[%s9 + $0x98] sm:$0xff]
        %v1642 = vld [vmem:[%s9 + $0xa0] sm:$0xff]
        %v1643 = vld [vmem:[%s9 + $0xa8] sm:$0xff]
        %v1644 = vld [vmem:[%s9 + $0xb0] sm:$0xff]
        %v1645 = vld [vmem:[%s9 + $0xb8] sm:$0xff]
        %v1646 = vld [vmem:[%s9 + $0xc0] sm:$0xff]
        %v1647 = vld [vmem:[%s9 + $0xc8] sm:$0xff]
        %v1648 = vld [vmem:[%s9 + $0xd0] sm:$0xff]
        %v1649 = vld [vmem:[%s9 + $0xd8] sm:$0xff]
        %v1650 = vld [vmem:[%s9 + $0xe0] sm:$0xff]
        %v1651 = vld [vmem:[%s9 + $0xe8] sm:$0xff]
        %v1652 = vld [vmem:[%s9 + $0xf0] sm:$0xff]
        %v1653 = vld [vmem:[%s9 + $0xf8] sm:$0xff]
        %v1654 = vld [vmem:[%s10] sm:$0x3]
        %v1656 = vlaneseq
        %v1657 = vshrl.u32 %v1656, 7
        %v1658 = vsub.s32 0, %v1657
        %v1659 = vrot.slane %v1654, %v1658
        %v1660 = vlaneseq
        %v1661 = vshrl.u32 %v1660, 7
        %v1662 = vsub.s32 1, %v1661
        %v1663 = vrot.slane %v1654, %v1662
        %v1698 = vunpack.c.l.b16 %v1622
        %v1699 = vunpack.c.h.b16 %v1622
        %v1700 = vunpack.c.l.b16 %v1623
        %v1701 = vunpack.c.h.b16 %v1623
        %v1702 = vunpack.c.l.b16 %v1624
        %v1703 = vunpack.c.h.b16 %v1624
        %v1704 = vunpack.c.l.b16 %v1625
        %v1705 = vunpack.c.h.b16 %v1625
        %v1706 = vunpack.c.l.b16 %v1626
        %v1707 = vunpack.c.h.b16 %v1626
        %v1708 = vunpack.c.l.b16 %v1627
        %v1709 = vunpack.c.h.b16 %v1627
        %v1710 = vunpack.c.l.b16 %v1628
        %v1711 = vunpack.c.h.b16 %v1628
        %v1712 = vunpack.c.l.b16 %v1629
        %v1713 = vunpack.c.h.b16 %v1629
        %v1714 = vunpack.c.l.b16 %v1630
        %v1715 = vunpack.c.h.b16 %v1630
        %v1716 = vunpack.c.l.b16 %v1631
        %v1717 = vunpack.c.h.b16 %v1631
        %v1718 = vunpack.c.l.b16 %v1632
        %v1719 = vunpack.c.h.b16 %v1632
        %v1720 = vunpack.c.l.b16 %v1633
        %v1721 = vunpack.c.h.b16 %v1633
        %v1722 = vunpack.c.l.b16 %v1634
        %v1723 = vunpack.c.h.b16 %v1634
        %v1724 = vunpack.c.l.b16 %v1635
        %v1725 = vunpack.c.h.b16 %v1635
        %v1726 = vunpack.c.l.b16 %v1636
        %v1727 = vunpack.c.h.b16 %v1636
        %v1728 = vunpack.c.l.b16 %v1637
        %v1729 = vunpack.c.h.b16 %v1637
        %v1730 = vunpack.c.l.b16 %v1638
        %v1731 = vunpack.c.h.b16 %v1638
        %v1732 = vunpack.c.l.b16 %v1639
        %v1733 = vunpack.c.h.b16 %v1639
        %v1734 = vunpack.c.l.b16 %v1640
        %v1735 = vunpack.c.h.b16 %v1640
        %v1736 = vunpack.c.l.b16 %v1641
        %v1737 = vunpack.c.h.b16 %v1641
        %v1738 = vunpack.c.l.b16 %v1642
        %v1739 = vunpack.c.h.b16 %v1642
        %v1740 = vunpack.c.l.b16 %v1643
        %v1741 = vunpack.c.h.b16 %v1643
        %v1742 = vunpack.c.l.b16 %v1644
        %v1743 = vunpack.c.h.b16 %v1644
        %v1744 = vunpack.c.l.b16 %v1645
        %v1745 = vunpack.c.h.b16 %v1645
        %v1746 = vunpack.c.l.b16 %v1646
        %v1747 = vunpack.c.h.b16 %v1646
        %v1748 = vunpack.c.l.b16 %v1647
        %v1749 = vunpack.c.h.b16 %v1647
        %v1750 = vunpack.c.l.b16 %v1648
        %v1751 = vunpack.c.h.b16 %v1648
        %v1752 = vunpack.c.l.b16 %v1649
        %v1753 = vunpack.c.h.b16 %v1649
        %v1754 = vunpack.c.l.b16 %v1650
        %v1755 = vunpack.c.h.b16 %v1650
        %v1756 = vunpack.c.l.b16 %v1651
        %v1757 = vunpack.c.h.b16 %v1651
        %v1758 = vunpack.c.l.b16 %v1652
        %v1759 = vunpack.c.h.b16 %v1652
        %v1760 = vunpack.c.l.b16 %v1653
        %v1761 = vunpack.c.h.b16 %v1653
        %v1762 = vpack.c.b16 %v1700, %v1698
        %v1763 = vpack.c.b16 %v1701, %v1699
        %v1764 = vpack.c.b16 %v1704, %v1702
        %v1765 = vpack.c.b16 %v1705, %v1703
        %v1766 = vpack.c.b16 %v1708, %v1706
        %v1767 = vpack.c.b16 %v1709, %v1707
        %v1768 = vpack.c.b16 %v1712, %v1710
        %v1769 = vpack.c.b16 %v1713, %v1711
        %v1770 = vpack.c.b16 %v1716, %v1714
        %v1771 = vpack.c.b16 %v1717, %v1715
        %v1772 = vpack.c.b16 %v1720, %v1718
        %v1773 = vpack.c.b16 %v1721, %v1719
        %v1774 = vpack.c.b16 %v1724, %v1722
        %v1775 = vpack.c.b16 %v1725, %v1723
        %v1776 = vpack.c.b16 %v1728, %v1726
        %v1777 = vpack.c.b16 %v1729, %v1727
        %v1778 = vpack.c.b16 %v1732, %v1730
        %v1779 = vpack.c.b16 %v1733, %v1731
        %v1780 = vpack.c.b16 %v1736, %v1734
        %v1781 = vpack.c.b16 %v1737, %v1735
        %v1782 = vpack.c.b16 %v1740, %v1738
        %v1783 = vpack.c.b16 %v1741, %v1739
        %v1784 = vpack.c.b16 %v1744, %v1742
        %v1785 = vpack.c.b16 %v1745, %v1743
        %v1786 = vpack.c.b16 %v1748, %v1746
        %v1787 = vpack.c.b16 %v1749, %v1747
        %v1788 = vpack.c.b16 %v1752, %v1750
        %v1789 = vpack.c.b16 %v1753, %v1751
        %v1790 = vpack.c.b16 %v1756, %v1754
        %v1791 = vpack.c.b16 %v1757, %v1755
        %v1792 = vpack.c.b16 %v1760, %v1758
        %v1793 = vpack.c.b16 %v1761, %v1759
        %1826 = vmatprep.subr.bf16.mxu0 %v1763
        %1827 = vmatpush1.bf16.msra.mxu0 %v1762
        %1828 = vmatprep.subr.bf16.mxu0 %v1765
        %1829 = vmatpush1.bf16.msra.mxu0 %v1764
        %1830 = vmatprep.subr.bf16.mxu0 %v1767
        %1831 = vmatpush1.bf16.msra.mxu0 %v1766
        %1832 = vmatprep.subr.bf16.mxu0 %v1769
        %1833 = vmatpush1.bf16.msra.mxu0 %v1768
        %1834 = vmatprep.subr.bf16.mxu0 %v1771
        %1835 = vmatpush1.bf16.msra.mxu0 %v1770
        %1836 = vmatprep.subr.bf16.mxu0 %v1773
        %1837 = vmatpush1.bf16.msra.mxu0 %v1772
        %1838 = vmatprep.subr.bf16.mxu0 %v1775
        %1839 = vmatpush1.bf16.msra.mxu0 %v1774
        %1840 = vmatprep.subr.bf16.mxu0 %v1777
        %1841 = vmatpush1.bf16.msra.mxu0 %v1776
        %1842 = vmatprep.subr.bf16.mxu0 %v1779
        %1843 = vmatpush1.bf16.msra.mxu0 %v1778
        %1844 = vmatprep.subr.bf16.mxu0 %v1781
        %1845 = vmatpush1.bf16.msra.mxu0 %v1780
        %1846 = vmatprep.subr.bf16.mxu0 %v1783
        %1847 = vmatpush1.bf16.msra.mxu0 %v1782
        %1848 = vmatprep.subr.bf16.mxu0 %v1785
        %1849 = vmatpush1.bf16.msra.mxu0 %v1784
        %1850 = vmatprep.subr.bf16.mxu0 %v1787
        %1851 = vmatpush1.bf16.msra.mxu0 %v1786
        %1852 = vmatprep.subr.bf16.mxu0 %v1789
        %1853 = vmatpush1.bf16.msra.mxu0 %v1788
        %1854 = vmatprep.subr.bf16.mxu0 %v1791
        %1855 = vmatpush1.bf16.msra.mxu0 %v1790
        %1856 = vmatprep.subr.bf16.mxu0 %v1793
        %1857 = vmatpush1.bf16.msra.mxu0 %v1792
        %1858 = vmatprep.mubr.bf16.mxu0 %v1619
        %1859 = vmatmul.mubr.bf16.gmra.mrb[0].mxu0 %v1618
        %v1860 = vpop.f32.mrb[0].mxu0
        %v1861 = vadd.f32 %v1659, %v1860
        %v1862 = vpop.f32.mrb[0].mxu0
        %v1863 = vadd.f32 %v1663, %v1862
        %v1864 = vpop.f32.mrb[0].mxu0
        %v1865 = vadd.f32 %v1659, %v1864
        %v1866 = vpop.f32.mrb[0].mxu0
        %v1867 = vadd.f32 %v1663, %v1866
        %1868 = vmatprep.mubr.bf16.mxu0 %v1621
        %1869 = vmatmul.mubr.bf16.gmra.mrb[0].mxu0 %v1620
        %v1870 = vpop.f32.mrb[0].mxu0
        %v1871 = vadd.f32 %v1659, %v1870
        %v1872 = vpop.f32.mrb[0].mxu0
        %v1873 = vadd.f32 %v1663, %v1872
        %v1874 = vpop.f32.mrb[0].mxu0
        %v1875 = vadd.f32 %v1659, %v1874
        %v1876 = vpop.f32.mrb[0].mxu0
        %v1877 = vadd.f32 %v1663, %v1876
        %1878 = vdwg.mxu0
        %v1879 = vmul.f32 %v1861, 1.702
        %v1880 = vmul.f32 %v1863, 1.702
        %v1881 = vmul.f32 %v1865, 1.702
        %v1882 = vmul.f32 %v1867, 1.702
        %v1883 = vmul.f32 %v1871, 1.702
        %v1884 = vmul.f32 %v1873, 1.702
        %v1885 = vmul.f32 %v1875, 1.702
        %v1886 = vmul.f32 %v1877, 1.702
        %v1887 = vxor.u32 %v1879, 2147483648
        %v1888 = vxor.u32 %v1880, 2147483648
        %v1889 = vxor.u32 %v1881, 2147483648
        %v1890 = vxor.u32 %v1882, 2147483648
        %v1891 = vxor.u32 %v1883, 2147483648
        %v1892 = vxor.u32 %v1884, 2147483648
        %v1893 = vxor.u32 %v1885, 2147483648
        %v1894 = vxor.u32 %v1886, 2147483648
        %v1895 = vmul.f32 %v1887, 1.442695
        %v1896 = vpow.pop %v1895
        %v1897 = vmul.f32 %v1888, 1.442695
        %v1898 = vpow.pop %v1897
        %v1899 = vmul.f32 %v1889, 1.442695
        %v1900 = vpow.pop %v1899
        %v1901 = vmul.f32 %v1890, 1.442695
        %v1902 = vpow.pop %v1901
        %v1903 = vmul.f32 %v1891, 1.442695
        %v1904 = vpow.pop %v1903
        %v1905 = vmul.f32 %v1892, 1.442695
        %v1906 = vpow.pop %v1905
        %v1907 = vmul.f32 %v1893, 1.442695
        %v1908 = vpow.pop %v1907
        %v1909 = vmul.f32 %v1894, 1.442695
        %v1910 = vpow.pop %v1909
        %v1911 = vadd.f32 %v1896, 1.0
        %v1912 = vadd.f32 %v1898, 1.0
        %v1913 = vadd.f32 %v1900, 1.0
        %v1914 = vadd.f32 %v1902, 1.0
        %v1915 = vadd.f32 %v1904, 1.0
        %v1916 = vadd.f32 %v1906, 1.0
        %v1917 = vadd.f32 %v1908, 1.0
        %v1918 = vadd.f32 %v1910, 1.0
        %v1919 = vrcp.pop %v1911
        %v1920 = vmul.f32 1.0, %v1919
        %v1921 = vrcp.pop %v1912
        %v1922 = vmul.f32 1.0, %v1921
        %v1923 = vrcp.pop %v1913
        %v1924 = vmul.f32 1.0, %v1923
        %v1925 = vrcp.pop %v1914
        %v1926 = vmul.f32 1.0, %v1925
        %v1927 = vrcp.pop %v1915
        %v1928 = vmul.f32 1.0, %v1927
        %v1929 = vrcp.pop %v1916
        %v1930 = vmul.f32 1.0, %v1929
        %v1931 = vrcp.pop %v1917
        %v1932 = vmul.f32 1.0, %v1931
        %v1933 = vrcp.pop %v1918
        %v1934 = vmul.f32 1.0, %v1933
        %v1935 = vmul.f32 %v1861, %v1920
        %v1936 = vmul.f32 %v1863, %v1922
        %v1937 = vmul.f32 %v1865, %v1924
        %v1938 = vmul.f32 %v1867, %v1926
        %v1939 = vmul.f32 %v1871, %v1928
        %v1940 = vmul.f32 %v1873, %v1930
        %v1941 = vmul.f32 %v1875, %v1932
        %v1942 = vmul.f32 %v1877, %v1934
        %v1943 = vpack.c.bf16 %v1937, %v1935
        %v1944 = vpack.c.bf16 %v1938, %v1936
        %v1945 = vpack.c.bf16 %v1941, %v1939
        %v1946 = vpack.c.bf16 %v1942, %v1940
        %v1947 = vld [vmem:[#allocation2] sm:$0xff]
        %v1948 = vld [vmem:[#allocation2 + $0x8] sm:$0xff]
        %v1949 = vld [vmem:[#allocation2 + $0x10] sm:$0xff]
        %v1950 = vld [vmem:[#allocation2 + $0x18] sm:$0xff]
        %v1951 = vld [vmem:[#allocation2 + $0x20] sm:$0xff]
        %v1952 = vld [vmem:[#allocation2 + $0x28] sm:$0xff]
        %v1953 = vld [vmem:[#allocation2 + $0x30] sm:$0xff]
        %v1954 = vld [vmem:[#allocation2 + $0x38] sm:$0xff]
        %v1955 = vld [vmem:[#allocation2 + $0x40] sm:$0xff]
        %v1956 = vld [vmem:[#allocation2 + $0x48] sm:$0xff]
        %v1957 = vld [vmem:[#allocation2 + $0x50] sm:$0xff]
        %v1958 = vld [vmem:[#allocation2 + $0x58] sm:$0xff]
        %v1959 = vld [vmem:[#allocation2 + $0x60] sm:$0xff]
        %v1960 = vld [vmem:[#allocation2 + $0x68] sm:$0xff]
        %v1961 = vld [vmem:[#allocation2 + $0x70] sm:$0xff]
        %v1962 = vld [vmem:[#allocation2 + $0x78] sm:$0xff]
        %v1963 = vld [vmem:[#allocation2 + $0x80] sm:$0xff]
        %v1964 = vld [vmem:[#allocation2 + $0x88] sm:$0xff]
        %v1965 = vld [vmem:[#allocation2 + $0x90] sm:$0xff]
        %v1966 = vld [vmem:[#allocation2 + $0x98] sm:$0xff]
        %v1967 = vld [vmem:[#allocation2 + $0xa0] sm:$0xff]
        %v1968 = vld [vmem:[#allocation2 + $0xa8] sm:$0xff]
        %v1969 = vld [vmem:[#allocation2 + $0xb0] sm:$0xff]
        %v1970 = vld [vmem:[#allocation2 + $0xb8] sm:$0xff]
        %v1971 = vld [vmem:[#allocation2 + $0xc0] sm:$0xff]
        %v1972 = vld [vmem:[#allocation2 + $0xc8] sm:$0xff]
        %v1973 = vld [vmem:[#allocation2 + $0xd0] sm:$0xff]
        %v1974 = vld [vmem:[#allocation2 + $0xd8] sm:$0xff]
        %v1975 = vld [vmem:[#allocation2 + $0xe0] sm:$0xff]
        %v1976 = vld [vmem:[#allocation2 + $0xe8] sm:$0xff]
        %v1977 = vld [vmem:[#allocation2 + $0xf0] sm:$0xff]
        %v1978 = vld [vmem:[#allocation2 + $0xf8] sm:$0xff]
        %v1979 = vld [vmem:[%s12] sm:$0x3]
        %v1981 = vlaneseq
        %v1982 = vshrl.u32 %v1981, 7
        %v1983 = vsub.s32 0, %v1982
        %v1984 = vrot.slane %v1979, %v1983
        %v1985 = vlaneseq
        %v1986 = vshrl.u32 %v1985, 7
        %v1987 = vsub.s32 1, %v1986
        %v1988 = vrot.slane %v1979, %v1987
        %v2023 = vunpack.c.l.b16 %v1947
        %v2024 = vunpack.c.h.b16 %v1947
        %v2025 = vunpack.c.l.b16 %v1948
        %v2026 = vunpack.c.h.b16 %v1948
        %v2027 = vunpack.c.l.b16 %v1949
        %v2028 = vunpack.c.h.b16 %v1949
        %v2029 = vunpack.c.l.b16 %v1950
        %v2030 = vunpack.c.h.b16 %v1950
        %v2031 = vunpack.c.l.b16 %v1951
        %v2032 = vunpack.c.h.b16 %v1951
        %v2033 = vunpack.c.l.b16 %v1952
        %v2034 = vunpack.c.h.b16 %v1952
        %v2035 = vunpack.c.l.b16 %v1953
        %v2036 = vunpack.c.h.b16 %v1953
        %v2037 = vunpack.c.l.b16 %v1954
        %v2038 = vunpack.c.h.b16 %v1954
        %v2039 = vunpack.c.l.b16 %v1955
        %v2040 = vunpack.c.h.b16 %v1955
        %v2041 = vunpack.c.l.b16 %v1956
        %v2042 = vunpack.c.h.b16 %v1956
        %v2043 = vunpack.c.l.b16 %v1957
        %v2044 = vunpack.c.h.b16 %v1957
        %v2045 = vunpack.c.l.b16 %v1958
        %v2046 = vunpack.c.h.b16 %v1958
        %v2047 = vunpack.c.l.b16 %v1959
        %v2048 = vunpack.c.h.b16 %v1959
        %v2049 = vunpack.c.l.b16 %v1960
        %v2050 = vunpack.c.h.b16 %v1960
        %v2051 = vunpack.c.l.b16 %v1961
        %v2052 = vunpack.c.h.b16 %v1961
        %v2053 = vunpack.c.l.b16 %v1962
        %v2054 = vunpack.c.h.b16 %v1962
        %v2055 = vunpack.c.l.b16 %v1963
        %v2056 = vunpack.c.h.b16 %v1963
        %v2057 = vunpack.c.l.b16 %v1964
        %v2058 = vunpack.c.h.b16 %v1964
        %v2059 = vunpack.c.l.b16 %v1965
        %v2060 = vunpack.c.h.b16 %v1965
        %v2061 = vunpack.c.l.b16 %v1966
        %v2062 = vunpack.c.h.b16 %v1966
        %v2063 = vunpack.c.l.b16 %v1967
        %v2064 = vunpack.c.h.b16 %v1967
        %v2065 = vunpack.c.l.b16 %v1968
        %v2066 = vunpack.c.h.b16 %v1968
        %v2067 = vunpack.c.l.b16 %v1969
        %v2068 = vunpack.c.h.b16 %v1969
        %v2069 = vunpack.c.l.b16 %v1970
        %v2070 = vunpack.c.h.b16 %v1970
        %v2071 = vunpack.c.l.b16 %v1971
        %v2072 = vunpack.c.h.b16 %v1971
        %v2073 = vunpack.c.l.b16 %v1972
        %v2074 = vunpack.c.h.b16 %v1972
        %v2075 = vunpack.c.l.b16 %v1973
        %v2076 = vunpack.c.h.b16 %v1973
        %v2077 = vunpack.c.l.b16 %v1974
        %v2078 = vunpack.c.h.b16 %v1974
        %v2079 = vunpack.c.l.b16 %v1975
        %v2080 = vunpack.c.h.b16 %v1975
        %v2081 = vunpack.c.l.b16 %v1976
        %v2082 = vunpack.c.h.b16 %v1976
        %v2083 = vunpack.c.l.b16 %v1977
        %v2084 = vunpack.c.h.b16 %v1977
        %v2085 = vunpack.c.l.b16 %v1978
        %v2086 = vunpack.c.h.b16 %v1978
        %v2087 = vpack.c.b16 %v2025, %v2023
        %v2088 = vpack.c.b16 %v2026, %v2024
        %v2089 = vpack.c.b16 %v2029, %v2027
        %v2090 = vpack.c.b16 %v2030, %v2028
        %v2091 = vpack.c.b16 %v2033, %v2031
        %v2092 = vpack.c.b16 %v2034, %v2032
        %v2093 = vpack.c.b16 %v2037, %v2035
        %v2094 = vpack.c.b16 %v2038, %v2036
        %v2095 = vpack.c.b16 %v2041, %v2039
        %v2096 = vpack.c.b16 %v2042, %v2040
        %v2097 = vpack.c.b16 %v2045, %v2043
        %v2098 = vpack.c.b16 %v2046, %v2044
        %v2099 = vpack.c.b16 %v2049, %v2047
        %v2100 = vpack.c.b16 %v2050, %v2048
        %v2101 = vpack.c.b16 %v2053, %v2051
        %v2102 = vpack.c.b16 %v2054, %v2052
        %v2103 = vpack.c.b16 %v2057, %v2055
        %v2104 = vpack.c.b16 %v2058, %v2056
        %v2105 = vpack.c.b16 %v2061, %v2059
        %v2106 = vpack.c.b16 %v2062, %v2060
        %v2107 = vpack.c.b16 %v2065, %v2063
        %v2108 = vpack.c.b16 %v2066, %v2064
        %v2109 = vpack.c.b16 %v2069, %v2067
        %v2110 = vpack.c.b16 %v2070, %v2068
        %v2111 = vpack.c.b16 %v2073, %v2071
        %v2112 = vpack.c.b16 %v2074, %v2072
        %v2113 = vpack.c.b16 %v2077, %v2075
        %v2114 = vpack.c.b16 %v2078, %v2076
        %v2115 = vpack.c.b16 %v2081, %v2079
        %v2116 = vpack.c.b16 %v2082, %v2080
        %v2117 = vpack.c.b16 %v2085, %v2083
        %v2118 = vpack.c.b16 %v2086, %v2084
        %2151 = vmatprep.subr.bf16.mxu0 %v2088
        %2152 = vmatpush1.bf16.msra.mxu0 %v2087
        %2153 = vmatprep.subr.bf16.mxu0 %v2090
        %2154 = vmatpush1.bf16.msra.mxu0 %v2089
        %2155 = vmatprep.subr.bf16.mxu0 %v2092
        %2156 = vmatpush1.bf16.msra.mxu0 %v2091
        %2157 = vmatprep.subr.bf16.mxu0 %v2094
        %2158 = vmatpush1.bf16.msra.mxu0 %v2093
        %2159 = vmatprep.subr.bf16.mxu0 %v2096
        %2160 = vmatpush1.bf16.msra.mxu0 %v2095
        %2161 = vmatprep.subr.bf16.mxu0 %v2098
        %2162 = vmatpush1.bf16.msra.mxu0 %v2097
        %2163 = vmatprep.subr.bf16.mxu0 %v2100
        %2164 = vmatpush1.bf16.msra.mxu0 %v2099
        %2165 = vmatprep.subr.bf16.mxu0 %v2102
        %2166 = vmatpush1.bf16.msra.mxu0 %v2101
        %2167 = vmatprep.subr.bf16.mxu0 %v2104
        %2168 = vmatpush1.bf16.msra.mxu0 %v2103
        %2169 = vmatprep.subr.bf16.mxu0 %v2106
        %2170 = vmatpush1.bf16.msra.mxu0 %v2105
        %2171 = vmatprep.subr.bf16.mxu0 %v2108
        %2172 = vmatpush1.bf16.msra.mxu0 %v2107
        %2173 = vmatprep.subr.bf16.mxu0 %v2110
        %2174 = vmatpush1.bf16.msra.mxu0 %v2109
        %2175 = vmatprep.subr.bf16.mxu0 %v2112
        %2176 = vmatpush1.bf16.msra.mxu0 %v2111
        %2177 = vmatprep.subr.bf16.mxu0 %v2114
        %2178 = vmatpush1.bf16.msra.mxu0 %v2113
        %2179 = vmatprep.subr.bf16.mxu0 %v2116
        %2180 = vmatpush1.bf16.msra.mxu0 %v2115
        %2181 = vmatprep.subr.bf16.mxu0 %v2118
        %2182 = vmatpush1.bf16.msra.mxu0 %v2117
        %2183 = vmatprep.mubr.bf16.mxu0 %v1944
        %2184 = vmatmul.mubr.bf16.gmra.mrb[0].mxu0 %v1943
        %v2185 = vpop.f32.mrb[0].mxu0
        %v2186 = vadd.f32 %v1984, %v2185
        %v2187 = vpop.f32.mrb[0].mxu0
        %v2188 = vadd.f32 %v1988, %v2187
        %v2189 = vpop.f32.mrb[0].mxu0
        %v2190 = vadd.f32 %v1984, %v2189
        %v2191 = vpop.f32.mrb[0].mxu0
        %v2192 = vadd.f32 %v1988, %v2191
        %2193 = vmatprep.mubr.bf16.mxu0 %v1946
        %2194 = vmatmul.mubr.bf16.gmra.mrb[0].mxu0 %v1945
        %v2195 = vpop.f32.mrb[0].mxu0
        %v2196 = vadd.f32 %v1984, %v2195
        %v2197 = vpop.f32.mrb[0].mxu0
        %v2198 = vadd.f32 %v1988, %v2197
        %v2199 = vpop.f32.mrb[0].mxu0
        %v2200 = vadd.f32 %v1984, %v2199
        %v2201 = vpop.f32.mrb[0].mxu0
        %v2202 = vadd.f32 %v1988, %v2201
        %2203 = vdwg.mxu0
        %v2204 = vadd.f32 %v1498, %v2186
        %v2205 = vadd.f32 %v1499, %v2188
        %v2206 = vadd.f32 %v1500, %v2190
        %v2207 = vadd.f32 %v1501, %v2192
        %v2208 = vadd.f32 %v1502, %v2196
        %v2209 = vadd.f32 %v1503, %v2198
        %v2210 = vadd.f32 %v1504, %v2200
        %v2211 = vadd.f32 %v1505, %v2202
        %v2212 = vadd.f32 %v493, %v2204
        %v2213 = vadd.f32 %v494, %v2205
        %v2214 = vadd.f32 %v495, %v2206
        %v2215 = vadd.f32 %v496, %v2207
        %v2216 = vadd.f32 %v497, %v2208
        %v2217 = vadd.f32 %v498, %v2209
        %v2218 = vadd.f32 %v499, %v2210
        %v2219 = vadd.f32 %v500, %v2211
        %2220 = vst [vmem:[%s479] sm:$0xff] %v2212
        %2221 = vst [vmem:[%s479 + $0x8] sm:$0xff] %v2213
        %2222 = vst [vmem:[%s479 + $0x10] sm:$0xff] %v2214
        %2223 = vst [vmem:[%s479 + $0x18] sm:$0xff] %v2215
        %2224 = vst [vmem:[%s479 + $0x20] sm:$0xff] %v2216
        %2225 = vst [vmem:[%s479 + $0x28] sm:$0xff] %v2217
        %2226 = vst [vmem:[%s479 + $0x30] sm:$0xff] %v2218
        %2227 = vst [vmem:[%s479 + $0x38] sm:$0xff] %v2219
        %s2228 = sand.u32 %s319, 1
        %s2229 = scalar_lea.sflag [#allocation4], %s2228
        %s2230 = sand.u32 %s319, 1
        %s2231 = smul.addr %s2230, 64
        %s2232 = scalar_lea.vmem [#allocation5], %s2231
        %s2233 = sand.u32 %s345, 1
        %s2234 = scalar_lea.sflag [#allocation7], %s2233
        %s2235 = sand.u32 %s345, 1
        %s2236 = smul.addr %s2235, 32
        %s2237 = scalar_lea.vmem [#allocation6], %s2236
        // Predicated region
        $region77: #{tpu_custom_call.1} parent=71 // pred_check
          %p2238 = pneg %p329
        $region78: #{tpu_custom_call.1} parent=71 // pred_check_branch
          %2240 = sbr.rel (%p2238) target = $region80
        $region79: #{tpu_custom_call.1} parent=71 // pred_region
          %s2242 = ssub.s32 1024, 1024
          %2243 = vsyncadd %s2229, %s2242
          %s2244 = smul.addr %s33, 8
          %s2245 = smul.addr %s2244, 128
          %s2246 = scalar_lea.hbm %s13, %s2245
          %s2247 = sshll.u32 %s2232, 4
          %s2248 = int_to_ptr.vmem [resolvable:$true] %s2247
          %2253 = dma.vmem_to_hbm [thread:$0]  %s2248, 1024, %s2246, %s2229, 256, 256, 16
        $region80: #{tpu_custom_call.1} parent=71 // pred_fallthru
          _
        // Predicated region
        $region81: #{tpu_custom_call.1} parent=71 // pred_check
          %p2254 = pneg %p355
        $region82: #{tpu_custom_call.1} parent=71 // pred_check_branch
          %2256 = sbr.rel (%p2254) target = $region84
        $region83: #{tpu_custom_call.1} parent=71 // pred_region
          %s2258 = ssub.s32 512, 512
          %2259 = vsyncadd %s2234, %s2258
          %s2260 = smul.addr %s33, 4
          %s2261 = smul.addr %s2260, 128
          %s2262 = scalar_lea.hbm %s14, %s2261
          %s2263 = sshll.u32 %s2237, 4
          %s2264 = int_to_ptr.vmem [resolvable:$true] %s2263
          %2269 = dma.vmem_to_hbm [thread:$0]  %s2264, 512, %s2262, %s2234, 128, 128, 8
        $region84: #{tpu_custom_call.1} parent=71 // pred_fallthru
          _
      $region72: #{tpu_custom_call.1} parent=5 // pred_fallthru
        _
      %p2270 = scmp.le.s32.totalorder 2, %s28
      // Predicated region
      $region85: #{tpu_custom_call.1} parent=5 // pred_check
        %p2271 = pneg %p2270
      $region86: #{tpu_custom_call.1} parent=5 // pred_check_branch
        %2273 = sbr.rel (%p2271) target = $region88
      $region87: #{tpu_custom_call.1} parent=5 // pred_region
        %s2274 = ssub.s32 %s28, 2
        // Predicated region
        $region89: #{tpu_custom_call.1} parent=87 // pred_check
          %p2275 = pneg %p335
        $region90: #{tpu_custom_call.1} parent=87 // pred_check_branch
          %2277 = sbr.rel (%p2275) target = $region92
        $region91: #{tpu_custom_call.1} parent=87 // pred_region
          %s2278 = sand.u32 %s320, 1
          %s2279 = scalar_lea.sflag [#allocation4], %s2278
          %s2280 = sand.u32 %s320, 1
          %s2281 = smul.addr %s2280, 64
          %s2282 = scalar_lea.vmem [#allocation5], %s2281
          %2283 = dma.done %s2279, 1024
        $region92: #{tpu_custom_call.1} parent=87 // pred_fallthru
          _
        // Predicated region
        $region93: #{tpu_custom_call.1} parent=87 // pred_check
          %p2284 = pneg %p361
        $region94: #{tpu_custom_call.1} parent=87 // pred_check_branch
          %2286 = sbr.rel (%p2284) target = $region96
        $region95: #{tpu_custom_call.1} parent=87 // pred_region
          %s2287 = sand.u32 %s346, 1
          %s2288 = scalar_lea.sflag [#allocation7], %s2287
          %s2289 = sand.u32 %s346, 1
          %s2290 = smul.addr %s2289, 32
          %s2291 = scalar_lea.vmem [#allocation6], %s2290
          %2292 = dma.done %s2288, 512
        $region96: #{tpu_custom_call.1} parent=87 // pred_fallthru
          _
      $region88: #{tpu_custom_call.1} parent=5 // pred_fallthru
        _
    $region6: #{tpu_custom_call.1} parent=1 // loop_footer
      %s32 = sadd.s32 1, %s28
    $region7: #{tpu_custom_call.1} parent=1 // loop_footer_branch
      %27 = sbr.rel target = $region3
    $region8: #{tpu_custom_call.1} parent=1 // loop_exit
      _
    %2293 = vsyncpa [#allocation3], 1
    %s2294 = scalar_lea.sflag [#allocation3], 1
    %2295 = vsyncpa %s2294, 1
    %2296 = vsyncpa [#allocation4], 1
    %s2297 = scalar_lea.sflag [#allocation4], 1
    %2298 = vsyncpa %s2297, 1
    %2299 = vsyncpa [#allocation7], 1
    %s2300 = scalar_lea.sflag [#allocation7], 1
    %2301 = vsyncpa %s2300, 1

</llo_original>
